<compile_context>
chip_gen: v6e
topology: v6e:2x2x1
jax: 0.10.0
libtpu: 0.0.40
codegen_flags: <defaults>
</compile_context>

<pallas_src>
import functools

import jax
import jax.numpy as jnp
from jax.experimental import pallas as pl
from jax.experimental.pallas import tpu as pltpu


LANE = 128                      # output-channel (store) padding width
TILE_M = 512                    # target rows-per-tile for the conv matmuls
VMEM_LIMIT = 32 * 1024 * 1024   # explicit scoped-VMEM budget (fits v5e/v6e/v7x)


def _round_up(x, m):
    return ((x + m - 1) // m) * m


def _cparams(parallel):
    return pltpu.CompilerParams(
        dimension_semantics=("parallel",) if parallel else ("arbitrary",),
        vmem_limit_bytes=VMEM_LIMIT)


# ---------------- fused conv-as-matmul (bf16 MXU) + bias + (res) + ReLU ----------------
def _matmul_bias_act_kernel(a_ref, w_ref, b_ref, o_ref, *, relu):
    # a: (tm, K) bf16   w: (K, N) bf16 (BN scale folded)   b: (1, N) f32
    y = jnp.dot(a_ref[...], w_ref[...], preferred_element_type=jnp.float32)
    y = y + b_ref[...]
    if relu:
        y = jnp.maximum(y, 0.0)
    o_ref[...] = y.astype(o_ref.dtype)


def _matmul_bias_res_act_kernel(a_ref, w_ref, b_ref, r_ref, o_ref, *, relu):
    y = jnp.dot(a_ref[...], w_ref[...], preferred_element_type=jnp.float32)
    # residual added in the f32 accumulator before the final bf16 cast
    y = y + b_ref[...] + r_ref[...].astype(jnp.float32)
    if relu:
        y = jnp.maximum(y, 0.0)
    o_ref[...] = y.astype(o_ref.dtype)


def fused_matmul_bias_act(a, w, bias, residual=None, relu=True):
    """(M,K)bf16 x (K,N)bf16 -> bf16, f32 accumulate, fused bias/residual/ReLU.

    Gridded over M tiles ('parallel'); W/bias use constant block indices so they
    stay resident in VMEM across the grid.
    """
    m, k = a.shape
    n = w.shape[1]
    tm = min(TILE_M, _round_up(m, 8))
    mp = _round_up(m, tm)
    a = jnp.pad(a, ((0, mp - m), (0, 0)))

    args = [a, w, bias.reshape(1, n)]
    in_specs = [
        pl.BlockSpec((tm, k), lambda i: (i, 0)),   # A tile, double-buffered
        pl.BlockSpec((k, n), lambda i: (0, 0)),    # weights: VMEM-resident
        pl.BlockSpec((1, n), lambda i: (0, 0)),    # bias:    VMEM-resident
    ]
    if residual is None:
        kernel = functools.partial(_matmul_bias_act_kernel, relu=relu)
    else:
        kernel = functools.partial(_matmul_bias_res_act_kernel, relu=relu)
        r = jnp.pad(residual, ((0, mp - m), (0, 0)))
        args.append(r)
        in_specs.append(pl.BlockSpec((tm, n), lambda i: (i, 0)))

    out = pl.pallas_call(
        kernel,
        out_shape=jax.ShapeDtypeStruct((mp, n), jnp.bfloat16),
        grid=(mp // tm,),
        in_specs=in_specs,
        out_specs=pl.BlockSpec((tm, n), lambda i: (i, 0)),
        compiler_params=_cparams(parallel=True),
    )(*args)
    return out[:m]


def _im2col(x_nhwc, kh, kw, stride, pad):
    """(N,H,W,Cin_real) bf16 -> (N*Ho*Wo, kh*kw*Cin_real) bf16 (taps folded into K)."""
    n, h, w, c = x_nhwc.shape
    if pad > 0:
        x_nhwc = jnp.pad(x_nhwc, ((0, 0), (pad, pad), (pad, pad), (0, 0)))
    ho = (h + 2 * pad - kh) // stride + 1
    wo = (w + 2 * pad - kw) // stride + 1
    cols = [
        x_nhwc[:, dy:dy + (ho - 1) * stride + 1:stride,
                  dx:dx + (wo - 1) * stride + 1:stride, :]
        for dy in range(kh) for dx in range(kw)
    ]
    a = jnp.concatenate(cols, axis=-1).reshape(n * ho * wo, kh * kw * c)
    return a, ho, wo


def conv_bn_act(x_nhwc, p, relu=True, residual=None):
    """Conv (one bf16 matmul) + folded-BN bias + optional residual + ReLU."""
    # Slice off padded input lanes so K = kh*kw*cin_real (no wasted MXU work).
    x = x_nhwc[..., :p["cin"]]
    a, ho, wo = _im2col(x, p["k"], p["k"], p["stride"], p["pad"])
    r = None if residual is None else residual.reshape(-1, LANE)
    y = fused_matmul_bias_act(a, p["w"], p["b"], residual=r, relu=relu)
    return y.reshape(x_nhwc.shape[0], ho, wo, LANE)


# --------------------------------- MaxPool 3x3 / s2 / p1 ---------------------------------
def _maxpool_kernel(x_ref, o_ref):
    # x: (9, M, C) -> max over the leading (tap) axis: pure VPU, lane-dense store.
    o_ref[...] = jnp.max(x_ref[...], axis=0)


def maxpool3x3_s2_p1(x_nhwc):
    # TODO(synk): window directly from the stem output inside the kernel (halo
    # blocks / strided in-kernel reads) to avoid the 9-window stack at real sizes.
    n, h, w, c = x_nhwc.shape
    xp = jnp.pad(x_nhwc, ((0, 0), (1, 1), (1, 1), (0, 0)),
                 constant_values=-jnp.inf)
    ho = (h + 2 - 3) // 2 + 1
    wo = (w + 2 - 3) // 2 + 1
    wins = jnp.stack([
        xp[:, dy:dy + (ho - 1) * 2 + 1:2, dx:dx + (wo - 1) * 2 + 1:2, :]
        for dy in range(3) for dx in range(3)
    ], axis=0).reshape(9, n * ho * wo, c)
    out = pl.pallas_call(
        _maxpool_kernel,
        out_shape=jax.ShapeDtypeStruct((n * ho * wo, c), jnp.bfloat16),
        grid=(1,),
        in_specs=[pl.BlockSpec((9, n * ho * wo, c), lambda i: (0, 0, 0))],
        out_specs=pl.BlockSpec((n * ho * wo, c), lambda i: (0, 0)),
        compiler_params=_cparams(parallel=False),
    )(wins)
    return out.reshape(n, ho, wo, c)


# -------------------------------------- LayerNorm --------------------------------------
def _layernorm_kernel(x_ref, g_ref, b_ref, o_ref, *, eps):
    x = x_ref[...]                                        # (Nb, D) f32
    mu = jnp.mean(x, axis=1, keepdims=True)
    xc = x - mu
    var = jnp.mean(xc * xc, axis=1, keepdims=True)
    y = xc * jax.lax.rsqrt(var + eps) * g_ref[...] + b_ref[...]
    o_ref[...] = y.astype(o_ref.dtype)                    # bf16 trunk activations


def layernorm(x2d, gamma, beta, eps=1e-5):
    n, d = x2d.shape
    nb = _round_up(n, 8)                                  # sublane-friendly batch
    xp = jnp.pad(x2d, ((0, nb - n), (0, 0)))
    out = pl.pallas_call(
        functools.partial(_layernorm_kernel, eps=eps),
        out_shape=jax.ShapeDtypeStruct((nb, d), jnp.bfloat16),
        grid=(1,),
        in_specs=[pl.BlockSpec((nb, d), lambda i: (0, 0)),
                  pl.BlockSpec((1, d), lambda i: (0, 0)),
                  pl.BlockSpec((1, d), lambda i: (0, 0))],
        out_specs=pl.BlockSpec((nb, d), lambda i: (0, 0)),
        compiler_params=_cparams(parallel=False),
    )(xp, gamma.reshape(1, d), beta.reshape(1, d))
    return out[:n]


# ------------------------- head: avgpool + fc + sigmoid (fused) -------------------------
def _head_kernel(x_ref, w_ref, b_ref, feat_ref, out_ref):
    # x: (HW, Nb, C) bf16 with HW as a *leading* axis -> VPU reduce, not XLU.
    x = x_ref[...].astype(jnp.float32)
    feat = jnp.mean(x, axis=0)                            # (Nb, C) f32
    feat_ref[...] = feat
    y = jnp.dot(feat, w_ref[...], preferred_element_type=jnp.float32) + b_ref[...]
    out_ref[...] = 1.0 / (1.0 + jnp.exp(-y))              # exact sigmoid (head is tiny)


def avgpool_fc_sigmoid(x_nhwc, fc_w, fc_b):
    n, h, w, c = x_nhwc.shape
    ncls = fc_w.shape[1]
    nb = _round_up(n, 8)                                  # pad batch to 8 sublanes
    x3 = jnp.transpose(x_nhwc.reshape(n, h * w, c), (1, 0, 2))
    x3 = jnp.pad(x3, ((0, 0), (0, nb - n), (0, 0)))
    feat, out = pl.pallas_call(
        _head_kernel,
        out_shape=(jax.ShapeDtypeStruct((nb, c), jnp.float32),
                   jax.ShapeDtypeStruct((nb, ncls), jnp.float32)),
        grid=(1,),
        in_specs=[pl.BlockSpec((h * w, nb, c), lambda i: (0, 0, 0)),
                  pl.BlockSpec((c, ncls), lambda i: (0, 0)),
                  pl.BlockSpec((1, ncls), lambda i: (0, 0))],
        out_specs=(pl.BlockSpec((nb, c), lambda i: (0, 0)),
                   pl.BlockSpec((nb, ncls), lambda i: (0, 0))),
        compiler_params=_cparams(parallel=False),
    )(x3, fc_w, fc_b.reshape(1, ncls))
    return feat[:n], out[:n]


# ------------------------------------ ResNet forward ------------------------------------
def resnet_forward(params, x_nchw):
    n, c, h, w = x_nchw.shape
    # 1) LayerNorm over (C, H, W) per sample (affine params in NCHW flatten order).
    xn = layernorm(x_nchw.reshape(n, c * h * w), params["ln_w"], params["ln_b"])
    x = jnp.transpose(xn.reshape(n, c, h, w), (0, 2, 3, 1))        # -> NHWC bf16

    # 2) Stem: conv7x7/s2 (bias-free) + ReLU (bn1 is NOT applied in the reference
    #    forward), then 3x3/s2/p1 max pool.  Cout padded to 128 lanes from here on.
    x = conv_bn_act(x, params["stem"], relu=True)
    x = maxpool3x3_s2_p1(x)

    # 3) Residual stages (BasicBlock): conv-bn-relu, conv-bn (+identity/downsample), relu.
    # TODO(synk): fuse each BasicBlock into a single pallas_call (intermediate in
    # VMEM) once in-kernel im2col of the conv1 output is in place.
    for stage in params["stages"]:
        for blk in stage:
            identity = x
            out = conv_bn_act(x, blk["conv1"], relu=True)
            if "down" in blk:
                identity = conv_bn_act(x, blk["down"], relu=False)
            x = conv_bn_act(out, blk["conv2"], relu=True, residual=identity)

    # 4) Head: global average pool + fc + sigmoid, fused into one kernel.
    feat_p, out_p = avgpool_fc_sigmoid(x, params["fc_w"], params["fc_b"])
    feat = feat_p[:, :params["feat_dim"]]          # drop zero padding lanes
    out = out_p[:, :params["num_classes"]]
    return out, feat


# --------------------------------- deterministic init ---------------------------------
def init_resnet_params(key, *, in_ch=3, img=16, widths=(16, 32, 64, 128),
                       blocks=(1, 1, 1, 1), num_classes=1, bn_eps=1e-5):
    f32, bf16 = jnp.float32, jnp.bfloat16

    def conv_params(k, ksz, cin_r, cout_r, stride, pad, with_bn=True):
        # kaiming_normal_(fan_out, relu), like the PyTorch reference init loop.
        std = (2.0 / (ksz * ksz * cout_r)) ** 0.5
        w = std * jax.random.normal(k, (ksz, ksz, cin_r, cout_r), f32)
        if with_bn:
            # TODO(synk): BatchNorm uses eval-mode running statistics (mean=0, var=1,
            # gamma=1, beta=0); scale is folded into the weights, shift into the bias.
            scale_r = jnp.full((cout_r,), 1.0 / jnp.sqrt(1.0 + bn_eps), f32)
            bias_r = jnp.zeros((cout_r,), f32)
        else:
            scale_r = jnp.ones((cout_r,), f32)
            bias_r = jnp.zeros((cout_r,), f32)
        w = w * scale_r                                           # fold BN scale
        w = jnp.pad(w, ((0, 0), (0, 0), (0, 0), (0, LANE - cout_r)))
        w = w.reshape(ksz * ksz * cin_r, LANE).astype(bf16)       # bf16 MXU weights
        bias = jnp.pad(bias_r, (0, LANE - cout_r))                # padded lanes stay 0
        return {"w": w, "b": bias, "stride": stride, "pad": pad,
                "k": ksz, "cin": cin_r}

    params = {}
    d = in_ch * img * img
    params["ln_w"] = jnp.ones((d,), f32)
    params["ln_b"] = jnp.zeros((d,), f32)

    key, k = jax.random.split(key)
    params["stem"] = conv_params(k, 7, in_ch, widths[0],
                                 stride=2, pad=3, with_bn=False)  # bn1 skipped in forward

    stages = []
    inplanes = widths[0]
    for li, planes in enumerate(widths):
        stage_stride = 1 if li == 0 else 2
        stage = []
        for bi in range(blocks[li]):
            s = stage_stride if bi == 0 else 1
            key, k1, k2, k3 = jax.random.split(key, 4)
            blk = {
                "conv1": conv_params(k1, 3, inplanes, planes, stride=s, pad=1),
                "conv2": conv_params(k2, 3, planes, planes, stride=1, pad=1),
            }
            if s != 1 or inplanes != planes:
                blk["down"] = conv_params(k3, 1, inplanes, planes, stride=s, pad=0)
            stage.append(blk)
            inplanes = planes
        stages.append(stage)
    params["stages"] = stages

    # fc keeps PyTorch's default nn.Linear init (the ResNet init loop skips Linear).
    fan_in = widths[-1]
    bound = 1.0 / (fan_in ** 0.5)
    key, kw_, kb_ = jax.random.split(key, 3)
    fc_w = jax.random.uniform(kw_, (fan_in, num_classes), f32, -bound, bound)
    fc_b = jax.random.uniform(kb_, (num_classes,), f32, -bound, bound)
    params["fc_w"] = jnp.pad(fc_w, ((0, LANE - fan_in), (0, LANE - num_classes)))
    params["fc_b"] = jnp.pad(fc_b, (0, LANE - num_classes))
    params["feat_dim"] = widths[-1]
    params["num_classes"] = num_classes
    return params


if __name__ == "__main__":
    key = jax.random.PRNGKey(0)
    k_x, k_p = jax.random.split(key)

    # Small-shape ResNet: BasicBlock, layers=[1,1,1,1], widths 16/32/64/128,
    # input (2, 3, 16, 16), num_classes=1 (module default).
    N, C, H, W = 2, 3, 16, 16
    widths = (16, 32, 64, 128)
    blocks = (1, 1, 1, 1)
    num_classes = 1

    x = jax.random.normal(k_x, (N, C, H, W), jnp.float32)
    params = init_resnet_params(k_p, in_ch=C, img=H, widths=widths,
                                blocks=blocks, num_classes=num_classes)

    fwd = jax.jit(functools.partial(resnet_forward, params))
    out, feat = fwd(x)
    jax.block_until_ready((out, feat))

    assert out.shape == (N, num_classes), out.shape
    assert feat.shape == (N, widths[-1]), feat.shape
    assert bool(jnp.all(jnp.isfinite(out))) and bool(jnp.all(jnp.isfinite(feat)))
    # exact sigmoid -> strictly inside (0, 1)
    assert bool(jnp.all((out > 0.0) & (out < 1.0)))
    print("KERNEL_OK")
</pallas_src>

<mosaic_0001>
module attributes {stable_mosaic.version = 11 : i64} {
  func.func @_layernorm_kernel(%arg0: i32, %arg1: memref<8x768xf32, #tpu.memory_space<vmem>>, %arg2: memref<1x768xf32, #tpu.memory_space<vmem>>, %arg3: memref<1x768xf32, #tpu.memory_space<vmem>>, %arg4: memref<8x768xbf16, #tpu.memory_space<vmem>>) attributes {dimension_semantics = [#tpu.dimension_semantics<arbitrary>], iteration_bounds = array<i64: 1>, scalar_prefetch = 0 : i64, scratch_operands = 0 : i64, tpu.core_type = #tpu.core_type<tc>, window_params = [{pipeline_mode = #tpu.pipeline_mode<synchronous>, transform_indices = @transform_0, window_bounds = array<i64: 8, 768>}, {pipeline_mode = #tpu.pipeline_mode<synchronous>, transform_indices = @transform_1, window_bounds = array<i64: 1, 768>}, {pipeline_mode = #tpu.pipeline_mode<synchronous>, transform_indices = @transform_2, window_bounds = array<i64: 1, 768>}, {pipeline_mode = #tpu.pipeline_mode<synchronous>, transform_indices = @transform_3, window_bounds = array<i64: 8, 768>}]} {
    %c0 = arith.constant 0 : index
    %c0_0 = arith.constant 0 : index
    %0 = vector.load %arg1[%c0, %c0_0] : memref<8x768xf32, #tpu.memory_space<vmem>>, vector<8x768xf32>
    %cst = arith.constant dense<0.000000e+00> : vector<8xf32>
    %1 = vector.multi_reduction <add>, %0, %cst [1] : vector<8x768xf32> to vector<8xf32>
    %2 = vector.shape_cast %1 : vector<8xf32> to vector<8x1xf32>
    %cst_1 = arith.constant 7.680000e+02 : f32
    %3 = vector.broadcast %cst_1 : f32 to vector<8x1xf32>
    %4 = arith.divf %2, %3 : vector<8x1xf32>
    %5 = vector.broadcast %4 : vector<8x1xf32> to vector<8x768xf32>
    %6 = arith.subf %0, %5 : vector<8x768xf32>
    %7 = arith.mulf %6, %6 : vector<8x768xf32>
    %cst_2 = arith.constant dense<0.000000e+00> : vector<8xf32>
    %8 = vector.multi_reduction <add>, %7, %cst_2 [1] : vector<8x768xf32> to vector<8xf32>
    %9 = vector.shape_cast %8 : vector<8xf32> to vector<8x1xf32>
    %cst_3 = arith.constant 7.680000e+02 : f32
    %10 = vector.broadcast %cst_3 : f32 to vector<8x1xf32>
    %11 = arith.divf %9, %10 : vector<8x1xf32>
    %cst_4 = arith.constant 9.99999974E-6 : f32
    %12 = vector.broadcast %cst_4 : f32 to vector<8x1xf32>
    %13 = arith.addf %11, %12 : vector<8x1xf32>
    %14 = math.rsqrt %13 : vector<8x1xf32>
    %15 = vector.broadcast %14 : vector<8x1xf32> to vector<8x768xf32>
    %16 = arith.mulf %6, %15 : vector<8x768xf32>
    %c0_5 = arith.constant 0 : index
    %c0_6 = arith.constant 0 : index
    %17 = vector.load %arg2[%c0_5, %c0_6] : memref<1x768xf32, #tpu.memory_space<vmem>>, vector<1x768xf32>
    %18 = vector.broadcast %17 : vector<1x768xf32> to vector<8x768xf32>
    %19 = arith.mulf %16, %18 : vector<8x768xf32>
    %c0_7 = arith.constant 0 : index
    %c0_8 = arith.constant 0 : index
    %20 = vector.load %arg3[%c0_7, %c0_8] : memref<1x768xf32, #tpu.memory_space<vmem>>, vector<1x768xf32>
    %21 = vector.broadcast %20 : vector<1x768xf32> to vector<8x768xf32>
    %22 = arith.addf %19, %21 : vector<8x768xf32>
    %23 = arith.truncf %22 : vector<8x768xf32> to vector<8x768xbf16>
    %c0_9 = arith.constant 0 : index
    %c0_10 = arith.constant 0 : index
    %24 = vector.load %arg4[%c0_9, %c0_10] : memref<8x768xbf16, #tpu.memory_space<vmem>>, vector<8x768xbf16>
    tpu.vector_store %arg4[%c0_9, %c0_10], %23 {strides = array<i32>} : memref<8x768xbf16, #tpu.memory_space<vmem>>, vector<8x768xbf16>,
    return
  }
  func.func @transform_0(%arg0: i32) -> (i32, i32) {
    %c0_i32 = arith.constant 0 : i32
    %c0_i32_0 = arith.constant 0 : i32
    %c0_i32_1 = arith.constant 0 : i32
    return %c0_i32, %c0_i32_0 : i32, i32
  }
  func.func @transform_1(%arg0: i32) -> (i32, i32) {
    %c0_i32 = arith.constant 0 : i32
    %c0_i32_0 = arith.constant 0 : i32
    %c0_i32_1 = arith.constant 0 : i32
    return %c0_i32, %c0_i32_0 : i32, i32
  }
  func.func @transform_2(%arg0: i32) -> (i32, i32) {
    %c0_i32 = arith.constant 0 : i32
    %c0_i32_0 = arith.constant 0 : i32
    %c0_i32_1 = arith.constant 0 : i32
    return %c0_i32, %c0_i32_0 : i32, i32
  }
  func.func @transform_3(%arg0: i32) -> (i32, i32) {
    %c0_i32 = arith.constant 0 : i32
    %c0_i32_0 = arith.constant 0 : i32
    %c0_i32_1 = arith.constant 0 : i32
    return %c0_i32, %c0_i32_0 : i32, i32
  }
}

module attributes {stable_mosaic.version = 11 : i64} {
  func.func @_matmul_bias_act_kernel(%arg0: i32, %arg1: memref<128x147xbf16, #tpu.memory_space<vmem>>, %arg2: memref<147x128xbf16, #tpu.memory_space<vmem>>, %arg3: memref<1x128xf32, #tpu.memory_space<vmem>>, %arg4: memref<128x128xbf16, #tpu.memory_space<vmem>>) attributes {dimension_semantics = [#tpu.dimension_semantics<parallel>], iteration_bounds = array<i64: 1>, scalar_prefetch = 0 : i64, scratch_operands = 0 : i64, tpu.core_type = #tpu.core_type<tc>, window_params = [{transform_indices = @transform_0, window_bounds = array<i64: 128, 147>}, {pipeline_mode = #tpu.pipeline_mode<synchronous>, transform_indices = @transform_1, window_bounds = array<i64: 147, 128>}, {pipeline_mode = #tpu.pipeline_mode<synchronous>, transform_indices = @transform_2, window_bounds = array<i64: 1, 128>}, {transform_indices = @transform_3, window_bounds = array<i64: 128, 128>}]} {
    %c0 = arith.constant 0 : index
    %c0_0 = arith.constant 0 : index
    %0 = vector.load %arg1[%c0, %c0_0] : memref<128x147xbf16, #tpu.memory_space<vmem>>, vector<128x147xbf16>
    %c0_1 = arith.constant 0 : index
    %c0_2 = arith.constant 0 : index
    %1 = vector.load %arg2[%c0_1, %c0_2] : memref<147x128xbf16, #tpu.memory_space<vmem>>, vector<147x128xbf16>
    %cst = arith.constant dense<0.000000e+00> : vector<128x128xf32>
    %2 = tpu.matmul %0, %1, %cst {dimension_numbers = #tpu.dot_dimension_numbers<[1], [0], [0], [1], [0, 0, 1, 1], [], []>} : vector<128x147xbf16>, vector<147x128xbf16>, vector<128x128xf32> -> vector<128x128xf32>
    %c0_3 = arith.constant 0 : index
    %c0_4 = arith.constant 0 : index
    %3 = vector.load %arg3[%c0_3, %c0_4] : memref<1x128xf32, #tpu.memory_space<vmem>>, vector<1x128xf32>
    %4 = vector.broadcast %3 : vector<1x128xf32> to vector<128x128xf32>
    %5 = arith.addf %2, %4 : vector<128x128xf32>
    %cst_5 = arith.constant 0.000000e+00 : f32
    %6 = vector.broadcast %cst_5 : f32 to vector<128x128xf32>
    %7 = arith.maximumf %5, %6 : vector<128x128xf32>
    %8 = arith.truncf %7 : vector<128x128xf32> to vector<128x128xbf16>
    %c0_6 = arith.constant 0 : index
    %c0_7 = arith.constant 0 : index
    %9 = vector.load %arg4[%c0_6, %c0_7] : memref<128x128xbf16, #tpu.memory_space<vmem>>, vector<128x128xbf16>
    tpu.vector_store %arg4[%c0_6, %c0_7], %8 {strides = array<i32>} : memref<128x128xbf16, #tpu.memory_space<vmem>>, vector<128x128xbf16>,
    return
  }
  func.func @transform_0(%arg0: i32) -> (i32, i32) {
    %c0_i32 = arith.constant 0 : i32
    %c0_i32_0 = arith.constant 0 : i32
    return %arg0, %c0_i32 : i32, i32
  }
  func.func @transform_1(%arg0: i32) -> (i32, i32) {
    %c0_i32 = arith.constant 0 : i32
    %c0_i32_0 = arith.constant 0 : i32
    %c0_i32_1 = arith.constant 0 : i32
    return %c0_i32, %c0_i32_0 : i32, i32
  }
  func.func @transform_2(%arg0: i32) -> (i32, i32) {
    %c0_i32 = arith.constant 0 : i32
    %c0_i32_0 = arith.constant 0 : i32
    %c0_i32_1 = arith.constant 0 : i32
    return %c0_i32, %c0_i32_0 : i32, i32
  }
  func.func @transform_3(%arg0: i32) -> (i32, i32) {
    %c0_i32 = arith.constant 0 : i32
    %c0_i32_0 = arith.constant 0 : i32
    return %arg0, %c0_i32 : i32, i32
  }
}

module attributes {stable_mosaic.version = 11 : i64} {
  func.func @_maxpool_kernel(%arg0: i32, %arg1: memref<9x32x128xbf16, #tpu.memory_space<vmem>>, %arg2: memref<32x128xbf16, #tpu.memory_space<vmem>>) attributes {dimension_semantics = [#tpu.dimension_semantics<arbitrary>], iteration_bounds = array<i64: 1>, scalar_prefetch = 0 : i64, scratch_operands = 0 : i64, tpu.core_type = #tpu.core_type<tc>, window_params = [{pipeline_mode = #tpu.pipeline_mode<synchronous>, transform_indices = @transform_0, window_bounds = array<i64: 9, 32, 128>}, {pipeline_mode = #tpu.pipeline_mode<synchronous>, transform_indices = @transform_1, window_bounds = array<i64: 32, 128>}]} {
    %c0 = arith.constant 0 : index
    %c0_0 = arith.constant 0 : index
    %c0_1 = arith.constant 0 : index
    %0 = vector.load %arg1[%c0, %c0_0, %c0_1] : memref<9x32x128xbf16, #tpu.memory_space<vmem>>, vector<9x32x128xbf16>
    %cst = arith.constant dense<0xFF80> : vector<32x128xbf16>
    %1 = vector.multi_reduction <maximumf>, %0, %cst [0] : vector<9x32x128xbf16> to vector<32x128xbf16>
    %c0_2 = arith.constant 0 : index
    %c0_3 = arith.constant 0 : index
    %2 = vector.load %arg2[%c0_2, %c0_3] : memref<32x128xbf16, #tpu.memory_space<vmem>>, vector<32x128xbf16>
    tpu.vector_store %arg2[%c0_2, %c0_3], %1 {strides = array<i32>} : memref<32x128xbf16, #tpu.memory_space<vmem>>, vector<32x128xbf16>,
    return
  }
  func.func @transform_0(%arg0: i32) -> (i32, i32, i32) {
    %c0_i32 = arith.constant 0 : i32
    %c0_i32_0 = arith.constant 0 : i32
    %c0_i32_1 = arith.constant 0 : i32
    %c0_i32_2 = arith.constant 0 : i32
    return %c0_i32, %c0_i32_0, %c0_i32_1 : i32, i32, i32
  }
  func.func @transform_1(%arg0: i32) -> (i32, i32) {
    %c0_i32 = arith.constant 0 : i32
    %c0_i32_0 = arith.constant 0 : i32
    %c0_i32_1 = arith.constant 0 : i32
    return %c0_i32, %c0_i32_0 : i32, i32
  }
}

module attributes {stable_mosaic.version = 11 : i64} {
  func.func @_matmul_bias_act_kernel(%arg0: i32, %arg1: memref<32x144xbf16, #tpu.memory_space<vmem>>, %arg2: memref<144x128xbf16, #tpu.memory_space<vmem>>, %arg3: memref<1x128xf32, #tpu.memory_space<vmem>>, %arg4: memref<32x128xbf16, #tpu.memory_space<vmem>>) attributes {dimension_semantics = [#tpu.dimension_semantics<parallel>], iteration_bounds = array<i64: 1>, scalar_prefetch = 0 : i64, scratch_operands = 0 : i64, tpu.core_type = #tpu.core_type<tc>, window_params = [{transform_indices = @transform_0, window_bounds = array<i64: 32, 144>}, {pipeline_mode = #tpu.pipeline_mode<synchronous>, transform_indices = @transform_1, window_bounds = array<i64: 144, 128>}, {pipeline_mode = #tpu.pipeline_mode<synchronous>, transform_indices = @transform_2, window_bounds = array<i64: 1, 128>}, {transform_indices = @transform_3, window_bounds = array<i64: 32, 128>}]} {
    %c0 = arith.constant 0 : index
    %c0_0 = arith.constant 0 : index
    %0 = vector.load %arg1[%c0, %c0_0] : memref<32x144xbf16, #tpu.memory_space<vmem>>, vector<32x144xbf16>
    %c0_1 = arith.constant 0 : index
    %c0_2 = arith.constant 0 : index
    %1 = vector.load %arg2[%c0_1, %c0_2] : memref<144x128xbf16, #tpu.memory_space<vmem>>, vector<144x128xbf16>
    %cst = arith.constant dense<0.000000e+00> : vector<32x128xf32>
    %2 = tpu.matmul %0, %1, %cst {dimension_numbers = #tpu.dot_dimension_numbers<[1], [0], [0], [1], [0, 0, 1, 1], [], []>} : vector<32x144xbf16>, vector<144x128xbf16>, vector<32x128xf32> -> vector<32x128xf32>
    %c0_3 = arith.constant 0 : index
    %c0_4 = arith.constant 0 : index
    %3 = vector.load %arg3[%c0_3, %c0_4] : memref<1x128xf32, #tpu.memory_space<vmem>>, vector<1x128xf32>
    %4 = vector.broadcast %3 : vector<1x128xf32> to vector<32x128xf32>
    %5 = arith.addf %2, %4 : vector<32x128xf32>
    %cst_5 = arith.constant 0.000000e+00 : f32
    %6 = vector.broadcast %cst_5 : f32 to vector<32x128xf32>
    %7 = arith.maximumf %5, %6 : vector<32x128xf32>
    %8 = arith.truncf %7 : vector<32x128xf32> to vector<32x128xbf16>
    %c0_6 = arith.constant 0 : index
    %c0_7 = arith.constant 0 : index
    %9 = vector.load %arg4[%c0_6, %c0_7] : memref<32x128xbf16, #tpu.memory_space<vmem>>, vector<32x128xbf16>
    tpu.vector_store %arg4[%c0_6, %c0_7], %8 {strides = array<i32>} : memref<32x128xbf16, #tpu.memory_space<vmem>>, vector<32x128xbf16>,
    return
  }
  func.func @transform_0(%arg0: i32) -> (i32, i32) {
    %c0_i32 = arith.constant 0 : i32
    %c0_i32_0 = arith.constant 0 : i32
    return %arg0, %c0_i32 : i32, i32
  }
  func.func @transform_1(%arg0: i32) -> (i32, i32) {
    %c0_i32 = arith.constant 0 : i32
    %c0_i32_0 = arith.constant 0 : i32
    %c0_i32_1 = arith.constant 0 : i32
    return %c0_i32, %c0_i32_0 : i32, i32
  }
  func.func @transform_2(%arg0: i32) -> (i32, i32) {
    %c0_i32 = arith.constant 0 : i32
    %c0_i32_0 = arith.constant 0 : i32
    %c0_i32_1 = arith.constant 0 : i32
    return %c0_i32, %c0_i32_0 : i32, i32
  }
  func.func @transform_3(%arg0: i32) -> (i32, i32) {
    %c0_i32 = arith.constant 0 : i32
    %c0_i32_0 = arith.constant 0 : i32
    return %arg0, %c0_i32 : i32, i32
  }
}

module attributes {stable_mosaic.version = 11 : i64} {
  func.func @_matmul_bias_res_act_kernel(%arg0: i32, %arg1: memref<32x144xbf16, #tpu.memory_space<vmem>>, %arg2: memref<144x128xbf16, #tpu.memory_space<vmem>>, %arg3: memref<1x128xf32, #tpu.memory_space<vmem>>, %arg4: memref<32x128xbf16, #tpu.memory_space<vmem>>, %arg5: memref<32x128xbf16, #tpu.memory_space<vmem>>) attributes {dimension_semantics = [#tpu.dimension_semantics<parallel>], iteration_bounds = array<i64: 1>, scalar_prefetch = 0 : i64, scratch_operands = 0 : i64, tpu.core_type = #tpu.core_type<tc>, window_params = [{transform_indices = @transform_0, window_bounds = array<i64: 32, 144>}, {pipeline_mode = #tpu.pipeline_mode<synchronous>, transform_indices = @transform_1, window_bounds = array<i64: 144, 128>}, {pipeline_mode = #tpu.pipeline_mode<synchronous>, transform_indices = @transform_2, window_bounds = array<i64: 1, 128>}, {transform_indices = @transform_3, window_bounds = array<i64: 32, 128>}, {transform_indices = @transform_4, window_bounds = array<i64: 32, 128>}]} {
    %c0 = arith.constant 0 : index
    %c0_0 = arith.constant 0 : index
    %0 = vector.load %arg1[%c0, %c0_0] : memref<32x144xbf16, #tpu.memory_space<vmem>>, vector<32x144xbf16>
    %c0_1 = arith.constant 0 : index
    %c0_2 = arith.constant 0 : index
    %1 = vector.load %arg2[%c0_1, %c0_2] : memref<144x128xbf16, #tpu.memory_space<vmem>>, vector<144x128xbf16>
    %cst = arith.constant dense<0.000000e+00> : vector<32x128xf32>
    %2 = tpu.matmul %0, %1, %cst {dimension_numbers = #tpu.dot_dimension_numbers<[1], [0], [0], [1], [0, 0, 1, 1], [], []>} : vector<32x144xbf16>, vector<144x128xbf16>, vector<32x128xf32> -> vector<32x128xf32>
    %c0_3 = arith.constant 0 : index
    %c0_4 = arith.constant 0 : index
    %3 = vector.load %arg3[%c0_3, %c0_4] : memref<1x128xf32, #tpu.memory_space<vmem>>, vector<1x128xf32>
    %4 = vector.broadcast %3 : vector<1x128xf32> to vector<32x128xf32>
    %5 = arith.addf %2, %4 : vector<32x128xf32>
    %c0_5 = arith.constant 0 : index
    %c0_6 = arith.constant 0 : index
    %6 = vector.load %arg4[%c0_5, %c0_6] : memref<32x128xbf16, #tpu.memory_space<vmem>>, vector<32x128xbf16>
    %7 = arith.extf %6 : vector<32x128xbf16> to vector<32x128xf32>
    %8 = arith.addf %5, %7 : vector<32x128xf32>
    %cst_7 = arith.constant 0.000000e+00 : f32
    %9 = vector.broadcast %cst_7 : f32 to vector<32x128xf32>
    %10 = arith.maximumf %8, %9 : vector<32x128xf32>
    %11 = arith.truncf %10 : vector<32x128xf32> to vector<32x128xbf16>
    %c0_8 = arith.constant 0 : index
    %c0_9 = arith.constant 0 : index
    %12 = vector.load %arg5[%c0_8, %c0_9] : memref<32x128xbf16, #tpu.memory_space<vmem>>, vector<32x128xbf16>
    tpu.vector_store %arg5[%c0_8, %c0_9], %11 {strides = array<i32>} : memref<32x128xbf16, #tpu.memory_space<vmem>>, vector<32x128xbf16>,
    return
  }
  func.func @transform_0(%arg0: i32) -> (i32, i32) {
    %c0_i32 = arith.constant 0 : i32
    %c0_i32_0 = arith.constant 0 : i32
    return %arg0, %c0_i32 : i32, i32
  }
  func.func @transform_1(%arg0: i32) -> (i32, i32) {
    %c0_i32 = arith.constant 0 : i32
    %c0_i32_0 = arith.constant 0 : i32
    %c0_i32_1 = arith.constant 0 : i32
    return %c0_i32, %c0_i32_0 : i32, i32
  }
  func.func @transform_2(%arg0: i32) -> (i32, i32) {
    %c0_i32 = arith.constant 0 : i32
    %c0_i32_0 = arith.constant 0 : i32
    %c0_i32_1 = arith.constant 0 : i32
    return %c0_i32, %c0_i32_0 : i32, i32
  }
  func.func @transform_3(%arg0: i32) -> (i32, i32) {
    %c0_i32 = arith.constant 0 : i32
    %c0_i32_0 = arith.constant 0 : i32
    return %arg0, %c0_i32 : i32, i32
  }
  func.func @transform_4(%arg0: i32) -> (i32, i32) {
    %c0_i32 = arith.constant 0 : i32
    %c0_i32_0 = arith.constant 0 : i32
    return %arg0, %c0_i32 : i32, i32
  }
}

module attributes {stable_mosaic.version = 11 : i64} {
  func.func @_matmul_bias_act_kernel(%arg0: i32, %arg1: memref<8x144xbf16, #tpu.memory_space<vmem>>, %arg2: memref<144x128xbf16, #tpu.memory_space<vmem>>, %arg3: memref<1x128xf32, #tpu.memory_space<vmem>>, %arg4: memref<8x128xbf16, #tpu.memory_space<vmem>>) attributes {dimension_semantics = [#tpu.dimension_semantics<parallel>], iteration_bounds = array<i64: 1>, scalar_prefetch = 0 : i64, scratch_operands = 0 : i64, tpu.core_type = #tpu.core_type<tc>, window_params = [{transform_indices = @transform_0, window_bounds = array<i64: 8, 144>}, {pipeline_mode = #tpu.pipeline_mode<synchronous>, transform_indices = @transform_1, window_bounds = array<i64: 144, 128>}, {pipeline_mode = #tpu.pipeline_mode<synchronous>, transform_indices = @transform_2, window_bounds = array<i64: 1, 128>}, {transform_indices = @transform_3, window_bounds = array<i64: 8, 128>}]} {
    %c0 = arith.constant 0 : index
    %c0_0 = arith.constant 0 : index
    %0 = vector.load %arg1[%c0, %c0_0] : memref<8x144xbf16, #tpu.memory_space<vmem>>, vector<8x144xbf16>
    %c0_1 = arith.constant 0 : index
    %c0_2 = arith.constant 0 : index
    %1 = vector.load %arg2[%c0_1, %c0_2] : memref<144x128xbf16, #tpu.memory_space<vmem>>, vector<144x128xbf16>
    %cst = arith.constant dense<0.000000e+00> : vector<8x128xf32>
    %2 = tpu.matmul %0, %1, %cst {dimension_numbers = #tpu.dot_dimension_numbers<[1], [0], [0], [1], [0, 0, 1, 1], [], []>} : vector<8x144xbf16>, vector<144x128xbf16>, vector<8x128xf32> -> vector<8x128xf32>
    %c0_3 = arith.constant 0 : index
    %c0_4 = arith.constant 0 : index
    %3 = vector.load %arg3[%c0_3, %c0_4] : memref<1x128xf32, #tpu.memory_space<vmem>>, vector<1x128xf32>
    %4 = vector.broadcast %3 : vector<1x128xf32> to vector<8x128xf32>
    %5 = arith.addf %2, %4 : vector<8x128xf32>
    %cst_5 = arith.constant 0.000000e+00 : f32
    %6 = vector.broadcast %cst_5 : f32 to vector<8x128xf32>
    %7 = arith.maximumf %5, %6 : vector<8x128xf32>
    %8 = arith.truncf %7 : vector<8x128xf32> to vector<8x128xbf16>
    %c0_6 = arith.constant 0 : index
    %c0_7 = arith.constant 0 : index
    %9 = vector.load %arg4[%c0_6, %c0_7] : memref<8x128xbf16, #tpu.memory_space<vmem>>, vector<8x128xbf16>
    tpu.vector_store %arg4[%c0_6, %c0_7], %8 {strides = array<i32>} : memref<8x128xbf16, #tpu.memory_space<vmem>>, vector<8x128xbf16>,
    return
  }
  func.func @transform_0(%arg0: i32) -> (i32, i32) {
    %c0_i32 = arith.constant 0 : i32
    %c0_i32_0 = arith.constant 0 : i32
    return %arg0, %c0_i32 : i32, i32
  }
  func.func @transform_1(%arg0: i32) -> (i32, i32) {
    %c0_i32 = arith.constant 0 : i32
    %c0_i32_0 = arith.constant 0 : i32
    %c0_i32_1 = arith.constant 0 : i32
    return %c0_i32, %c0_i32_0 : i32, i32
  }
  func.func @transform_2(%arg0: i32) -> (i32, i32) {
    %c0_i32 = arith.constant 0 : i32
    %c0_i32_0 = arith.constant 0 : i32
    %c0_i32_1 = arith.constant 0 : i32
    return %c0_i32, %c0_i32_0 : i32, i32
  }
  func.func @transform_3(%arg0: i32) -> (i32, i32) {
    %c0_i32 = arith.constant 0 : i32
    %c0_i32_0 = arith.constant 0 : i32
    return %arg0, %c0_i32 : i32, i32
  }
}

module attributes {stable_mosaic.version = 11 : i64} {
  func.func @_matmul_bias_act_kernel(%arg0: i32, %arg1: memref<8x16xbf16, #tpu.memory_space<vmem>>, %arg2: memref<16x128xbf16, #tpu.memory_space<vmem>>, %arg3: memref<1x128xf32, #tpu.memory_space<vmem>>, %arg4: memref<8x128xbf16, #tpu.memory_space<vmem>>) attributes {dimension_semantics = [#tpu.dimension_semantics<parallel>], iteration_bounds = array<i64: 1>, scalar_prefetch = 0 : i64, scratch_operands = 0 : i64, tpu.core_type = #tpu.core_type<tc>, window_params = [{transform_indices = @transform_0, window_bounds = array<i64: 8, 16>}, {pipeline_mode = #tpu.pipeline_mode<synchronous>, transform_indices = @transform_1, window_bounds = array<i64: 16, 128>}, {pipeline_mode = #tpu.pipeline_mode<synchronous>, transform_indices = @transform_2, window_bounds = array<i64: 1, 128>}, {transform_indices = @transform_3, window_bounds = array<i64: 8, 128>}]} {
    %c0 = arith.constant 0 : index
    %c0_0 = arith.constant 0 : index
    %0 = vector.load %arg1[%c0, %c0_0] : memref<8x16xbf16, #tpu.memory_space<vmem>>, vector<8x16xbf16>
    %c0_1 = arith.constant 0 : index
    %c0_2 = arith.constant 0 : index
    %1 = vector.load %arg2[%c0_1, %c0_2] : memref<16x128xbf16, #tpu.memory_space<vmem>>, vector<16x128xbf16>
    %cst = arith.constant dense<0.000000e+00> : vector<8x128xf32>
    %2 = tpu.matmul %0, %1, %cst {dimension_numbers = #tpu.dot_dimension_numbers<[1], [0], [0], [1], [0, 0, 1, 1], [], []>} : vector<8x16xbf16>, vector<16x128xbf16>, vector<8x128xf32> -> vector<8x128xf32>
    %c0_3 = arith.constant 0 : index
    %c0_4 = arith.constant 0 : index
    %3 = vector.load %arg3[%c0_3, %c0_4] : memref<1x128xf32, #tpu.memory_space<vmem>>, vector<1x128xf32>
    %4 = vector.broadcast %3 : vector<1x128xf32> to vector<8x128xf32>
    %5 = arith.addf %2, %4 : vector<8x128xf32>
    %6 = arith.truncf %5 : vector<8x128xf32> to vector<8x128xbf16>
    %c0_5 = arith.constant 0 : index
    %c0_6 = arith.constant 0 : index
    %7 = vector.load %arg4[%c0_5, %c0_6] : memref<8x128xbf16, #tpu.memory_space<vmem>>, vector<8x128xbf16>
    tpu.vector_store %arg4[%c0_5, %c0_6], %6 {strides = array<i32>} : memref<8x128xbf16, #tpu.memory_space<vmem>>, vector<8x128xbf16>,
    return
  }
  func.func @transform_0(%arg0: i32) -> (i32, i32) {
    %c0_i32 = arith.constant 0 : i32
    %c0_i32_0 = arith.constant 0 : i32
    return %arg0, %c0_i32 : i32, i32
  }
  func.func @transform_1(%arg0: i32) -> (i32, i32) {
    %c0_i32 = arith.constant 0 : i32
    %c0_i32_0 = arith.constant 0 : i32
    %c0_i32_1 = arith.constant 0 : i32
    return %c0_i32, %c0_i32_0 : i32, i32
  }
  func.func @transform_2(%arg0: i32) -> (i32, i32) {
    %c0_i32 = arith.constant 0 : i32
    %c0_i32_0 = arith.constant 0 : i32
    %c0_i32_1 = arith.constant 0 : i32
    return %c0_i32, %c0_i32_0 : i32, i32
  }
  func.func @transform_3(%arg0: i32) -> (i32, i32) {
    %c0_i32 = arith.constant 0 : i32
    %c0_i32_0 = arith.constant 0 : i32
    return %arg0, %c0_i32 : i32, i32
  }
}

module attributes {stable_mosaic.version = 11 : i64} {
  func.func @_matmul_bias_res_act_kernel(%arg0: i32, %arg1: memref<8x288xbf16, #tpu.memory_space<vmem>>, %arg2: memref<288x128xbf16, #tpu.memory_space<vmem>>, %arg3: memref<1x128xf32, #tpu.memory_space<vmem>>, %arg4: memref<8x128xbf16, #tpu.memory_space<vmem>>, %arg5: memref<8x128xbf16, #tpu.memory_space<vmem>>) attributes {dimension_semantics = [#tpu.dimension_semantics<parallel>], iteration_bounds = array<i64: 1>, scalar_prefetch = 0 : i64, scratch_operands = 0 : i64, tpu.core_type = #tpu.core_type<tc>, window_params = [{transform_indices = @transform_0, window_bounds = array<i64: 8, 288>}, {pipeline_mode = #tpu.pipeline_mode<synchronous>, transform_indices = @transform_1, window_bounds = array<i64: 288, 128>}, {pipeline_mode = #tpu.pipeline_mode<synchronous>, transform_indices = @transform_2, window_bounds = array<i64: 1, 128>}, {transform_indices = @transform_3, window_bounds = array<i64: 8, 128>}, {transform_indices = @transform_4, window_bounds = array<i64: 8, 128>}]} {
    %c0 = arith.constant 0 : index
    %c0_0 = arith.constant 0 : index
    %0 = vector.load %arg1[%c0, %c0_0] : memref<8x288xbf16, #tpu.memory_space<vmem>>, vector<8x288xbf16>
    %c0_1 = arith.constant 0 : index
    %c0_2 = arith.constant 0 : index
    %1 = vector.load %arg2[%c0_1, %c0_2] : memref<288x128xbf16, #tpu.memory_space<vmem>>, vector<288x128xbf16>
    %cst = arith.constant dense<0.000000e+00> : vector<8x128xf32>
    %2 = tpu.matmul %0, %1, %cst {dimension_numbers = #tpu.dot_dimension_numbers<[1], [0], [0], [1], [0, 0, 1, 1], [], []>} : vector<8x288xbf16>, vector<288x128xbf16>, vector<8x128xf32> -> vector<8x128xf32>
    %c0_3 = arith.constant 0 : index
    %c0_4 = arith.constant 0 : index
    %3 = vector.load %arg3[%c0_3, %c0_4] : memref<1x128xf32, #tpu.memory_space<vmem>>, vector<1x128xf32>
    %4 = vector.broadcast %3 : vector<1x128xf32> to vector<8x128xf32>
    %5 = arith.addf %2, %4 : vector<8x128xf32>
    %c0_5 = arith.constant 0 : index
    %c0_6 = arith.constant 0 : index
    %6 = vector.load %arg4[%c0_5, %c0_6] : memref<8x128xbf16, #tpu.memory_space<vmem>>, vector<8x128xbf16>
    %7 = arith.extf %6 : vector<8x128xbf16> to vector<8x128xf32>
    %8 = arith.addf %5, %7 : vector<8x128xf32>
    %cst_7 = arith.constant 0.000000e+00 : f32
    %9 = vector.broadcast %cst_7 : f32 to vector<8x128xf32>
    %10 = arith.maximumf %8, %9 : vector<8x128xf32>
    %11 = arith.truncf %10 : vector<8x128xf32> to vector<8x128xbf16>
    %c0_8 = arith.constant 0 : index
    %c0_9 = arith.constant 0 : index
    %12 = vector.load %arg5[%c0_8, %c0_9] : memref<8x128xbf16, #tpu.memory_space<vmem>>, vector<8x128xbf16>
    tpu.vector_store %arg5[%c0_8, %c0_9], %11 {strides = array<i32>} : memref<8x128xbf16, #tpu.memory_space<vmem>>, vector<8x128xbf16>,
    return
  }
  func.func @transform_0(%arg0: i32) -> (i32, i32) {
    %c0_i32 = arith.constant 0 : i32
    %c0_i32_0 = arith.constant 0 : i32
    return %arg0, %c0_i32 : i32, i32
  }
  func.func @transform_1(%arg0: i32) -> (i32, i32) {
    %c0_i32 = arith.constant 0 : i32
    %c0_i32_0 = arith.constant 0 : i32
    %c0_i32_1 = arith.constant 0 : i32
    return %c0_i32, %c0_i32_0 : i32, i32
  }
  func.func @transform_2(%arg0: i32) -> (i32, i32) {
    %c0_i32 = arith.constant 0 : i32
    %c0_i32_0 = arith.constant 0 : i32
    %c0_i32_1 = arith.constant 0 : i32
    return %c0_i32, %c0_i32_0 : i32, i32
  }
  func.func @transform_3(%arg0: i32) -> (i32, i32) {
    %c0_i32 = arith.constant 0 : i32
    %c0_i32_0 = arith.constant 0 : i32
    return %arg0, %c0_i32 : i32, i32
  }
  func.func @transform_4(%arg0: i32) -> (i32, i32) {
    %c0_i32 = arith.constant 0 : i32
    %c0_i32_0 = arith.constant 0 : i32
    return %arg0, %c0_i32 : i32, i32
  }
}

module attributes {stable_mosaic.version = 11 : i64} {
  func.func @_matmul_bias_act_kernel(%arg0: i32, %arg1: memref<8x288xbf16, #tpu.memory_space<vmem>>, %arg2: memref<288x128xbf16, #tpu.memory_space<vmem>>, %arg3: memref<1x128xf32, #tpu.memory_space<vmem>>, %arg4: memref<8x128xbf16, #tpu.memory_space<vmem>>) attributes {dimension_semantics = [#tpu.dimension_semantics<parallel>], iteration_bounds = array<i64: 1>, scalar_prefetch = 0 : i64, scratch_operands = 0 : i64, tpu.core_type = #tpu.core_type<tc>, window_params = [{transform_indices = @transform_0, window_bounds = array<i64: 8, 288>}, {pipeline_mode = #tpu.pipeline_mode<synchronous>, transform_indices = @transform_1, window_bounds = array<i64: 288, 128>}, {pipeline_mode = #tpu.pipeline_mode<synchronous>, transform_indices = @transform_2, window_bounds = array<i64: 1, 128>}, {transform_indices = @transform_3, window_bounds = array<i64: 8, 128>}]} {
    %c0 = arith.constant 0 : index
    %c0_0 = arith.constant 0 : index
    %0 = vector.load %arg1[%c0, %c0_0] : memref<8x288xbf16, #tpu.memory_space<vmem>>, vector<8x288xbf16>
    %c0_1 = arith.constant 0 : index
    %c0_2 = arith.constant 0 : index
    %1 = vector.load %arg2[%c0_1, %c0_2] : memref<288x128xbf16, #tpu.memory_space<vmem>>, vector<288x128xbf16>
    %cst = arith.constant dense<0.000000e+00> : vector<8x128xf32>
    %2 = tpu.matmul %0, %1, %cst {dimension_numbers = #tpu.dot_dimension_numbers<[1], [0], [0], [1], [0, 0, 1, 1], [], []>} : vector<8x288xbf16>, vector<288x128xbf16>, vector<8x128xf32> -> vector<8x128xf32>
    %c0_3 = arith.constant 0 : index
    %c0_4 = arith.constant 0 : index
    %3 = vector.load %arg3[%c0_3, %c0_4] : memref<1x128xf32, #tpu.memory_space<vmem>>, vector<1x128xf32>
    %4 = vector.broadcast %3 : vector<1x128xf32> to vector<8x128xf32>
    %5 = arith.addf %2, %4 : vector<8x128xf32>
    %cst_5 = arith.constant 0.000000e+00 : f32
    %6 = vector.broadcast %cst_5 : f32 to vector<8x128xf32>
    %7 = arith.maximumf %5, %6 : vector<8x128xf32>
    %8 = arith.truncf %7 : vector<8x128xf32> to vector<8x128xbf16>
    %c0_6 = arith.constant 0 : index
    %c0_7 = arith.constant 0 : index
    %9 = vector.load %arg4[%c0_6, %c0_7] : memref<8x128xbf16, #tpu.memory_space<vmem>>, vector<8x128xbf16>
    tpu.vector_store %arg4[%c0_6, %c0_7], %8 {strides = array<i32>} : memref<8x128xbf16, #tpu.memory_space<vmem>>, vector<8x128xbf16>,
    return
  }
  func.func @transform_0(%arg0: i32) -> (i32, i32) {
    %c0_i32 = arith.constant 0 : i32
    %c0_i32_0 = arith.constant 0 : i32
    return %arg0, %c0_i32 : i32, i32
  }
  func.func @transform_1(%arg0: i32) -> (i32, i32) {
    %c0_i32 = arith.constant 0 : i32
    %c0_i32_0 = arith.constant 0 : i32
    %c0_i32_1 = arith.constant 0 : i32
    return %c0_i32, %c0_i32_0 : i32, i32
  }
  func.func @transform_2(%arg0: i32) -> (i32, i32) {
    %c0_i32 = arith.constant 0 : i32
    %c0_i32_0 = arith.constant 0 : i32
    %c0_i32_1 = arith.constant 0 : i32
    return %c0_i32, %c0_i32_0 : i32, i32
  }
  func.func @transform_3(%arg0: i32) -> (i32, i32) {
    %c0_i32 = arith.constant 0 : i32
    %c0_i32_0 = arith.constant 0 : i32
    return %arg0, %c0_i32 : i32, i32
  }
}

module attributes {stable_mosaic.version = 11 : i64} {
  func.func @_matmul_bias_res_act_kernel(%arg0: i32, %arg1: memref<8x576xbf16, #tpu.memory_space<vmem>>, %arg2: memref<576x128xbf16, #tpu.memory_space<vmem>>, %arg3: memref<1x128xf32, #tpu.memory_space<vmem>>, %arg4: memref<8x128xbf16, #tpu.memory_space<vmem>>, %arg5: memref<8x128xbf16, #tpu.memory_space<vmem>>) attributes {dimension_semantics = [#tpu.dimension_semantics<parallel>], iteration_bounds = array<i64: 1>, scalar_prefetch = 0 : i64, scratch_operands = 0 : i64, tpu.core_type = #tpu.core_type<tc>, window_params = [{transform_indices = @transform_0, window_bounds = array<i64: 8, 576>}, {pipeline_mode = #tpu.pipeline_mode<synchronous>, transform_indices = @transform_1, window_bounds = array<i64: 576, 128>}, {pipeline_mode = #tpu.pipeline_mode<synchronous>, transform_indices = @transform_2, window_bounds = array<i64: 1, 128>}, {transform_indices = @transform_3, window_bounds = array<i64: 8, 128>}, {transform_indices = @transform_4, window_bounds = array<i64: 8, 128>}]} {
    %c0 = arith.constant 0 : index
    %c0_0 = arith.constant 0 : index
    %0 = vector.load %arg1[%c0, %c0_0] : memref<8x576xbf16, #tpu.memory_space<vmem>>, vector<8x576xbf16>
    %c0_1 = arith.constant 0 : index
    %c0_2 = arith.constant 0 : index
    %1 = vector.load %arg2[%c0_1, %c0_2] : memref<576x128xbf16, #tpu.memory_space<vmem>>, vector<576x128xbf16>
    %cst = arith.constant dense<0.000000e+00> : vector<8x128xf32>
    %2 = tpu.matmul %0, %1, %cst {dimension_numbers = #tpu.dot_dimension_numbers<[1], [0], [0], [1], [0, 0, 1, 1], [], []>} : vector<8x576xbf16>, vector<576x128xbf16>, vector<8x128xf32> -> vector<8x128xf32>
    %c0_3 = arith.constant 0 : index
    %c0_4 = arith.constant 0 : index
    %3 = vector.load %arg3[%c0_3, %c0_4] : memref<1x128xf32, #tpu.memory_space<vmem>>, vector<1x128xf32>
    %4 = vector.broadcast %3 : vector<1x128xf32> to vector<8x128xf32>
    %5 = arith.addf %2, %4 : vector<8x128xf32>
    %c0_5 = arith.constant 0 : index
    %c0_6 = arith.constant 0 : index
    %6 = vector.load %arg4[%c0_5, %c0_6] : memref<8x128xbf16, #tpu.memory_space<vmem>>, vector<8x128xbf16>
    %7 = arith.extf %6 : vector<8x128xbf16> to vector<8x128xf32>
    %8 = arith.addf %5, %7 : vector<8x128xf32>
    %cst_7 = arith.constant 0.000000e+00 : f32
    %9 = vector.broadcast %cst_7 : f32 to vector<8x128xf32>
    %10 = arith.maximumf %8, %9 : vector<8x128xf32>
    %11 = arith.truncf %10 : vector<8x128xf32> to vector<8x128xbf16>
    %c0_8 = arith.constant 0 : index
    %c0_9 = arith.constant 0 : index
    %12 = vector.load %arg5[%c0_8, %c0_9] : memref<8x128xbf16, #tpu.memory_space<vmem>>, vector<8x128xbf16>
    tpu.vector_store %arg5[%c0_8, %c0_9], %11 {strides = array<i32>} : memref<8x128xbf16, #tpu.memory_space<vmem>>, vector<8x128xbf16>,
    return
  }
  func.func @transform_0(%arg0: i32) -> (i32, i32) {
    %c0_i32 = arith.constant 0 : i32
    %c0_i32_0 = arith.constant 0 : i32
    return %arg0, %c0_i32 : i32, i32
  }
  func.func @transform_1(%arg0: i32) -> (i32, i32) {
    %c0_i32 = arith.constant 0 : i32
    %c0_i32_0 = arith.constant 0 : i32
    %c0_i32_1 = arith.constant 0 : i32
    return %c0_i32, %c0_i32_0 : i32, i32
  }
  func.func @transform_2(%arg0: i32) -> (i32, i32) {
    %c0_i32 = arith.constant 0 : i32
    %c0_i32_0 = arith.constant 0 : i32
    %c0_i32_1 = arith.constant 0 : i32
    return %c0_i32, %c0_i32_0 : i32, i32
  }
  func.func @transform_3(%arg0: i32) -> (i32, i32) {
    %c0_i32 = arith.constant 0 : i32
    %c0_i32_0 = arith.constant 0 : i32
    return %arg0, %c0_i32 : i32, i32
  }
  func.func @transform_4(%arg0: i32) -> (i32, i32) {
    %c0_i32 = arith.constant 0 : i32
    %c0_i32_0 = arith.constant 0 : i32
    return %arg0, %c0_i32 : i32, i32
  }
}

module attributes {stable_mosaic.version = 11 : i64} {
  func.func @_matmul_bias_act_kernel(%arg0: i32, %arg1: memref<8x32xbf16, #tpu.memory_space<vmem>>, %arg2: memref<32x128xbf16, #tpu.memory_space<vmem>>, %arg3: memref<1x128xf32, #tpu.memory_space<vmem>>, %arg4: memref<8x128xbf16, #tpu.memory_space<vmem>>) attributes {dimension_semantics = [#tpu.dimension_semantics<parallel>], iteration_bounds = array<i64: 1>, scalar_prefetch = 0 : i64, scratch_operands = 0 : i64, tpu.core_type = #tpu.core_type<tc>, window_params = [{transform_indices = @transform_0, window_bounds = array<i64: 8, 32>}, {pipeline_mode = #tpu.pipeline_mode<synchronous>, transform_indices = @transform_1, window_bounds = array<i64: 32, 128>}, {pipeline_mode = #tpu.pipeline_mode<synchronous>, transform_indices = @transform_2, window_bounds = array<i64: 1, 128>}, {transform_indices = @transform_3, window_bounds = array<i64: 8, 128>}]} {
    %c0 = arith.constant 0 : index
    %c0_0 = arith.constant 0 : index
    %0 = vector.load %arg1[%c0, %c0_0] : memref<8x32xbf16, #tpu.memory_space<vmem>>, vector<8x32xbf16>
    %c0_1 = arith.constant 0 : index
    %c0_2 = arith.constant 0 : index
    %1 = vector.load %arg2[%c0_1, %c0_2] : memref<32x128xbf16, #tpu.memory_space<vmem>>, vector<32x128xbf16>
    %cst = arith.constant dense<0.000000e+00> : vector<8x128xf32>
    %2 = tpu.matmul %0, %1, %cst {dimension_numbers = #tpu.dot_dimension_numbers<[1], [0], [0], [1], [0, 0, 1, 1], [], []>} : vector<8x32xbf16>, vector<32x128xbf16>, vector<8x128xf32> -> vector<8x128xf32>
    %c0_3 = arith.constant 0 : index
    %c0_4 = arith.constant 0 : index
    %3 = vector.load %arg3[%c0_3, %c0_4] : memref<1x128xf32, #tpu.memory_space<vmem>>, vector<1x128xf32>
    %4 = vector.broadcast %3 : vector<1x128xf32> to vector<8x128xf32>
    %5 = arith.addf %2, %4 : vector<8x128xf32>
    %6 = arith.truncf %5 : vector<8x128xf32> to vector<8x128xbf16>
    %c0_5 = arith.constant 0 : index
    %c0_6 = arith.constant 0 : index
    %7 = vector.load %arg4[%c0_5, %c0_6] : memref<8x128xbf16, #tpu.memory_space<vmem>>, vector<8x128xbf16>
    tpu.vector_store %arg4[%c0_5, %c0_6], %6 {strides = array<i32>} : memref<8x128xbf16, #tpu.memory_space<vmem>>, vector<8x128xbf16>,
    return
  }
  func.func @transform_0(%arg0: i32) -> (i32, i32) {
    %c0_i32 = arith.constant 0 : i32
    %c0_i32_0 = arith.constant 0 : i32
    return %arg0, %c0_i32 : i32, i32
  }
  func.func @transform_1(%arg0: i32) -> (i32, i32) {
    %c0_i32 = arith.constant 0 : i32
    %c0_i32_0 = arith.constant 0 : i32
    %c0_i32_1 = arith.constant 0 : i32
    return %c0_i32, %c0_i32_0 : i32, i32
  }
  func.func @transform_2(%arg0: i32) -> (i32, i32) {
    %c0_i32 = arith.constant 0 : i32
    %c0_i32_0 = arith.constant 0 : i32
    %c0_i32_1 = arith.constant 0 : i32
    return %c0_i32, %c0_i32_0 : i32, i32
  }
  func.func @transform_3(%arg0: i32) -> (i32, i32) {
    %c0_i32 = arith.constant 0 : i32
    %c0_i32_0 = arith.constant 0 : i32
    return %arg0, %c0_i32 : i32, i32
  }
}

module attributes {stable_mosaic.version = 11 : i64} {
  func.func @_matmul_bias_act_kernel(%arg0: i32, %arg1: memref<8x576xbf16, #tpu.memory_space<vmem>>, %arg2: memref<576x128xbf16, #tpu.memory_space<vmem>>, %arg3: memref<1x128xf32, #tpu.memory_space<vmem>>, %arg4: memref<8x128xbf16, #tpu.memory_space<vmem>>) attributes {dimension_semantics = [#tpu.dimension_semantics<parallel>], iteration_bounds = array<i64: 1>, scalar_prefetch = 0 : i64, scratch_operands = 0 : i64, tpu.core_type = #tpu.core_type<tc>, window_params = [{transform_indices = @transform_0, window_bounds = array<i64: 8, 576>}, {pipeline_mode = #tpu.pipeline_mode<synchronous>, transform_indices = @transform_1, window_bounds = array<i64: 576, 128>}, {pipeline_mode = #tpu.pipeline_mode<synchronous>, transform_indices = @transform_2, window_bounds = array<i64: 1, 128>}, {transform_indices = @transform_3, window_bounds = array<i64: 8, 128>}]} {
    %c0 = arith.constant 0 : index
    %c0_0 = arith.constant 0 : index
    %0 = vector.load %arg1[%c0, %c0_0] : memref<8x576xbf16, #tpu.memory_space<vmem>>, vector<8x576xbf16>
    %c0_1 = arith.constant 0 : index
    %c0_2 = arith.constant 0 : index
    %1 = vector.load %arg2[%c0_1, %c0_2] : memref<576x128xbf16, #tpu.memory_space<vmem>>, vector<576x128xbf16>
    %cst = arith.constant dense<0.000000e+00> : vector<8x128xf32>
    %2 = tpu.matmul %0, %1, %cst {dimension_numbers = #tpu.dot_dimension_numbers<[1], [0], [0], [1], [0, 0, 1, 1], [], []>} : vector<8x576xbf16>, vector<576x128xbf16>, vector<8x128xf32> -> vector<8x128xf32>
    %c0_3 = arith.constant 0 : index
    %c0_4 = arith.constant 0 : index
    %3 = vector.load %arg3[%c0_3, %c0_4] : memref<1x128xf32, #tpu.memory_space<vmem>>, vector<1x128xf32>
    %4 = vector.broadcast %3 : vector<1x128xf32> to vector<8x128xf32>
    %5 = arith.addf %2, %4 : vector<8x128xf32>
    %cst_5 = arith.constant 0.000000e+00 : f32
    %6 = vector.broadcast %cst_5 : f32 to vector<8x128xf32>
    %7 = arith.maximumf %5, %6 : vector<8x128xf32>
    %8 = arith.truncf %7 : vector<8x128xf32> to vector<8x128xbf16>
    %c0_6 = arith.constant 0 : index
    %c0_7 = arith.constant 0 : index
    %9 = vector.load %arg4[%c0_6, %c0_7] : memref<8x128xbf16, #tpu.memory_space<vmem>>, vector<8x128xbf16>
    tpu.vector_store %arg4[%c0_6, %c0_7], %8 {strides = array<i32>} : memref<8x128xbf16, #tpu.memory_space<vmem>>, vector<8x128xbf16>,
    return
  }
  func.func @transform_0(%arg0: i32) -> (i32, i32) {
    %c0_i32 = arith.constant 0 : i32
    %c0_i32_0 = arith.constant 0 : i32
    return %arg0, %c0_i32 : i32, i32
  }
  func.func @transform_1(%arg0: i32) -> (i32, i32) {
    %c0_i32 = arith.constant 0 : i32
    %c0_i32_0 = arith.constant 0 : i32
    %c0_i32_1 = arith.constant 0 : i32
    return %c0_i32, %c0_i32_0 : i32, i32
  }
  func.func @transform_2(%arg0: i32) -> (i32, i32) {
    %c0_i32 = arith.constant 0 : i32
    %c0_i32_0 = arith.constant 0 : i32
    %c0_i32_1 = arith.constant 0 : i32
    return %c0_i32, %c0_i32_0 : i32, i32
  }
  func.func @transform_3(%arg0: i32) -> (i32, i32) {
    %c0_i32 = arith.constant 0 : i32
    %c0_i32_0 = arith.constant 0 : i32
    return %arg0, %c0_i32 : i32, i32
  }
}

module attributes {stable_mosaic.version = 11 : i64} {
  func.func @_matmul_bias_act_kernel(%arg0: i32, %arg1: memref<8x64xbf16, #tpu.memory_space<vmem>>, %arg2: memref<64x128xbf16, #tpu.memory_space<vmem>>, %arg3: memref<1x128xf32, #tpu.memory_space<vmem>>, %arg4: memref<8x128xbf16, #tpu.memory_space<vmem>>) attributes {dimension_semantics = [#tpu.dimension_semantics<parallel>], iteration_bounds = array<i64: 1>, scalar_prefetch = 0 : i64, scratch_operands = 0 : i64, tpu.core_type = #tpu.core_type<tc>, window_params = [{transform_indices = @transform_0, window_bounds = array<i64: 8, 64>}, {pipeline_mode = #tpu.pipeline_mode<synchronous>, transform_indices = @transform_1, window_bounds = array<i64: 64, 128>}, {pipeline_mode = #tpu.pipeline_mode<synchronous>, transform_indices = @transform_2, window_bounds = array<i64: 1, 128>}, {transform_indices = @transform_3, window_bounds = array<i64: 8, 128>}]} {
    %c0 = arith.constant 0 : index
    %c0_0 = arith.constant 0 : index
    %0 = vector.load %arg1[%c0, %c0_0] : memref<8x64xbf16, #tpu.memory_space<vmem>>, vector<8x64xbf16>
    %c0_1 = arith.constant 0 : index
    %c0_2 = arith.constant 0 : index
    %1 = vector.load %arg2[%c0_1, %c0_2] : memref<64x128xbf16, #tpu.memory_space<vmem>>, vector<64x128xbf16>
    %cst = arith.constant dense<0.000000e+00> : vector<8x128xf32>
    %2 = tpu.matmul %0, %1, %cst {dimension_numbers = #tpu.dot_dimension_numbers<[1], [0], [0], [1], [0, 0, 1, 1], [], []>} : vector<8x64xbf16>, vector<64x128xbf16>, vector<8x128xf32> -> vector<8x128xf32>
    %c0_3 = arith.constant 0 : index
    %c0_4 = arith.constant 0 : index
    %3 = vector.load %arg3[%c0_3, %c0_4] : memref<1x128xf32, #tpu.memory_space<vmem>>, vector<1x128xf32>
    %4 = vector.broadcast %3 : vector<1x128xf32> to vector<8x128xf32>
    %5 = arith.addf %2, %4 : vector<8x128xf32>
    %6 = arith.truncf %5 : vector<8x128xf32> to vector<8x128xbf16>
    %c0_5 = arith.constant 0 : index
    %c0_6 = arith.constant 0 : index
    %7 = vector.load %arg4[%c0_5, %c0_6] : memref<8x128xbf16, #tpu.memory_space<vmem>>, vector<8x128xbf16>
    tpu.vector_store %arg4[%c0_5, %c0_6], %6 {strides = array<i32>} : memref<8x128xbf16, #tpu.memory_space<vmem>>, vector<8x128xbf16>,
    return
  }
  func.func @transform_0(%arg0: i32) -> (i32, i32) {
    %c0_i32 = arith.constant 0 : i32
    %c0_i32_0 = arith.constant 0 : i32
    return %arg0, %c0_i32 : i32, i32
  }
  func.func @transform_1(%arg0: i32) -> (i32, i32) {
    %c0_i32 = arith.constant 0 : i32
    %c0_i32_0 = arith.constant 0 : i32
    %c0_i32_1 = arith.constant 0 : i32
    return %c0_i32, %c0_i32_0 : i32, i32
  }
  func.func @transform_2(%arg0: i32) -> (i32, i32) {
    %c0_i32 = arith.constant 0 : i32
    %c0_i32_0 = arith.constant 0 : i32
    %c0_i32_1 = arith.constant 0 : i32
    return %c0_i32, %c0_i32_0 : i32, i32
  }
  func.func @transform_3(%arg0: i32) -> (i32, i32) {
    %c0_i32 = arith.constant 0 : i32
    %c0_i32_0 = arith.constant 0 : i32
    return %arg0, %c0_i32 : i32, i32
  }
}

module attributes {stable_mosaic.version = 11 : i64} {
  func.func @_matmul_bias_res_act_kernel(%arg0: i32, %arg1: memref<8x1152xbf16, #tpu.memory_space<vmem>>, %arg2: memref<1152x128xbf16, #tpu.memory_space<vmem>>, %arg3: memref<1x128xf32, #tpu.memory_space<vmem>>, %arg4: memref<8x128xbf16, #tpu.memory_space<vmem>>, %arg5: memref<8x128xbf16, #tpu.memory_space<vmem>>) attributes {dimension_semantics = [#tpu.dimension_semantics<parallel>], iteration_bounds = array<i64: 1>, scalar_prefetch = 0 : i64, scratch_operands = 0 : i64, tpu.core_type = #tpu.core_type<tc>, window_params = [{transform_indices = @transform_0, window_bounds = array<i64: 8, 1152>}, {pipeline_mode = #tpu.pipeline_mode<synchronous>, transform_indices = @transform_1, window_bounds = array<i64: 1152, 128>}, {pipeline_mode = #tpu.pipeline_mode<synchronous>, transform_indices = @transform_2, window_bounds = array<i64: 1, 128>}, {transform_indices = @transform_3, window_bounds = array<i64: 8, 128>}, {transform_indices = @transform_4, window_bounds = array<i64: 8, 128>}]} {
    %c0 = arith.constant 0 : index
    %c0_0 = arith.constant 0 : index
    %0 = vector.load %arg1[%c0, %c0_0] : memref<8x1152xbf16, #tpu.memory_space<vmem>>, vector<8x1152xbf16>
    %c0_1 = arith.constant 0 : index
    %c0_2 = arith.constant 0 : index
    %1 = vector.load %arg2[%c0_1, %c0_2] : memref<1152x128xbf16, #tpu.memory_space<vmem>>, vector<1152x128xbf16>
    %cst = arith.constant dense<0.000000e+00> : vector<8x128xf32>
    %2 = tpu.matmul %0, %1, %cst {dimension_numbers = #tpu.dot_dimension_numbers<[1], [0], [0], [1], [0, 0, 1, 1], [], []>} : vector<8x1152xbf16>, vector<1152x128xbf16>, vector<8x128xf32> -> vector<8x128xf32>
    %c0_3 = arith.constant 0 : index
    %c0_4 = arith.constant 0 : index
    %3 = vector.load %arg3[%c0_3, %c0_4] : memref<1x128xf32, #tpu.memory_space<vmem>>, vector<1x128xf32>
    %4 = vector.broadcast %3 : vector<1x128xf32> to vector<8x128xf32>
    %5 = arith.addf %2, %4 : vector<8x128xf32>
    %c0_5 = arith.constant 0 : index
    %c0_6 = arith.constant 0 : index
    %6 = vector.load %arg4[%c0_5, %c0_6] : memref<8x128xbf16, #tpu.memory_space<vmem>>, vector<8x128xbf16>
    %7 = arith.extf %6 : vector<8x128xbf16> to vector<8x128xf32>
    %8 = arith.addf %5, %7 : vector<8x128xf32>
    %cst_7 = arith.constant 0.000000e+00 : f32
    %9 = vector.broadcast %cst_7 : f32 to vector<8x128xf32>
    %10 = arith.maximumf %8, %9 : vector<8x128xf32>
    %11 = arith.truncf %10 : vector<8x128xf32> to vector<8x128xbf16>
    %c0_8 = arith.constant 0 : index
    %c0_9 = arith.constant 0 : index
    %12 = vector.load %arg5[%c0_8, %c0_9] : memref<8x128xbf16, #tpu.memory_space<vmem>>, vector<8x128xbf16>
    tpu.vector_store %arg5[%c0_8, %c0_9], %11 {strides = array<i32>} : memref<8x128xbf16, #tpu.memory_space<vmem>>, vector<8x128xbf16>,
    return
  }
  func.func @transform_0(%arg0: i32) -> (i32, i32) {
    %c0_i32 = arith.constant 0 : i32
    %c0_i32_0 = arith.constant 0 : i32
    return %arg0, %c0_i32 : i32, i32
  }
  func.func @transform_1(%arg0: i32) -> (i32, i32) {
    %c0_i32 = arith.constant 0 : i32
    %c0_i32_0 = arith.constant 0 : i32
    %c0_i32_1 = arith.constant 0 : i32
    return %c0_i32, %c0_i32_0 : i32, i32
  }
  func.func @transform_2(%arg0: i32) -> (i32, i32) {
    %c0_i32 = arith.constant 0 : i32
    %c0_i32_0 = arith.constant 0 : i32
    %c0_i32_1 = arith.constant 0 : i32
    return %c0_i32, %c0_i32_0 : i32, i32
  }
  func.func @transform_3(%arg0: i32) -> (i32, i32) {
    %c0_i32 = arith.constant 0 : i32
    %c0_i32_0 = arith.constant 0 : i32
    return %arg0, %c0_i32 : i32, i32
  }
  func.func @transform_4(%arg0: i32) -> (i32, i32) {
    %c0_i32 = arith.constant 0 : i32
    %c0_i32_0 = arith.constant 0 : i32
    return %arg0, %c0_i32 : i32, i32
  }
}

module attributes {stable_mosaic.version = 11 : i64} {
  func.func @_head_kernel(%arg0: i32, %arg1: memref<1x8x128xbf16, #tpu.memory_space<vmem>>, %arg2: memref<128x128xf32, #tpu.memory_space<vmem>>, %arg3: memref<1x128xf32, #tpu.memory_space<vmem>>, %arg4: memref<8x128xf32, #tpu.memory_space<vmem>>, %arg5: memref<8x128xf32, #tpu.memory_space<vmem>>) attributes {dimension_semantics = [#tpu.dimension_semantics<arbitrary>], iteration_bounds = array<i64: 1>, scalar_prefetch = 0 : i64, scratch_operands = 0 : i64, tpu.core_type = #tpu.core_type<tc>, window_params = [{pipeline_mode = #tpu.pipeline_mode<synchronous>, transform_indices = @transform_0, window_bounds = array<i64: 1, 8, 128>}, {pipeline_mode = #tpu.pipeline_mode<synchronous>, transform_indices = @transform_1, window_bounds = array<i64: 128, 128>}, {pipeline_mode = #tpu.pipeline_mode<synchronous>, transform_indices = @transform_2, window_bounds = array<i64: 1, 128>}, {pipeline_mode = #tpu.pipeline_mode<synchronous>, transform_indices = @transform_3, window_bounds = array<i64: 8, 128>}, {pipeline_mode = #tpu.pipeline_mode<synchronous>, transform_indices = @transform_4, window_bounds = array<i64: 8, 128>}]} {
    %c0 = arith.constant 0 : index
    %c0_0 = arith.constant 0 : index
    %c0_1 = arith.constant 0 : index
    %0 = vector.load %arg1[%c0, %c0_0, %c0_1] : memref<1x8x128xbf16, #tpu.memory_space<vmem>>, vector<1x8x128xbf16>
    %1 = arith.extf %0 : vector<1x8x128xbf16> to vector<1x8x128xf32>
    %cst = arith.constant dense<0.000000e+00> : vector<8x128xf32>
    %2 = vector.multi_reduction <add>, %1, %cst [0] : vector<1x8x128xf32> to vector<8x128xf32>
    %cst_2 = arith.constant 1.000000e+00 : f32
    %3 = vector.broadcast %cst_2 : f32 to vector<8x128xf32>
    %4 = arith.divf %2, %3 : vector<8x128xf32>
    %c0_3 = arith.constant 0 : index
    %c0_4 = arith.constant 0 : index
    %5 = vector.load %arg4[%c0_3, %c0_4] : memref<8x128xf32, #tpu.memory_space<vmem>>, vector<8x128xf32>
    tpu.vector_store %arg4[%c0_3, %c0_4], %4 {strides = array<i32>} : memref<8x128xf32, #tpu.memory_space<vmem>>, vector<8x128xf32>,
    %c0_5 = arith.constant 0 : index
    %c0_6 = arith.constant 0 : index
    %6 = vector.load %arg2[%c0_5, %c0_6] : memref<128x128xf32, #tpu.memory_space<vmem>>, vector<128x128xf32>
    %cst_7 = arith.constant dense<0.000000e+00> : vector<8x128xf32>
    %7 = tpu.matmul %4, %6, %cst_7 {dimension_numbers = #tpu.dot_dimension_numbers<[1], [0], [0], [1], [0, 0, 1, 1], [], []>} : vector<8x128xf32>, vector<128x128xf32>, vector<8x128xf32> -> vector<8x128xf32>
    %c0_8 = arith.constant 0 : index
    %c0_9 = arith.constant 0 : index
    %8 = vector.load %arg3[%c0_8, %c0_9] : memref<1x128xf32, #tpu.memory_space<vmem>>, vector<1x128xf32>
    %9 = vector.broadcast %8 : vector<1x128xf32> to vector<8x128xf32>
    %10 = arith.addf %7, %9 : vector<8x128xf32>
    %cst_10 = arith.constant 0.000000e+00 : f32
    %11 = vector.broadcast %cst_10 : f32 to vector<8x128xf32>
    %12 = arith.subf %11, %10 : vector<8x128xf32>
    %13 = math.exp %12 : vector<8x128xf32>
    %cst_11 = arith.constant 1.000000e+00 : f32
    %14 = vector.broadcast %cst_11 : f32 to vector<8x128xf32>
    %15 = arith.addf %14, %13 : vector<8x128xf32>
    %cst_12 = arith.constant 1.000000e+00 : f32
    %16 = vector.broadcast %cst_12 : f32 to vector<8x128xf32>
    %17 = arith.divf %16, %15 : vector<8x128xf32>
    %c0_13 = arith.constant 0 : index
    %c0_14 = arith.constant 0 : index
    %18 = vector.load %arg5[%c0_13, %c0_14] : memref<8x128xf32, #tpu.memory_space<vmem>>, vector<8x128xf32>
    tpu.vector_store %arg5[%c0_13, %c0_14], %17 {strides = array<i32>} : memref<8x128xf32, #tpu.memory_space<vmem>>, vector<8x128xf32>,
    return
  }
  func.func @transform_0(%arg0: i32) -> (i32, i32, i32) {
    %c0_i32 = arith.constant 0 : i32
    %c0_i32_0 = arith.constant 0 : i32
    %c0_i32_1 = arith.constant 0 : i32
    %c0_i32_2 = arith.constant 0 : i32
    return %c0_i32, %c0_i32_0, %c0_i32_1 : i32, i32, i32
  }
  func.func @transform_1(%arg0: i32) -> (i32, i32) {
    %c0_i32 = arith.constant 0 : i32
    %c0_i32_0 = arith.constant 0 : i32
    %c0_i32_1 = arith.constant 0 : i32
    return %c0_i32, %c0_i32_0 : i32, i32
  }
  func.func @transform_2(%arg0: i32) -> (i32, i32) {
    %c0_i32 = arith.constant 0 : i32
    %c0_i32_0 = arith.constant 0 : i32
    %c0_i32_1 = arith.constant 0 : i32
    return %c0_i32, %c0_i32_0 : i32, i32
  }
  func.func @transform_3(%arg0: i32) -> (i32, i32) {
    %c0_i32 = arith.constant 0 : i32
    %c0_i32_0 = arith.constant 0 : i32
    %c0_i32_1 = arith.constant 0 : i32
    return %c0_i32, %c0_i32_0 : i32, i32
  }
  func.func @transform_4(%arg0: i32) -> (i32, i32) {
    %c0_i32 = arith.constant 0 : i32
    %c0_i32_0 = arith.constant 0 : i32
    %c0_i32_1 = arith.constant 0 : i32
    return %c0_i32, %c0_i32_0 : i32, i32
  }
}

</mosaic_0001>

<llo_original>
// kernel: resnet_forward.15
$region0: #{resnet_forward.15}
  #allocation0 [shape = 'u32[]', space=smem, size = 0x4, offset = 0x4, fixed_abs, tag = 'smem constant byte address 0x4 - core index']
  #allocation1 [shape = 'u32[144,128]{1,0:T(1,128)}', space=vmem, size = 0x12000, scoped, tag = 'internal scratch']
  %s0 = inlined_call_operand.vmem [shape: f32[8,768], index: 0, kind: input, shape index: {}]
  %s1 = inlined_call_operand.vmem [shape: f32[1,768], index: 1, kind: input, shape index: {}]
  %s2 = inlined_call_operand.vmem [shape: f32[1,768], index: 2, kind: input, shape index: {}]
  %s3 = inlined_call_operand.vmem [shape: bf16[8,768], index: 3, kind: output, shape index: {}]
  %s4 = sld [smem:[#allocation0]]
  $region22: #{resnet_forward.15} parent=0
    _
  %s6 = ssub.s32 1, %s4
  %s7 = scalar_select 0, %s6, %s4
  // Predicated region
  $region2: #{resnet_forward.15} parent=0 // pred_check
    _
  $region3: #{resnet_forward.15} parent=0 // pred_check_branch
    %9 = sbr.rel (0) target = $region5
  $region4: #{resnet_forward.15} parent=0 // pred_region
    _
  $region5: #{resnet_forward.15} parent=0 // pred_fallthru
    _
  // Predicated region
  $region6: #{resnet_forward.15} parent=0 // pred_check
    _
  $region7: #{resnet_forward.15} parent=0 // pred_check_branch
    %11 = sbr.rel (0) target = $region9
  $region8: #{resnet_forward.15} parent=0 // pred_region
    _
  $region9: #{resnet_forward.15} parent=0 // pred_fallthru
    _
  // Predicated region
  $region10: #{resnet_forward.15} parent=0 // pred_check
    _
  $region11: #{resnet_forward.15} parent=0 // pred_check_branch
    %13 = sbr.rel (0) target = $region13
  $region12: #{resnet_forward.15} parent=0 // pred_region
    _
  $region13: #{resnet_forward.15} parent=0 // pred_fallthru
    _
  %v14 = vld [vmem:[%s0] sm:$0xff]
  %v15 = vld [vmem:[%s0 + $0x8] sm:$0xff]
  %v16 = vld [vmem:[%s0 + $0x10] sm:$0xff]
  %v17 = vld [vmem:[%s0 + $0x18] sm:$0xff]
  %v18 = vld [vmem:[%s0 + $0x20] sm:$0xff]
  %v19 = vld [vmem:[%s0 + $0x28] sm:$0xff]
  %v20 = vadd.f32 %v14, %v15
  %v21 = vadd.f32 %v20, %v16
  %v22 = vadd.f32 %v21, %v17
  %v23 = vadd.f32 %v22, %v18
  %v24 = vadd.f32 %v23, %v19
  %25 = vadd.xlane.f32.xlu0 %v24
  %v26 = vpop.xlane.xlu0 %25
  %v27 = vrcp.pop 768.0
  %v28 = vmul.f32 %v26, %v27
  %v29 = vsub.f32 %v14, %v28
  %v30 = vsub.f32 %v15, %v28
  %v31 = vsub.f32 %v16, %v28
  %v32 = vsub.f32 %v17, %v28
  %v33 = vsub.f32 %v18, %v28
  %v34 = vsub.f32 %v19, %v28
  %v35 = vmul.f32 %v29, %v29
  %v36 = vmul.f32 %v30, %v30
  %v37 = vmul.f32 %v31, %v31
  %v38 = vmul.f32 %v32, %v32
  %v39 = vmul.f32 %v33, %v33
  %v40 = vmul.f32 %v34, %v34
  %v41 = vadd.f32 %v35, %v36
  %v42 = vadd.f32 %v41, %v37
  %v43 = vadd.f32 %v42, %v38
  %v44 = vadd.f32 %v43, %v39
  %v45 = vadd.f32 %v44, %v40
  %46 = vadd.xlane.f32.xlu0 %v45
  %v47 = vpop.xlane.xlu0 %46
  %v48 = vmul.f32 %v47, %v27
  %v49 = vadd.f32 %v48, 1e-05
  %v50 = vrsqrt.pop %v49
  %v51 = vmul.f32 %v29, %v50
  %v52 = vmul.f32 %v30, %v50
  %v53 = vmul.f32 %v31, %v50
  %v54 = vmul.f32 %v32, %v50
  %v55 = vmul.f32 %v33, %v50
  %v56 = vmul.f32 %v34, %v50
  %v57 = vld [vmem:[%s1] sm:$0x3f]
  %v59 = vlaneseq
  %v60 = vshrl.u32 %v59, 7
  %v61 = vsub.s32 0, %v60
  %v62 = vrot.slane %v57, %v61
  %v63 = vlaneseq
  %v64 = vshrl.u32 %v63, 7
  %v65 = vsub.s32 1, %v64
  %v66 = vrot.slane %v57, %v65
  %v67 = vlaneseq
  %v68 = vshrl.u32 %v67, 7
  %v69 = vsub.s32 2, %v68
  %v70 = vrot.slane %v57, %v69
  %v71 = vlaneseq
  %v72 = vshrl.u32 %v71, 7
  %v73 = vsub.s32 3, %v72
  %v74 = vrot.slane %v57, %v73
  %v75 = vlaneseq
  %v76 = vshrl.u32 %v75, 7
  %v77 = vsub.s32 4, %v76
  %v78 = vrot.slane %v57, %v77
  %v79 = vlaneseq
  %v80 = vshrl.u32 %v79, 7
  %v81 = vsub.s32 5, %v80
  %v82 = vrot.slane %v57, %v81
  %v89 = vmul.f32 %v51, %v62
  %v90 = vmul.f32 %v52, %v66
  %v91 = vmul.f32 %v53, %v70
  %v92 = vmul.f32 %v54, %v74
  %v93 = vmul.f32 %v55, %v78
  %v94 = vmul.f32 %v56, %v82
  %v95 = vld [vmem:[%s2] sm:$0x3f]
  %v97 = vlaneseq
  %v98 = vshrl.u32 %v97, 7
  %v99 = vsub.s32 0, %v98
  %v100 = vrot.slane %v95, %v99
  %v101 = vlaneseq
  %v102 = vshrl.u32 %v101, 7
  %v103 = vsub.s32 1, %v102
  %v104 = vrot.slane %v95, %v103
  %v105 = vlaneseq
  %v106 = vshrl.u32 %v105, 7
  %v107 = vsub.s32 2, %v106
  %v108 = vrot.slane %v95, %v107
  %v109 = vlaneseq
  %v110 = vshrl.u32 %v109, 7
  %v111 = vsub.s32 3, %v110
  %v112 = vrot.slane %v95, %v111
  %v113 = vlaneseq
  %v114 = vshrl.u32 %v113, 7
  %v115 = vsub.s32 4, %v114
  %v116 = vrot.slane %v95, %v115
  %v117 = vlaneseq
  %v118 = vshrl.u32 %v117, 7
  %v119 = vsub.s32 5, %v118
  %v120 = vrot.slane %v95, %v119
  %v127 = vadd.f32 %v89, %v100
  %v128 = vadd.f32 %v90, %v104
  %v129 = vadd.f32 %v91, %v108
  %v130 = vadd.f32 %v92, %v112
  %v131 = vadd.f32 %v93, %v116
  %v132 = vadd.f32 %v94, %v120
  %v133 = vpack.c.bf16 %v127, %v127
  %v134 = vpack.c.bf16 %v128, %v128
  %v135 = vpack.c.bf16 %v129, %v129
  %v136 = vpack.c.bf16 %v130, %v130
  %v137 = vpack.c.bf16 %v131, %v131
  %v138 = vpack.c.bf16 %v132, %v132
  %v145 = vunpack.c.l.b16 %v133
  %v146 = vunpack.c.l.b16 %v134
  %v147 = vunpack.c.l.b16 %v135
  %v148 = vunpack.c.l.b16 %v136
  %v149 = vunpack.c.l.b16 %v137
  %v150 = vunpack.c.l.b16 %v138
  %v151 = vpack.c.b16 %v146, %v145
  %v152 = vpack.c.b16 %v148, %v147
  %v153 = vpack.c.b16 %v150, %v149
  %157 = vst [vmem:[%s3] sm:$0xff] %v151
  %158 = vst [vmem:[%s3 + $0x8] sm:$0xff] %v152
  %159 = vst [vmem:[%s3 + $0x10] sm:$0xff] %v153
  // Predicated region
  $region14: #{resnet_forward.15} parent=0 // pred_check
    _
  $region15: #{resnet_forward.15} parent=0 // pred_check_branch
    %161 = sbr.rel (0) target = $region17
  $region16: #{resnet_forward.15} parent=0 // pred_region
    _
  $region17: #{resnet_forward.15} parent=0 // pred_fallthru
    _
  // Predicated region
  $region18: #{resnet_forward.15} parent=0 // pred_check
    _
  $region19: #{resnet_forward.15} parent=0 // pred_check_branch
    %163 = sbr.rel (0) target = $region21
  $region20: #{resnet_forward.15} parent=0 // pred_region
    _
  $region21: #{resnet_forward.15} parent=0 // pred_fallthru
    _

// kernel: resnet_forward.16
$region0: #{resnet_forward.16}
  #allocation0 [shape = 'u32[]', space=smem, size = 0x4, offset = 0x4, fixed_abs, tag = 'smem constant byte address 0x4 - core index']
  #allocation1 [shape = 'u32[144,128]{1,0:T(1,128)}', space=vmem, size = 0x12000, scoped, tag = 'internal scratch']
  %s0 = inlined_call_operand.vmem [shape: bf16[128,147], index: 0, kind: input, shape index: {}]
  %s1 = inlined_call_operand.vmem [shape: bf16[147,128], index: 1, kind: input, shape index: {}]
  %s2 = inlined_call_operand.vmem [shape: f32[1,128], index: 2, kind: input, shape index: {}]
  %s3 = inlined_call_operand.vmem [shape: bf16[128,128], index: 3, kind: output, shape index: {}]
  %s4 = sld [smem:[#allocation0]]
  $region22: #{resnet_forward.16} parent=0
    _
  %s6 = ssub.s32 1, %s4
  %s7 = scalar_select 0, %s6, %s4
  // Predicated region
  $region2: #{resnet_forward.16} parent=0 // pred_check
    _
  $region3: #{resnet_forward.16} parent=0 // pred_check_branch
    %9 = sbr.rel (0) target = $region5
  $region4: #{resnet_forward.16} parent=0 // pred_region
    _
  $region5: #{resnet_forward.16} parent=0 // pred_fallthru
    _
  // Predicated region
  $region6: #{resnet_forward.16} parent=0 // pred_check
    _
  $region7: #{resnet_forward.16} parent=0 // pred_check_branch
    %11 = sbr.rel (0) target = $region9
  $region8: #{resnet_forward.16} parent=0 // pred_region
    _
  $region9: #{resnet_forward.16} parent=0 // pred_fallthru
    _
  // Predicated region
  $region10: #{resnet_forward.16} parent=0 // pred_check
    _
  $region11: #{resnet_forward.16} parent=0 // pred_check_branch
    %13 = sbr.rel (0) target = $region13
  $region12: #{resnet_forward.16} parent=0 // pred_region
    _
  $region13: #{resnet_forward.16} parent=0 // pred_fallthru
    _
  %v15 = vld [vmem:[%s0] sm:$0xff]
  %v16 = vld [vmem:[%s0 + $0x8] sm:$0xff]
  %v17 = vld [vmem:[%s0 + $0x10] sm:$0xff]
  %v18 = vld [vmem:[%s0 + $0x18] sm:$0xff]
  %v19 = vld [vmem:[%s0 + $0x20] sm:$0xff]
  %v20 = vld [vmem:[%s0 + $0x28] sm:$0xff]
  %v21 = vld [vmem:[%s0 + $0x30] sm:$0xff]
  %v22 = vld [vmem:[%s0 + $0x38] sm:$0xff]
  %v23 = vld [vmem:[%s0 + $0x40] sm:$0xff]
  %v24 = vld [vmem:[%s0 + $0x48] sm:$0xff]
  %v25 = vld [vmem:[%s0 + $0x50] sm:$0xff]
  %v26 = vld [vmem:[%s0 + $0x58] sm:$0xff]
  %v27 = vld [vmem:[%s0 + $0x60] sm:$0xff]
  %v28 = vld [vmem:[%s0 + $0x68] sm:$0xff]
  %v29 = vld [vmem:[%s0 + $0x70] sm:$0xff]
  %v30 = vld [vmem:[%s0 + $0x78] sm:$0xff]
  %v31 = vld [vmem:[%s1] sm:$0xf]
  %v32 = vld [vmem:[%s1 + $0x4] sm:$0xf]
  %v33 = vld [vmem:[%s1 + $0x8] sm:$0xf]
  %v34 = vld [vmem:[%s1 + $0xc] sm:$0xf]
  %v35 = vld [vmem:[%s1 + $0x10] sm:$0xf]
  %v36 = vld [vmem:[%s1 + $0x14] sm:$0xf]
  %v37 = vld [vmem:[%s1 + $0x18] sm:$0xf]
  %v38 = vld [vmem:[%s1 + $0x1c] sm:$0xf]
  %v39 = vld [vmem:[%s1 + $0x20] sm:$0xf]
  %v40 = vld [vmem:[%s1 + $0x24] sm:$0xf]
  %v41 = vld [vmem:[%s1 + $0x28] sm:$0xf]
  %v42 = vld [vmem:[%s1 + $0x2c] sm:$0xf]
  %v43 = vld [vmem:[%s1 + $0x30] sm:$0xf]
  %v44 = vld [vmem:[%s1 + $0x34] sm:$0xf]
  %v45 = vld [vmem:[%s1 + $0x38] sm:$0xf]
  %v46 = vld [vmem:[%s1 + $0x3c] sm:$0xf]
  %v47 = vld [vmem:[%s1 + $0x40] sm:$0xf]
  %v48 = vld [vmem:[%s1 + $0x44] sm:$0xf]
  %v49 = vld [vmem:[%s1 + $0x48] sm:$0x3]
  %v50 = vld [vmem:[%s2] sm:$0x1]
  %v52 = vlaneseq
  %v53 = vshrl.u32 %v52, 7
  %v54 = vsub.s32 0, %v53
  %v55 = vrot.slane %v50, %v54
  %v73 = vunpack.c.l.b16 %v15
  %v74 = vunpack.c.h.b16 %v15
  %v75 = vunpack.c.l.b16 %v16
  %v76 = vunpack.c.h.b16 %v16
  %v77 = vunpack.c.l.b16 %v17
  %v78 = vunpack.c.h.b16 %v17
  %v79 = vunpack.c.l.b16 %v18
  %v80 = vunpack.c.h.b16 %v18
  %v81 = vunpack.c.l.b16 %v19
  %v82 = vunpack.c.h.b16 %v19
  %v83 = vunpack.c.l.b16 %v20
  %v84 = vunpack.c.h.b16 %v20
  %v85 = vunpack.c.l.b16 %v21
  %v86 = vunpack.c.h.b16 %v21
  %v87 = vunpack.c.l.b16 %v22
  %v88 = vunpack.c.h.b16 %v22
  %v89 = vunpack.c.l.b16 %v23
  %v90 = vunpack.c.h.b16 %v23
  %v91 = vunpack.c.l.b16 %v24
  %v92 = vunpack.c.h.b16 %v24
  %v93 = vunpack.c.l.b16 %v25
  %v94 = vunpack.c.h.b16 %v25
  %v95 = vunpack.c.l.b16 %v26
  %v96 = vunpack.c.h.b16 %v26
  %v97 = vunpack.c.l.b16 %v27
  %v98 = vunpack.c.h.b16 %v27
  %v99 = vunpack.c.l.b16 %v28
  %v100 = vunpack.c.h.b16 %v28
  %v101 = vunpack.c.l.b16 %v29
  %v102 = vunpack.c.h.b16 %v29
  %v103 = vunpack.c.l.b16 %v30
  %v104 = vunpack.c.h.b16 %v30
  %v105 = vpack.c.b16 %v75, %v73
  %v106 = vpack.c.b16 %v76, %v74
  %v107 = vpack.c.b16 %v79, %v77
  %v108 = vpack.c.b16 %v80, %v78
  %v109 = vpack.c.b16 %v83, %v81
  %v110 = vpack.c.b16 %v84, %v82
  %v111 = vpack.c.b16 %v87, %v85
  %v112 = vpack.c.b16 %v88, %v86
  %v113 = vpack.c.b16 %v91, %v89
  %v114 = vpack.c.b16 %v92, %v90
  %v115 = vpack.c.b16 %v95, %v93
  %v116 = vpack.c.b16 %v96, %v94
  %v117 = vpack.c.b16 %v99, %v97
  %v118 = vpack.c.b16 %v100, %v98
  %v119 = vpack.c.b16 %v103, %v101
  %v120 = vpack.c.b16 %v104, %v102
  %v148 = vunpack.c.l.b16 %v31
  %v149 = vunpack.c.l.b16 %v32
  %v150 = vunpack.c.l.b16 %v33
  %v151 = vunpack.c.l.b16 %v34
  %v152 = vunpack.c.l.b16 %v35
  %v153 = vunpack.c.l.b16 %v36
  %v154 = vunpack.c.l.b16 %v37
  %v155 = vunpack.c.l.b16 %v38
  %v156 = vunpack.c.l.b16 %v39
  %v157 = vunpack.c.l.b16 %v40
  %v158 = vunpack.c.l.b16 %v41
  %v159 = vunpack.c.l.b16 %v42
  %v160 = vunpack.c.l.b16 %v43
  %v161 = vunpack.c.l.b16 %v44
  %v162 = vunpack.c.l.b16 %v45
  %v163 = vunpack.c.l.b16 %v46
  %v164 = vunpack.c.l.b16 %v47
  %v165 = vunpack.c.l.b16 %v48
  %v166 = vunpack.c.l.b16 %v49
  %v167 = vpack.c.b16 %v149, %v148
  %v168 = vpack.c.b16 %v151, %v150
  %v169 = vpack.c.b16 %v153, %v152
  %v170 = vpack.c.b16 %v155, %v154
  %v171 = vpack.c.b16 %v157, %v156
  %v172 = vpack.c.b16 %v159, %v158
  %v173 = vpack.c.b16 %v161, %v160
  %v174 = vpack.c.b16 %v163, %v162
  %v175 = vpack.c.b16 %v165, %v164
  %v176 = vpack.c.b16 %v166, %v166
  %vm186 = vcmask 154624
  %v188 = vsel %vm186, %v106, 0
  %v191 = vsel %vm186, %v108, 0
  %v194 = vsel %vm186, %v110, 0
  %v197 = vsel %vm186, %v112, 0
  %v200 = vsel %vm186, %v114, 0
  %v203 = vsel %vm186, %v116, 0
  %v206 = vsel %vm186, %v118, 0
  %v209 = vsel %vm186, %v120, 0
  %vm211 = vcmask 1040384
  %vm212 = vcmask 1041408
  %v213 = vsel %vm211, 4294967295, 65535
  %v214 = vsel %vm212, %v213, 0
  %v216 = vand.u32 %v176, %v214
  %218 = vmatprep.subr.bf16.mxu0 0
  %219 = vmatpush1.bf16.msra.mxu0 %v174
  %220 = vmatprep.subr.bf16.mxu0 0
  %221 = vmatpush1.bf16.msra.mxu0 %v173
  %222 = vmatprep.subr.bf16.mxu0 0
  %223 = vmatpush1.bf16.msra.mxu0 %v172
  %224 = vmatprep.subr.bf16.mxu0 0
  %225 = vmatpush1.bf16.msra.mxu0 %v171
  %226 = vmatprep.subr.bf16.mxu0 0
  %227 = vmatpush1.bf16.msra.mxu0 %v170
  %228 = vmatprep.subr.bf16.mxu0 0
  %229 = vmatpush1.bf16.msra.mxu0 %v169
  %230 = vmatprep.subr.bf16.mxu0 0
  %231 = vmatpush1.bf16.msra.mxu0 %v168
  %232 = vmatprep.subr.bf16.mxu0 0
  %233 = vmatpush1.bf16.msra.mxu0 %v167
  %234 = vmatprep.subr.bf16.mxu0 0
  %235 = vmatpush2.bf16.msra.mxu0 0
  %236 = vmatprep.subr.bf16.mxu0 0
  %237 = vmatpush2.bf16.msra.mxu0 0
  %238 = vmatprep.subr.bf16.mxu0 0
  %239 = vmatpush2.bf16.msra.mxu0 0
  %240 = vmatprep.subr.bf16.mxu0 0
  %241 = vmatpush2.bf16.msra.mxu0 0
  %242 = vmatprep.subr.bf16.mxu0 0
  %243 = vmatpush2.bf16.msra.mxu0 0
  %244 = vmatprep.subr.bf16.mxu0 0
  %245 = vmatpush2.bf16.msra.mxu0 0
  %246 = vmatprep.subr.bf16.mxu0 0
  %247 = vmatpush2.bf16.msra.mxu0 %v216
  %248 = vmatprep.subr.bf16.mxu0 0
  %249 = vmatpush2.bf16.msra.mxu0 %v175
  %250 = vmatprep.mubr.bf16.mxu0 %v188
  %251 = vmatmul.mubr.bf16.gmra.mxu0 %v105
  %v252 = vpop.f32.mrf.mxu0
  %v253 = vadd.f32 %v55, %v252
  %v254 = vpop.f32.mrf.mxu0
  %v255 = vpop.f32.mrf.mxu0
  %v256 = vadd.f32 %v55, %v255
  %v257 = vpop.f32.mrf.mxu0
  %258 = vmatprep.mubr.bf16.mxu0 %v191
  %259 = vmatmul.mubr.bf16.gmra.mxu0 %v107
  %v260 = vpop.f32.mrf.mxu0
  %v261 = vadd.f32 %v55, %v260
  %v262 = vpop.f32.mrf.mxu0
  %v263 = vpop.f32.mrf.mxu0
  %v264 = vadd.f32 %v55, %v263
  %v265 = vpop.f32.mrf.mxu0
  %266 = vmatprep.mubr.bf16.mxu0 %v194
  %267 = vmatmul.mubr.bf16.gmra.mxu0 %v109
  %v268 = vpop.f32.mrf.mxu0
  %v269 = vadd.f32 %v55, %v268
  %v270 = vpop.f32.mrf.mxu0
  %v271 = vpop.f32.mrf.mxu0
  %v272 = vadd.f32 %v55, %v271
  %v273 = vpop.f32.mrf.mxu0
  %274 = vmatprep.mubr.bf16.mxu0 %v197
  %275 = vmatmul.mubr.bf16.gmra.mxu0 %v111
  %v276 = vpop.f32.mrf.mxu0
  %v277 = vadd.f32 %v55, %v276
  %v278 = vpop.f32.mrf.mxu0
  %v279 = vpop.f32.mrf.mxu0
  %v280 = vadd.f32 %v55, %v279
  %v281 = vpop.f32.mrf.mxu0
  %282 = vmatprep.mubr.bf16.mxu0 %v200
  %283 = vmatmul.mubr.bf16.gmra.mxu0 %v113
  %v284 = vpop.f32.mrf.mxu0
  %v285 = vadd.f32 %v55, %v284
  %v286 = vpop.f32.mrf.mxu0
  %v287 = vpop.f32.mrf.mxu0
  %v288 = vadd.f32 %v55, %v287
  %v289 = vpop.f32.mrf.mxu0
  %290 = vmatprep.mubr.bf16.mxu0 %v203
  %291 = vmatmul.mubr.bf16.gmra.mxu0 %v115
  %v292 = vpop.f32.mrf.mxu0
  %v293 = vadd.f32 %v55, %v292
  %v294 = vpop.f32.mrf.mxu0
  %v295 = vpop.f32.mrf.mxu0
  %v296 = vadd.f32 %v55, %v295
  %v297 = vpop.f32.mrf.mxu0
  %298 = vmatprep.mubr.bf16.mxu0 %v206
  %299 = vmatmul.mubr.bf16.gmra.mxu0 %v117
  %v300 = vpop.f32.mrf.mxu0
  %v301 = vadd.f32 %v55, %v300
  %v302 = vpop.f32.mrf.mxu0
  %v303 = vpop.f32.mrf.mxu0
  %v304 = vadd.f32 %v55, %v303
  %v305 = vpop.f32.mrf.mxu0
  %306 = vmatprep.mubr.bf16.mxu0 %v209
  %307 = vmatmul.mubr.bf16.gmra.mxu0 %v119
  %v308 = vpop.f32.mrf.mxu0
  %v309 = vadd.f32 %v55, %v308
  %v310 = vpop.f32.mrf.mxu0
  %v311 = vpop.f32.mrf.mxu0
  %v312 = vadd.f32 %v55, %v311
  %v313 = vpop.f32.mrf.mxu0
  %314 = vdwg.mxu0
  %v315 = vmax.f32 %v253, 0.0
  %v316 = vmax.f32 %v256, 0.0
  %v317 = vmax.f32 %v261, 0.0
  %v318 = vmax.f32 %v264, 0.0
  %v319 = vmax.f32 %v269, 0.0
  %v320 = vmax.f32 %v272, 0.0
  %v321 = vmax.f32 %v277, 0.0
  %v322 = vmax.f32 %v280, 0.0
  %v323 = vmax.f32 %v285, 0.0
  %v324 = vmax.f32 %v288, 0.0
  %v325 = vmax.f32 %v293, 0.0
  %v326 = vmax.f32 %v296, 0.0
  %v327 = vmax.f32 %v301, 0.0
  %v328 = vmax.f32 %v304, 0.0
  %v329 = vmax.f32 %v309, 0.0
  %v330 = vmax.f32 %v312, 0.0
  %v331 = vpack.c.bf16 %v316, %v315
  %v332 = vpack.c.bf16 %v318, %v317
  %v333 = vpack.c.bf16 %v320, %v319
  %v334 = vpack.c.bf16 %v322, %v321
  %v335 = vpack.c.bf16 %v324, %v323
  %v336 = vpack.c.bf16 %v326, %v325
  %v337 = vpack.c.bf16 %v328, %v327
  %v338 = vpack.c.bf16 %v330, %v329
  %v347 = vunpack.c.l.b16 %v331
  %v348 = vunpack.c.h.b16 %v331
  %v349 = vunpack.c.l.b16 %v332
  %v350 = vunpack.c.h.b16 %v332
  %v351 = vunpack.c.l.b16 %v333
  %v352 = vunpack.c.h.b16 %v333
  %v353 = vunpack.c.l.b16 %v334
  %v354 = vunpack.c.h.b16 %v334
  %v355 = vunpack.c.l.b16 %v335
  %v356 = vunpack.c.h.b16 %v335
  %v357 = vunpack.c.l.b16 %v336
  %v358 = vunpack.c.h.b16 %v336
  %v359 = vunpack.c.l.b16 %v337
  %v360 = vunpack.c.h.b16 %v337
  %v361 = vunpack.c.l.b16 %v338
  %v362 = vunpack.c.h.b16 %v338
  %v363 = vpack.c.b16 %v347, %v347
  %v364 = vpack.c.b16 %v348, %v348
  %v365 = vpack.c.b16 %v349, %v349
  %v366 = vpack.c.b16 %v350, %v350
  %v367 = vpack.c.b16 %v351, %v351
  %v368 = vpack.c.b16 %v352, %v352
  %v369 = vpack.c.b16 %v353, %v353
  %v370 = vpack.c.b16 %v354, %v354
  %v371 = vpack.c.b16 %v355, %v355
  %v372 = vpack.c.b16 %v356, %v356
  %v373 = vpack.c.b16 %v357, %v357
  %v374 = vpack.c.b16 %v358, %v358
  %v375 = vpack.c.b16 %v359, %v359
  %v376 = vpack.c.b16 %v360, %v360
  %v377 = vpack.c.b16 %v361, %v361
  %v378 = vpack.c.b16 %v362, %v362
  %395 = vst [vmem:[%s3] sm:$0xf] %v363
  %396 = vst [vmem:[%s3 + $0x4] sm:$0xf] %v364
  %397 = vst [vmem:[%s3 + $0x8] sm:$0xf] %v365
  %398 = vst [vmem:[%s3 + $0xc] sm:$0xf] %v366
  %399 = vst [vmem:[%s3 + $0x10] sm:$0xf] %v367
  %400 = vst [vmem:[%s3 + $0x14] sm:$0xf] %v368
  %401 = vst [vmem:[%s3 + $0x18] sm:$0xf] %v369
  %402 = vst [vmem:[%s3 + $0x1c] sm:$0xf] %v370
  %403 = vst [vmem:[%s3 + $0x20] sm:$0xf] %v371
  %404 = vst [vmem:[%s3 + $0x24] sm:$0xf] %v372
  %405 = vst [vmem:[%s3 + $0x28] sm:$0xf] %v373
  %406 = vst [vmem:[%s3 + $0x2c] sm:$0xf] %v374
  %407 = vst [vmem:[%s3 + $0x30] sm:$0xf] %v375
  %408 = vst [vmem:[%s3 + $0x34] sm:$0xf] %v376
  %409 = vst [vmem:[%s3 + $0x38] sm:$0xf] %v377
  %410 = vst [vmem:[%s3 + $0x3c] sm:$0xf] %v378
  // Predicated region
  $region14: #{resnet_forward.16} parent=0 // pred_check
    _
  $region15: #{resnet_forward.16} parent=0 // pred_check_branch
    %412 = sbr.rel (0) target = $region17
  $region16: #{resnet_forward.16} parent=0 // pred_region
    _
  $region17: #{resnet_forward.16} parent=0 // pred_fallthru
    _
  // Predicated region
  $region18: #{resnet_forward.16} parent=0 // pred_check
    _
  $region19: #{resnet_forward.16} parent=0 // pred_check_branch
    %414 = sbr.rel (0) target = $region21
  $region20: #{resnet_forward.16} parent=0 // pred_region
    _
  $region21: #{resnet_forward.16} parent=0 // pred_fallthru
    _

// kernel: resnet_forward.17
$region0: #{resnet_forward.17}
  #allocation0 [shape = 'u32[]', space=smem, size = 0x4, offset = 0x4, fixed_abs, tag = 'smem constant byte address 0x4 - core index']
  #allocation1 [shape = 'u32[144,128]{1,0:T(1,128)}', space=vmem, size = 0x12000, scoped, tag = 'internal scratch']
  %s0 = inlined_call_operand.vmem [shape: bf16[9,32,128], index: 0, kind: input, shape index: {}]
  %s1 = inlined_call_operand.vmem [shape: bf16[32,128], index: 1, kind: output, shape index: {}]
  %s2 = sld [smem:[#allocation0]]
  $region14: #{resnet_forward.17} parent=0
    _
  %s4 = ssub.s32 1, %s2
  %s5 = scalar_select 0, %s4, %s2
  // Predicated region
  $region2: #{resnet_forward.17} parent=0 // pred_check
    _
  $region3: #{resnet_forward.17} parent=0 // pred_check_branch
    %7 = sbr.rel (0) target = $region5
  $region4: #{resnet_forward.17} parent=0 // pred_region
    _
  $region5: #{resnet_forward.17} parent=0 // pred_fallthru
    _
  %v9 = vld [vmem:[%s0] sm:$0xf]
  %v10 = vld [vmem:[%s0 + $0x4] sm:$0xf]
  %v11 = vld [vmem:[%s0 + $0x8] sm:$0xf]
  %v12 = vld [vmem:[%s0 + $0xc] sm:$0xf]
  %v13 = vld [vmem:[%s0 + $0x10] sm:$0xf]
  %v14 = vld [vmem:[%s0 + $0x14] sm:$0xf]
  %v15 = vld [vmem:[%s0 + $0x18] sm:$0xf]
  %v16 = vld [vmem:[%s0 + $0x1c] sm:$0xf]
  %v17 = vld [vmem:[%s0 + $0x20] sm:$0xf]
  %v18 = vld [vmem:[%s0 + $0x24] sm:$0xf]
  %v19 = vld [vmem:[%s0 + $0x28] sm:$0xf]
  %v20 = vld [vmem:[%s0 + $0x2c] sm:$0xf]
  %v21 = vld [vmem:[%s0 + $0x30] sm:$0xf]
  %v22 = vld [vmem:[%s0 + $0x34] sm:$0xf]
  %v23 = vld [vmem:[%s0 + $0x38] sm:$0xf]
  %v24 = vld [vmem:[%s0 + $0x3c] sm:$0xf]
  %v25 = vld [vmem:[%s0 + $0x40] sm:$0xf]
  %v26 = vld [vmem:[%s0 + $0x44] sm:$0xf]
  %v27 = vld [vmem:[%s0 + $0x48] sm:$0xf]
  %v28 = vld [vmem:[%s0 + $0x4c] sm:$0xf]
  %v29 = vld [vmem:[%s0 + $0x50] sm:$0xf]
  %v30 = vld [vmem:[%s0 + $0x54] sm:$0xf]
  %v31 = vld [vmem:[%s0 + $0x58] sm:$0xf]
  %v32 = vld [vmem:[%s0 + $0x5c] sm:$0xf]
  %v33 = vld [vmem:[%s0 + $0x60] sm:$0xf]
  %v34 = vld [vmem:[%s0 + $0x64] sm:$0xf]
  %v35 = vld [vmem:[%s0 + $0x68] sm:$0xf]
  %v36 = vld [vmem:[%s0 + $0x6c] sm:$0xf]
  %v37 = vld [vmem:[%s0 + $0x70] sm:$0xf]
  %v38 = vld [vmem:[%s0 + $0x74] sm:$0xf]
  %v39 = vld [vmem:[%s0 + $0x78] sm:$0xf]
  %v40 = vld [vmem:[%s0 + $0x7c] sm:$0xf]
  %v41 = vld [vmem:[%s0 + $0x80] sm:$0xf]
  %v42 = vld [vmem:[%s0 + $0x84] sm:$0xf]
  %v43 = vld [vmem:[%s0 + $0x88] sm:$0xf]
  %v44 = vld [vmem:[%s0 + $0x8c] sm:$0xf]
  %vm45 = vcmask 1043456
  %v48 = vsel %vm45, %v9, 4286644096
  %v51 = vsel %vm45, %v13, 4286644096
  %v53 = vmax.bf16 %v48, %v51
  %v55 = vsel %vm45, %v17, 4286644096
  %v57 = vmax.bf16 %v53, %v55
  %v59 = vsel %vm45, %v21, 4286644096
  %v61 = vmax.bf16 %v57, %v59
  %v63 = vsel %vm45, %v25, 4286644096
  %v65 = vmax.bf16 %v61, %v63
  %v67 = vsel %vm45, %v29, 4286644096
  %v69 = vmax.bf16 %v65, %v67
  %v71 = vsel %vm45, %v33, 4286644096
  %v73 = vmax.bf16 %v69, %v71
  %v75 = vsel %vm45, %v37, 4286644096
  %v77 = vmax.bf16 %v73, %v75
  %v79 = vsel %vm45, %v41, 4286644096
  %v81 = vmax.bf16 %v77, %v79
  %v83 = vsel %vm45, %v10, 4286644096
  %v86 = vsel %vm45, %v14, 4286644096
  %v88 = vmax.bf16 %v83, %v86
  %v90 = vsel %vm45, %v18, 4286644096
  %v92 = vmax.bf16 %v88, %v90
  %v94 = vsel %vm45, %v22, 4286644096
  %v96 = vmax.bf16 %v92, %v94
  %v98 = vsel %vm45, %v26, 4286644096
  %v100 = vmax.bf16 %v96, %v98
  %v102 = vsel %vm45, %v30, 4286644096
  %v104 = vmax.bf16 %v100, %v102
  %v106 = vsel %vm45, %v34, 4286644096
  %v108 = vmax.bf16 %v104, %v106
  %v110 = vsel %vm45, %v38, 4286644096
  %v112 = vmax.bf16 %v108, %v110
  %v114 = vsel %vm45, %v42, 4286644096
  %v116 = vmax.bf16 %v112, %v114
  %v118 = vsel %vm45, %v11, 4286644096
  %v121 = vsel %vm45, %v15, 4286644096
  %v123 = vmax.bf16 %v118, %v121
  %v125 = vsel %vm45, %v19, 4286644096
  %v127 = vmax.bf16 %v123, %v125
  %v129 = vsel %vm45, %v23, 4286644096
  %v131 = vmax.bf16 %v127, %v129
  %v133 = vsel %vm45, %v27, 4286644096
  %v135 = vmax.bf16 %v131, %v133
  %v137 = vsel %vm45, %v31, 4286644096
  %v139 = vmax.bf16 %v135, %v137
  %v141 = vsel %vm45, %v35, 4286644096
  %v143 = vmax.bf16 %v139, %v141
  %v145 = vsel %vm45, %v39, 4286644096
  %v147 = vmax.bf16 %v143, %v145
  %v149 = vsel %vm45, %v43, 4286644096
  %v151 = vmax.bf16 %v147, %v149
  %v153 = vsel %vm45, %v12, 4286644096
  %v156 = vsel %vm45, %v16, 4286644096
  %v158 = vmax.bf16 %v153, %v156
  %v160 = vsel %vm45, %v20, 4286644096
  %v162 = vmax.bf16 %v158, %v160
  %v164 = vsel %vm45, %v24, 4286644096
  %v166 = vmax.bf16 %v162, %v164
  %v168 = vsel %vm45, %v28, 4286644096
  %v170 = vmax.bf16 %v166, %v168
  %v172 = vsel %vm45, %v32, 4286644096
  %v174 = vmax.bf16 %v170, %v172
  %v176 = vsel %vm45, %v36, 4286644096
  %v178 = vmax.bf16 %v174, %v176
  %v180 = vsel %vm45, %v40, 4286644096
  %v182 = vmax.bf16 %v178, %v180
  %v184 = vsel %vm45, %v44, 4286644096
  %v186 = vmax.bf16 %v182, %v184
  %187 = vst [vmem:[%s1] sm:$0xf] %v81
  %188 = vst [vmem:[%s1 + $0x4] sm:$0xf] %v116
  %189 = vst [vmem:[%s1 + $0x8] sm:$0xf] %v151
  %190 = vst [vmem:[%s1 + $0xc] sm:$0xf] %v186
  // Predicated region
  $region6: #{resnet_forward.17} parent=0 // pred_check
    _
  $region7: #{resnet_forward.17} parent=0 // pred_check_branch
    %192 = sbr.rel (0) target = $region9
  $region8: #{resnet_forward.17} parent=0 // pred_region
    _
  $region9: #{resnet_forward.17} parent=0 // pred_fallthru
    _
  // Predicated region
  $region10: #{resnet_forward.17} parent=0 // pred_check
    _
  $region11: #{resnet_forward.17} parent=0 // pred_check_branch
    %194 = sbr.rel (0) target = $region13
  $region12: #{resnet_forward.17} parent=0 // pred_region
    _
  $region13: #{resnet_forward.17} parent=0 // pred_fallthru
    _

// kernel: resnet_forward.18
$region0: #{resnet_forward.18}
  #allocation0 [shape = 'u32[]', space=smem, size = 0x4, offset = 0x4, fixed_abs, tag = 'smem constant byte address 0x4 - core index']
  #allocation1 [shape = 'u32[144,128]{1,0:T(1,128)}', space=vmem, size = 0x12000, scoped, tag = 'internal scratch']
  %s0 = inlined_call_operand.vmem [shape: bf16[32,144], index: 0, kind: input, shape index: {}]
  %s1 = inlined_call_operand.vmem [shape: bf16[144,128], index: 1, kind: input, shape index: {}]
  %s2 = inlined_call_operand.vmem [shape: f32[1,128], index: 2, kind: input, shape index: {}]
  %s3 = inlined_call_operand.vmem [shape: bf16[32,128], index: 3, kind: output, shape index: {}]
  %s4 = sld [smem:[#allocation0]]
  $region22: #{resnet_forward.18} parent=0
    _
  %s6 = ssub.s32 1, %s4
  %s7 = scalar_select 0, %s6, %s4
  // Predicated region
  $region2: #{resnet_forward.18} parent=0 // pred_check
    _
  $region3: #{resnet_forward.18} parent=0 // pred_check_branch
    %9 = sbr.rel (0) target = $region5
  $region4: #{resnet_forward.18} parent=0 // pred_region
    _
  $region5: #{resnet_forward.18} parent=0 // pred_fallthru
    _
  // Predicated region
  $region6: #{resnet_forward.18} parent=0 // pred_check
    _
  $region7: #{resnet_forward.18} parent=0 // pred_check_branch
    %11 = sbr.rel (0) target = $region9
  $region8: #{resnet_forward.18} parent=0 // pred_region
    _
  $region9: #{resnet_forward.18} parent=0 // pred_fallthru
    _
  // Predicated region
  $region10: #{resnet_forward.18} parent=0 // pred_check
    _
  $region11: #{resnet_forward.18} parent=0 // pred_check_branch
    %13 = sbr.rel (0) target = $region13
  $region12: #{resnet_forward.18} parent=0 // pred_region
    _
  $region13: #{resnet_forward.18} parent=0 // pred_fallthru
    _
  %v15 = vld [vmem:[%s0] sm:$0xff]
  %v16 = vld [vmem:[%s0 + $0x8] sm:$0xff]
  %v17 = vld [vmem:[%s0 + $0x10] sm:$0xff]
  %v18 = vld [vmem:[%s0 + $0x18] sm:$0xff]
  %v19 = vld [vmem:[%s1] sm:$0xf]
  %v20 = vld [vmem:[%s1 + $0x4] sm:$0xf]
  %v21 = vld [vmem:[%s1 + $0x8] sm:$0xf]
  %v22 = vld [vmem:[%s1 + $0xc] sm:$0xf]
  %v23 = vld [vmem:[%s1 + $0x10] sm:$0xf]
  %v24 = vld [vmem:[%s1 + $0x14] sm:$0xf]
  %v25 = vld [vmem:[%s1 + $0x18] sm:$0xf]
  %v26 = vld [vmem:[%s1 + $0x1c] sm:$0xf]
  %v27 = vld [vmem:[%s1 + $0x20] sm:$0xf]
  %v28 = vld [vmem:[%s1 + $0x24] sm:$0xf]
  %v29 = vld [vmem:[%s1 + $0x28] sm:$0xf]
  %v30 = vld [vmem:[%s1 + $0x2c] sm:$0xf]
  %v31 = vld [vmem:[%s1 + $0x30] sm:$0xf]
  %v32 = vld [vmem:[%s1 + $0x34] sm:$0xf]
  %v33 = vld [vmem:[%s1 + $0x38] sm:$0xf]
  %v34 = vld [vmem:[%s1 + $0x3c] sm:$0xf]
  %v35 = vld [vmem:[%s1 + $0x40] sm:$0xf]
  %v36 = vld [vmem:[%s1 + $0x44] sm:$0xf]
  %v37 = vld [vmem:[%s2] sm:$0x1]
  %v39 = vlaneseq
  %v40 = vshrl.u32 %v39, 7
  %v41 = vsub.s32 0, %v40
  %v42 = vrot.slane %v37, %v41
  %v48 = vunpack.c.l.b16 %v15
  %v49 = vunpack.c.h.b16 %v15
  %v50 = vunpack.c.l.b16 %v16
  %v51 = vunpack.c.h.b16 %v16
  %v52 = vunpack.c.l.b16 %v17
  %v53 = vunpack.c.h.b16 %v17
  %v54 = vunpack.c.l.b16 %v18
  %v55 = vunpack.c.h.b16 %v18
  %v56 = vpack.c.b16 %v50, %v48
  %v57 = vpack.c.b16 %v51, %v49
  %v58 = vpack.c.b16 %v54, %v52
  %v59 = vpack.c.b16 %v55, %v53
  %v80 = vunpack.c.l.b16 %v19
  %v81 = vunpack.c.l.b16 %v20
  %v82 = vunpack.c.l.b16 %v21
  %v83 = vunpack.c.l.b16 %v22
  %v84 = vunpack.c.l.b16 %v23
  %v85 = vunpack.c.l.b16 %v24
  %v86 = vunpack.c.l.b16 %v25
  %v87 = vunpack.c.l.b16 %v26
  %v88 = vunpack.c.l.b16 %v27
  %v89 = vunpack.c.l.b16 %v28
  %v90 = vunpack.c.l.b16 %v29
  %v91 = vunpack.c.l.b16 %v30
  %v92 = vunpack.c.l.b16 %v31
  %v93 = vunpack.c.l.b16 %v32
  %v94 = vunpack.c.l.b16 %v33
  %v95 = vunpack.c.l.b16 %v34
  %v96 = vunpack.c.l.b16 %v35
  %v97 = vunpack.c.l.b16 %v36
  %v98 = vpack.c.b16 %v81, %v80
  %v99 = vpack.c.b16 %v83, %v82
  %v100 = vpack.c.b16 %v85, %v84
  %v101 = vpack.c.b16 %v87, %v86
  %v102 = vpack.c.b16 %v89, %v88
  %v103 = vpack.c.b16 %v91, %v90
  %v104 = vpack.c.b16 %v93, %v92
  %v105 = vpack.c.b16 %v95, %v94
  %v106 = vpack.c.b16 %v97, %v96
  %vm116 = vcmask 130048
  %v118 = vsel %vm116, %v57, 0
  %v121 = vsel %vm116, %v59, 0
  %123 = vmatprep.subr.bf16.mxu0 0
  %124 = vmatpush1.bf16.msra.mxu0 %v105
  %125 = vmatprep.subr.bf16.mxu0 0
  %126 = vmatpush1.bf16.msra.mxu0 %v104
  %127 = vmatprep.subr.bf16.mxu0 0
  %128 = vmatpush1.bf16.msra.mxu0 %v103
  %129 = vmatprep.subr.bf16.mxu0 0
  %130 = vmatpush1.bf16.msra.mxu0 %v102
  %131 = vmatprep.subr.bf16.mxu0 0
  %132 = vmatpush1.bf16.msra.mxu0 %v101
  %133 = vmatprep.subr.bf16.mxu0 0
  %134 = vmatpush1.bf16.msra.mxu0 %v100
  %135 = vmatprep.subr.bf16.mxu0 0
  %136 = vmatpush1.bf16.msra.mxu0 %v99
  %137 = vmatprep.subr.bf16.mxu0 0
  %138 = vmatpush1.bf16.msra.mxu0 %v98
  %139 = vmatprep.subr.bf16.mxu0 0
  %140 = vmatpush2.bf16.msra.mxu0 0
  %141 = vmatprep.subr.bf16.mxu0 0
  %142 = vmatpush2.bf16.msra.mxu0 0
  %143 = vmatprep.subr.bf16.mxu0 0
  %144 = vmatpush2.bf16.msra.mxu0 0
  %145 = vmatprep.subr.bf16.mxu0 0
  %146 = vmatpush2.bf16.msra.mxu0 0
  %147 = vmatprep.subr.bf16.mxu0 0
  %148 = vmatpush2.bf16.msra.mxu0 0
  %149 = vmatprep.subr.bf16.mxu0 0
  %150 = vmatpush2.bf16.msra.mxu0 0
  %151 = vmatprep.subr.bf16.mxu0 0
  %152 = vmatpush2.bf16.msra.mxu0 0
  %153 = vmatprep.subr.bf16.mxu0 0
  %154 = vmatpush2.bf16.msra.mxu0 %v106
  %155 = vmatprep.mubr.bf16.mxu0 %v118
  %156 = vmatmul.mubr.bf16.gmra.mxu0 %v56
  %v157 = vpop.f32.mrf.mxu0
  %v158 = vadd.f32 %v42, %v157
  %v159 = vpop.f32.mrf.mxu0
  %v160 = vpop.f32.mrf.mxu0
  %v161 = vadd.f32 %v42, %v160
  %v162 = vpop.f32.mrf.mxu0
  %163 = vmatprep.mubr.bf16.mxu0 %v121
  %164 = vmatmul.mubr.bf16.gmra.mxu0 %v58
  %v165 = vpop.f32.mrf.mxu0
  %v166 = vadd.f32 %v42, %v165
  %v167 = vpop.f32.mrf.mxu0
  %v168 = vpop.f32.mrf.mxu0
  %v169 = vadd.f32 %v42, %v168
  %v170 = vpop.f32.mrf.mxu0
  %171 = vdwg.mxu0
  %v172 = vmax.f32 %v158, 0.0
  %v173 = vmax.f32 %v161, 0.0
  %v174 = vmax.f32 %v166, 0.0
  %v175 = vmax.f32 %v169, 0.0
  %v176 = vpack.c.bf16 %v173, %v172
  %v177 = vpack.c.bf16 %v175, %v174
  %v180 = vunpack.c.l.b16 %v176
  %v181 = vunpack.c.h.b16 %v176
  %v182 = vunpack.c.l.b16 %v177
  %v183 = vunpack.c.h.b16 %v177
  %v184 = vpack.c.b16 %v180, %v180
  %v185 = vpack.c.b16 %v181, %v181
  %v186 = vpack.c.b16 %v182, %v182
  %v187 = vpack.c.b16 %v183, %v183
  %192 = vst [vmem:[%s3] sm:$0xf] %v184
  %193 = vst [vmem:[%s3 + $0x4] sm:$0xf] %v185
  %194 = vst [vmem:[%s3 + $0x8] sm:$0xf] %v186
  %195 = vst [vmem:[%s3 + $0xc] sm:$0xf] %v187
  // Predicated region
  $region14: #{resnet_forward.18} parent=0 // pred_check
    _
  $region15: #{resnet_forward.18} parent=0 // pred_check_branch
    %197 = sbr.rel (0) target = $region17
  $region16: #{resnet_forward.18} parent=0 // pred_region
    _
  $region17: #{resnet_forward.18} parent=0 // pred_fallthru
    _
  // Predicated region
  $region18: #{resnet_forward.18} parent=0 // pred_check
    _
  $region19: #{resnet_forward.18} parent=0 // pred_check_branch
    %199 = sbr.rel (0) target = $region21
  $region20: #{resnet_forward.18} parent=0 // pred_region
    _
  $region21: #{resnet_forward.18} parent=0 // pred_fallthru
    _

// kernel: resnet_forward.19
$region0: #{resnet_forward.19}
  #allocation0 [shape = 'u32[]', space=smem, size = 0x4, offset = 0x4, fixed_abs, tag = 'smem constant byte address 0x4 - core index']
  #allocation1 [shape = 'u32[144,128]{1,0:T(1,128)}', space=vmem, size = 0x12000, scoped, tag = 'internal scratch']
  %s0 = inlined_call_operand.vmem [shape: bf16[32,144], index: 0, kind: input, shape index: {}]
  %s1 = inlined_call_operand.vmem [shape: bf16[144,128], index: 1, kind: input, shape index: {}]
  %s2 = inlined_call_operand.vmem [shape: f32[1,128], index: 2, kind: input, shape index: {}]
  %s3 = inlined_call_operand.vmem [shape: bf16[32,128], index: 3, kind: input, shape index: {}]
  %s4 = inlined_call_operand.vmem [shape: bf16[32,128], index: 4, kind: output, shape index: {}]
  %s5 = sld [smem:[#allocation0]]
  $region26: #{resnet_forward.19} parent=0
    _
  %s7 = ssub.s32 1, %s5
  %s8 = scalar_select 0, %s7, %s5
  // Predicated region
  $region2: #{resnet_forward.19} parent=0 // pred_check
    _
  $region3: #{resnet_forward.19} parent=0 // pred_check_branch
    %10 = sbr.rel (0) target = $region5
  $region4: #{resnet_forward.19} parent=0 // pred_region
    _
  $region5: #{resnet_forward.19} parent=0 // pred_fallthru
    _
  // Predicated region
  $region6: #{resnet_forward.19} parent=0 // pred_check
    _
  $region7: #{resnet_forward.19} parent=0 // pred_check_branch
    %12 = sbr.rel (0) target = $region9
  $region8: #{resnet_forward.19} parent=0 // pred_region
    _
  $region9: #{resnet_forward.19} parent=0 // pred_fallthru
    _
  // Predicated region
  $region10: #{resnet_forward.19} parent=0 // pred_check
    _
  $region11: #{resnet_forward.19} parent=0 // pred_check_branch
    %14 = sbr.rel (0) target = $region13
  $region12: #{resnet_forward.19} parent=0 // pred_region
    _
  $region13: #{resnet_forward.19} parent=0 // pred_fallthru
    _
  // Predicated region
  $region14: #{resnet_forward.19} parent=0 // pred_check
    _
  $region15: #{resnet_forward.19} parent=0 // pred_check_branch
    %16 = sbr.rel (0) target = $region17
  $region16: #{resnet_forward.19} parent=0 // pred_region
    _
  $region17: #{resnet_forward.19} parent=0 // pred_fallthru
    _
  %v18 = vld [vmem:[%s0] sm:$0xff]
  %v19 = vld [vmem:[%s0 + $0x8] sm:$0xff]
  %v20 = vld [vmem:[%s0 + $0x10] sm:$0xff]
  %v21 = vld [vmem:[%s0 + $0x18] sm:$0xff]
  %v22 = vld [vmem:[%s1] sm:$0xf]
  %v23 = vld [vmem:[%s1 + $0x4] sm:$0xf]
  %v24 = vld [vmem:[%s1 + $0x8] sm:$0xf]
  %v25 = vld [vmem:[%s1 + $0xc] sm:$0xf]
  %v26 = vld [vmem:[%s1 + $0x10] sm:$0xf]
  %v27 = vld [vmem:[%s1 + $0x14] sm:$0xf]
  %v28 = vld [vmem:[%s1 + $0x18] sm:$0xf]
  %v29 = vld [vmem:[%s1 + $0x1c] sm:$0xf]
  %v30 = vld [vmem:[%s1 + $0x20] sm:$0xf]
  %v31 = vld [vmem:[%s1 + $0x24] sm:$0xf]
  %v32 = vld [vmem:[%s1 + $0x28] sm:$0xf]
  %v33 = vld [vmem:[%s1 + $0x2c] sm:$0xf]
  %v34 = vld [vmem:[%s1 + $0x30] sm:$0xf]
  %v35 = vld [vmem:[%s1 + $0x34] sm:$0xf]
  %v36 = vld [vmem:[%s1 + $0x38] sm:$0xf]
  %v37 = vld [vmem:[%s1 + $0x3c] sm:$0xf]
  %v38 = vld [vmem:[%s1 + $0x40] sm:$0xf]
  %v39 = vld [vmem:[%s1 + $0x44] sm:$0xf]
  %v40 = vld [vmem:[%s2] sm:$0x1]
  %v42 = vlaneseq
  %v43 = vshrl.u32 %v42, 7
  %v44 = vsub.s32 0, %v43
  %v45 = vrot.slane %v40, %v44
  %v51 = vunpack.c.l.b16 %v18
  %v52 = vunpack.c.h.b16 %v18
  %v53 = vunpack.c.l.b16 %v19
  %v54 = vunpack.c.h.b16 %v19
  %v55 = vunpack.c.l.b16 %v20
  %v56 = vunpack.c.h.b16 %v20
  %v57 = vunpack.c.l.b16 %v21
  %v58 = vunpack.c.h.b16 %v21
  %v59 = vpack.c.b16 %v53, %v51
  %v60 = vpack.c.b16 %v54, %v52
  %v61 = vpack.c.b16 %v57, %v55
  %v62 = vpack.c.b16 %v58, %v56
  %v83 = vunpack.c.l.b16 %v22
  %v84 = vunpack.c.l.b16 %v23
  %v85 = vunpack.c.l.b16 %v24
  %v86 = vunpack.c.l.b16 %v25
  %v87 = vunpack.c.l.b16 %v26
  %v88 = vunpack.c.l.b16 %v27
  %v89 = vunpack.c.l.b16 %v28
  %v90 = vunpack.c.l.b16 %v29
  %v91 = vunpack.c.l.b16 %v30
  %v92 = vunpack.c.l.b16 %v31
  %v93 = vunpack.c.l.b16 %v32
  %v94 = vunpack.c.l.b16 %v33
  %v95 = vunpack.c.l.b16 %v34
  %v96 = vunpack.c.l.b16 %v35
  %v97 = vunpack.c.l.b16 %v36
  %v98 = vunpack.c.l.b16 %v37
  %v99 = vunpack.c.l.b16 %v38
  %v100 = vunpack.c.l.b16 %v39
  %v101 = vpack.c.b16 %v84, %v83
  %v102 = vpack.c.b16 %v86, %v85
  %v103 = vpack.c.b16 %v88, %v87
  %v104 = vpack.c.b16 %v90, %v89
  %v105 = vpack.c.b16 %v92, %v91
  %v106 = vpack.c.b16 %v94, %v93
  %v107 = vpack.c.b16 %v96, %v95
  %v108 = vpack.c.b16 %v98, %v97
  %v109 = vpack.c.b16 %v100, %v99
  %vm119 = vcmask 130048
  %v121 = vsel %vm119, %v60, 0
  %v124 = vsel %vm119, %v62, 0
  %126 = vmatprep.subr.bf16.mxu0 0
  %127 = vmatpush1.bf16.msra.mxu0 %v108
  %128 = vmatprep.subr.bf16.mxu0 0
  %129 = vmatpush1.bf16.msra.mxu0 %v107
  %130 = vmatprep.subr.bf16.mxu0 0
  %131 = vmatpush1.bf16.msra.mxu0 %v106
  %132 = vmatprep.subr.bf16.mxu0 0
  %133 = vmatpush1.bf16.msra.mxu0 %v105
  %134 = vmatprep.subr.bf16.mxu0 0
  %135 = vmatpush1.bf16.msra.mxu0 %v104
  %136 = vmatprep.subr.bf16.mxu0 0
  %137 = vmatpush1.bf16.msra.mxu0 %v103
  %138 = vmatprep.subr.bf16.mxu0 0
  %139 = vmatpush1.bf16.msra.mxu0 %v102
  %140 = vmatprep.subr.bf16.mxu0 0
  %141 = vmatpush1.bf16.msra.mxu0 %v101
  %142 = vmatprep.subr.bf16.mxu0 0
  %143 = vmatpush2.bf16.msra.mxu0 0
  %144 = vmatprep.subr.bf16.mxu0 0
  %145 = vmatpush2.bf16.msra.mxu0 0
  %146 = vmatprep.subr.bf16.mxu0 0
  %147 = vmatpush2.bf16.msra.mxu0 0
  %148 = vmatprep.subr.bf16.mxu0 0
  %149 = vmatpush2.bf16.msra.mxu0 0
  %150 = vmatprep.subr.bf16.mxu0 0
  %151 = vmatpush2.bf16.msra.mxu0 0
  %152 = vmatprep.subr.bf16.mxu0 0
  %153 = vmatpush2.bf16.msra.mxu0 0
  %154 = vmatprep.subr.bf16.mxu0 0
  %155 = vmatpush2.bf16.msra.mxu0 0
  %156 = vmatprep.subr.bf16.mxu0 0
  %157 = vmatpush2.bf16.msra.mxu0 %v109
  %158 = vmatprep.mubr.bf16.mxu0 %v121
  %159 = vmatmul.mubr.bf16.gmra.mxu0 %v59
  %v160 = vpop.f32.mrf.mxu0
  %v161 = vadd.f32 %v45, %v160
  %v162 = vpop.f32.mrf.mxu0
  %v163 = vpop.f32.mrf.mxu0
  %v164 = vadd.f32 %v45, %v163
  %v165 = vpop.f32.mrf.mxu0
  %166 = vmatprep.mubr.bf16.mxu0 %v124
  %167 = vmatmul.mubr.bf16.gmra.mxu0 %v61
  %v168 = vpop.f32.mrf.mxu0
  %v169 = vadd.f32 %v45, %v168
  %v170 = vpop.f32.mrf.mxu0
  %v171 = vpop.f32.mrf.mxu0
  %v172 = vadd.f32 %v45, %v171
  %v173 = vpop.f32.mrf.mxu0
  %174 = vdwg.mxu0
  %v175 = vld [vmem:[%s3] sm:$0xf]
  %v176 = vld [vmem:[%s3 + $0x4] sm:$0xf]
  %v177 = vld [vmem:[%s3 + $0x8] sm:$0xf]
  %v178 = vld [vmem:[%s3 + $0xc] sm:$0xf]
  %v179 = vunpack.c.l.bf16 %v175
  %v180 = vunpack.c.l.bf16 %v176
  %v181 = vunpack.c.l.bf16 %v177
  %v182 = vunpack.c.l.bf16 %v178
  %v183 = vadd.f32 %v161, %v179
  %v184 = vadd.f32 %v164, %v180
  %v185 = vadd.f32 %v169, %v181
  %v186 = vadd.f32 %v172, %v182
  %v187 = vmax.f32 %v183, 0.0
  %v188 = vmax.f32 %v184, 0.0
  %v189 = vmax.f32 %v185, 0.0
  %v190 = vmax.f32 %v186, 0.0
  %v191 = vpack.c.bf16 %v188, %v187
  %v192 = vpack.c.bf16 %v190, %v189
  %v195 = vunpack.c.l.b16 %v191
  %v196 = vunpack.c.h.b16 %v191
  %v197 = vunpack.c.l.b16 %v192
  %v198 = vunpack.c.h.b16 %v192
  %v199 = vpack.c.b16 %v195, %v195
  %v200 = vpack.c.b16 %v196, %v196
  %v201 = vpack.c.b16 %v197, %v197
  %v202 = vpack.c.b16 %v198, %v198
  %207 = vst [vmem:[%s4] sm:$0xf] %v199
  %208 = vst [vmem:[%s4 + $0x4] sm:$0xf] %v200
  %209 = vst [vmem:[%s4 + $0x8] sm:$0xf] %v201
  %210 = vst [vmem:[%s4 + $0xc] sm:$0xf] %v202
  // Predicated region
  $region18: #{resnet_forward.19} parent=0 // pred_check
    _
  $region19: #{resnet_forward.19} parent=0 // pred_check_branch
    %212 = sbr.rel (0) target = $region21
  $region20: #{resnet_forward.19} parent=0 // pred_region
    _
  $region21: #{resnet_forward.19} parent=0 // pred_fallthru
    _
  // Predicated region
  $region22: #{resnet_forward.19} parent=0 // pred_check
    _
  $region23: #{resnet_forward.19} parent=0 // pred_check_branch
    %214 = sbr.rel (0) target = $region25
  $region24: #{resnet_forward.19} parent=0 // pred_region
    _
  $region25: #{resnet_forward.19} parent=0 // pred_fallthru
    _

// kernel: resnet_forward.20
$region0: #{resnet_forward.20}
  #allocation0 [shape = 'u32[]', space=smem, size = 0x4, offset = 0x4, fixed_abs, tag = 'smem constant byte address 0x4 - core index']
  #allocation1 [shape = 'u32[144,128]{1,0:T(1,128)}', space=vmem, size = 0x12000, scoped, tag = 'internal scratch']
  %s0 = inlined_call_operand.vmem [shape: bf16[8,144], index: 0, kind: input, shape index: {}]
  %s1 = inlined_call_operand.vmem [shape: bf16[144,128], index: 1, kind: input, shape index: {}]
  %s2 = inlined_call_operand.vmem [shape: f32[1,128], index: 2, kind: input, shape index: {}]
  %s3 = inlined_call_operand.vmem [shape: bf16[8,128], index: 3, kind: output, shape index: {}]
  %s4 = sld [smem:[#allocation0]]
  $region22: #{resnet_forward.20} parent=0
    _
  %s6 = ssub.s32 1, %s4
  %s7 = scalar_select 0, %s6, %s4
  // Predicated region
  $region2: #{resnet_forward.20} parent=0 // pred_check
    _
  $region3: #{resnet_forward.20} parent=0 // pred_check_branch
    %9 = sbr.rel (0) target = $region5
  $region4: #{resnet_forward.20} parent=0 // pred_region
    _
  $region5: #{resnet_forward.20} parent=0 // pred_fallthru
    _
  // Predicated region
  $region6: #{resnet_forward.20} parent=0 // pred_check
    _
  $region7: #{resnet_forward.20} parent=0 // pred_check_branch
    %11 = sbr.rel (0) target = $region9
  $region8: #{resnet_forward.20} parent=0 // pred_region
    _
  $region9: #{resnet_forward.20} parent=0 // pred_fallthru
    _
  // Predicated region
  $region10: #{resnet_forward.20} parent=0 // pred_check
    _
  $region11: #{resnet_forward.20} parent=0 // pred_check_branch
    %13 = sbr.rel (0) target = $region13
  $region12: #{resnet_forward.20} parent=0 // pred_region
    _
  $region13: #{resnet_forward.20} parent=0 // pred_fallthru
    _
  %v15 = vld [vmem:[%s0] sm:$0xff]
  %v16 = vld [vmem:[%s1] sm:$0xf]
  %v17 = vld [vmem:[%s1 + $0x4] sm:$0xf]
  %v18 = vld [vmem:[%s1 + $0x8] sm:$0xf]
  %v19 = vld [vmem:[%s1 + $0xc] sm:$0xf]
  %v20 = vld [vmem:[%s1 + $0x10] sm:$0xf]
  %v21 = vld [vmem:[%s1 + $0x14] sm:$0xf]
  %v22 = vld [vmem:[%s1 + $0x18] sm:$0xf]
  %v23 = vld [vmem:[%s1 + $0x1c] sm:$0xf]
  %v24 = vld [vmem:[%s1 + $0x20] sm:$0xf]
  %v25 = vld [vmem:[%s1 + $0x24] sm:$0xf]
  %v26 = vld [vmem:[%s1 + $0x28] sm:$0xf]
  %v27 = vld [vmem:[%s1 + $0x2c] sm:$0xf]
  %v28 = vld [vmem:[%s1 + $0x30] sm:$0xf]
  %v29 = vld [vmem:[%s1 + $0x34] sm:$0xf]
  %v30 = vld [vmem:[%s1 + $0x38] sm:$0xf]
  %v31 = vld [vmem:[%s1 + $0x3c] sm:$0xf]
  %v32 = vld [vmem:[%s1 + $0x40] sm:$0xf]
  %v33 = vld [vmem:[%s1 + $0x44] sm:$0xf]
  %v34 = vld [vmem:[%s2] sm:$0x1]
  %v36 = vlaneseq
  %v37 = vshrl.u32 %v36, 7
  %v38 = vsub.s32 0, %v37
  %v39 = vrot.slane %v34, %v38
  %v42 = vunpack.c.l.b16 %v15
  %v43 = vunpack.c.h.b16 %v15
  %v44 = vpack.c.b16 %v42, %v42
  %v45 = vpack.c.b16 %v43, %v43
  %v65 = vunpack.c.l.b16 %v16
  %v66 = vunpack.c.l.b16 %v17
  %v67 = vunpack.c.l.b16 %v18
  %v68 = vunpack.c.l.b16 %v19
  %v69 = vunpack.c.l.b16 %v20
  %v70 = vunpack.c.l.b16 %v21
  %v71 = vunpack.c.l.b16 %v22
  %v72 = vunpack.c.l.b16 %v23
  %v73 = vunpack.c.l.b16 %v24
  %v74 = vunpack.c.l.b16 %v25
  %v75 = vunpack.c.l.b16 %v26
  %v76 = vunpack.c.l.b16 %v27
  %v77 = vunpack.c.l.b16 %v28
  %v78 = vunpack.c.l.b16 %v29
  %v79 = vunpack.c.l.b16 %v30
  %v80 = vunpack.c.l.b16 %v31
  %v81 = vunpack.c.l.b16 %v32
  %v82 = vunpack.c.l.b16 %v33
  %v83 = vpack.c.b16 %v66, %v65
  %v84 = vpack.c.b16 %v68, %v67
  %v85 = vpack.c.b16 %v70, %v69
  %v86 = vpack.c.b16 %v72, %v71
  %v87 = vpack.c.b16 %v74, %v73
  %v88 = vpack.c.b16 %v76, %v75
  %v89 = vpack.c.b16 %v78, %v77
  %v90 = vpack.c.b16 %v80, %v79
  %v91 = vpack.c.b16 %v82, %v81
  %vm101 = vcmask 130048
  %v103 = vsel %vm101, %v45, 0
  %105 = vmatprep.subr.bf16.mxu0 0
  %106 = vmatpush1.bf16.msra.mxu0 %v90
  %107 = vmatprep.subr.bf16.mxu0 0
  %108 = vmatpush1.bf16.msra.mxu0 %v89
  %109 = vmatprep.subr.bf16.mxu0 0
  %110 = vmatpush1.bf16.msra.mxu0 %v88
  %111 = vmatprep.subr.bf16.mxu0 0
  %112 = vmatpush1.bf16.msra.mxu0 %v87
  %113 = vmatprep.subr.bf16.mxu0 0
  %114 = vmatpush1.bf16.msra.mxu0 %v86
  %115 = vmatprep.subr.bf16.mxu0 0
  %116 = vmatpush1.bf16.msra.mxu0 %v85
  %117 = vmatprep.subr.bf16.mxu0 0
  %118 = vmatpush1.bf16.msra.mxu0 %v84
  %119 = vmatprep.subr.bf16.mxu0 0
  %120 = vmatpush1.bf16.msra.mxu0 %v83
  %121 = vmatprep.subr.bf16.mxu0 0
  %122 = vmatpush2.bf16.msra.mxu0 0
  %123 = vmatprep.subr.bf16.mxu0 0
  %124 = vmatpush2.bf16.msra.mxu0 0
  %125 = vmatprep.subr.bf16.mxu0 0
  %126 = vmatpush2.bf16.msra.mxu0 0
  %127 = vmatprep.subr.bf16.mxu0 0
  %128 = vmatpush2.bf16.msra.mxu0 0
  %129 = vmatprep.subr.bf16.mxu0 0
  %130 = vmatpush2.bf16.msra.mxu0 0
  %131 = vmatprep.subr.bf16.mxu0 0
  %132 = vmatpush2.bf16.msra.mxu0 0
  %133 = vmatprep.subr.bf16.mxu0 0
  %134 = vmatpush2.bf16.msra.mxu0 0
  %135 = vmatprep.subr.bf16.mxu0 0
  %136 = vmatpush2.bf16.msra.mxu0 %v91
  %137 = vmatprep.mubr.bf16.mxu0 %v103
  %138 = vmatmul.mubr.bf16.gmra.mxu0 %v44
  %v139 = vpop.f32.mrf.mxu0
  %v140 = vadd.f32 %v39, %v139
  %v141 = vpop.f32.mrf.mxu0
  %v142 = vpop.f32.mrf.mxu0
  %v143 = vpop.f32.mrf.mxu0
  %144 = vdwg.mxu0
  %v145 = vmax.f32 %v140, 0.0
  %v146 = vpack.c.bf16 %v145, %v145
  %147 = vst [vmem:[%s3] sm:$0xf] %v146
  // Predicated region
  $region14: #{resnet_forward.20} parent=0 // pred_check
    _
  $region15: #{resnet_forward.20} parent=0 // pred_check_branch
    %149 = sbr.rel (0) target = $region17
  $region16: #{resnet_forward.20} parent=0 // pred_region
    _
  $region17: #{resnet_forward.20} parent=0 // pred_fallthru
    _
  // Predicated region
  $region18: #{resnet_forward.20} parent=0 // pred_check
    _
  $region19: #{resnet_forward.20} parent=0 // pred_check_branch
    %151 = sbr.rel (0) target = $region21
  $region20: #{resnet_forward.20} parent=0 // pred_region
    _
  $region21: #{resnet_forward.20} parent=0 // pred_fallthru
    _

// kernel: resnet_forward.21
$region0: #{resnet_forward.21}
  #allocation0 [shape = 'u32[]', space=smem, size = 0x4, offset = 0x4, fixed_abs, tag = 'smem constant byte address 0x4 - core index']
  #allocation1 [shape = 'u32[144,128]{1,0:T(1,128)}', space=vmem, size = 0x12000, scoped, tag = 'internal scratch']
  %s0 = inlined_call_operand.vmem [shape: bf16[8,16], index: 0, kind: input, shape index: {}]
  %s1 = inlined_call_operand.vmem [shape: bf16[16,128], index: 1, kind: input, shape index: {}]
  %s2 = inlined_call_operand.vmem [shape: f32[1,128], index: 2, kind: input, shape index: {}]
  %s3 = inlined_call_operand.vmem [shape: bf16[8,128], index: 3, kind: output, shape index: {}]
  %s4 = sld [smem:[#allocation0]]
  $region22: #{resnet_forward.21} parent=0
    _
  %s6 = ssub.s32 1, %s4
  %s7 = scalar_select 0, %s6, %s4
  // Predicated region
  $region2: #{resnet_forward.21} parent=0 // pred_check
    _
  $region3: #{resnet_forward.21} parent=0 // pred_check_branch
    %9 = sbr.rel (0) target = $region5
  $region4: #{resnet_forward.21} parent=0 // pred_region
    _
  $region5: #{resnet_forward.21} parent=0 // pred_fallthru
    _
  // Predicated region
  $region6: #{resnet_forward.21} parent=0 // pred_check
    _
  $region7: #{resnet_forward.21} parent=0 // pred_check_branch
    %11 = sbr.rel (0) target = $region9
  $region8: #{resnet_forward.21} parent=0 // pred_region
    _
  $region9: #{resnet_forward.21} parent=0 // pred_fallthru
    _
  // Predicated region
  $region10: #{resnet_forward.21} parent=0 // pred_check
    _
  $region11: #{resnet_forward.21} parent=0 // pred_check_branch
    %13 = sbr.rel (0) target = $region13
  $region12: #{resnet_forward.21} parent=0 // pred_region
    _
  $region13: #{resnet_forward.21} parent=0 // pred_fallthru
    _
  %v15 = vld [vmem:[%s0] sm:$0xf]
  %v16 = vld [vmem:[%s1] sm:$0xf]
  %v17 = vld [vmem:[%s1 + $0x4] sm:$0xf]
  %v18 = vld [vmem:[%s2] sm:$0x1]
  %v20 = vlaneseq
  %v21 = vshrl.u32 %v20, 7
  %v22 = vsub.s32 0, %v21
  %v23 = vrot.slane %v18, %v22
  %v27 = vunpack.c.l.b16 %v16
  %v28 = vunpack.c.l.b16 %v17
  %v29 = vpack.c.b16 %v28, %v27
  %vm31 = vcmask 130048
  %v33 = vsel %vm31, %v15, 0
  %35 = vmatprep.subr.bf16.mxu0 0
  %36 = vmatpush1.bf16.msra.mxu0 0
  %37 = vmatprep.subr.bf16.mxu0 0
  %38 = vmatpush1.bf16.msra.mxu0 0
  %39 = vmatprep.subr.bf16.mxu0 0
  %40 = vmatpush1.bf16.msra.mxu0 0
  %41 = vmatprep.subr.bf16.mxu0 0
  %42 = vmatpush1.bf16.msra.mxu0 0
  %43 = vmatprep.subr.bf16.mxu0 0
  %44 = vmatpush1.bf16.msra.mxu0 0
  %45 = vmatprep.subr.bf16.mxu0 0
  %46 = vmatpush1.bf16.msra.mxu0 0
  %47 = vmatprep.subr.bf16.mxu0 0
  %48 = vmatpush1.bf16.msra.mxu0 0
  %49 = vmatprep.subr.bf16.mxu0 0
  %50 = vmatpush1.bf16.msra.mxu0 %v29
  %51 = vmatprep.subr.bf16.mxu0 0
  %52 = vmatpush2.bf16.msra.mxu0 0
  %53 = vmatprep.subr.bf16.mxu0 0
  %54 = vmatpush2.bf16.msra.mxu0 0
  %55 = vmatprep.subr.bf16.mxu0 0
  %56 = vmatpush2.bf16.msra.mxu0 0
  %57 = vmatprep.subr.bf16.mxu0 0
  %58 = vmatpush2.bf16.msra.mxu0 0
  %59 = vmatprep.subr.bf16.mxu0 0
  %60 = vmatpush2.bf16.msra.mxu0 0
  %61 = vmatprep.subr.bf16.mxu0 0
  %62 = vmatpush2.bf16.msra.mxu0 0
  %63 = vmatprep.subr.bf16.mxu0 0
  %64 = vmatpush2.bf16.msra.mxu0 0
  %65 = vmatprep.subr.bf16.mxu0 0
  %66 = vmatpush2.bf16.msra.mxu0 0
  %67 = vmatprep.mubr.bf16.mxu0 0
  %68 = vmatmul.mubr.bf16.gmra.mxu0 %v33
  %v69 = vpop.f32.mrf.mxu0
  %v70 = vadd.f32 %v23, %v69
  %v71 = vpop.f32.mrf.mxu0
  %v72 = vpop.f32.mrf.mxu0
  %v73 = vpop.f32.mrf.mxu0
  %74 = vdwg.mxu0
  %v75 = vpack.c.bf16 %v70, %v70
  %76 = vst [vmem:[%s3] sm:$0xf] %v75
  // Predicated region
  $region14: #{resnet_forward.21} parent=0 // pred_check
    _
  $region15: #{resnet_forward.21} parent=0 // pred_check_branch
    %78 = sbr.rel (0) target = $region17
  $region16: #{resnet_forward.21} parent=0 // pred_region
    _
  $region17: #{resnet_forward.21} parent=0 // pred_fallthru
    _
  // Predicated region
  $region18: #{resnet_forward.21} parent=0 // pred_check
    _
  $region19: #{resnet_forward.21} parent=0 // pred_check_branch
    %80 = sbr.rel (0) target = $region21
  $region20: #{resnet_forward.21} parent=0 // pred_region
    _
  $region21: #{resnet_forward.21} parent=0 // pred_fallthru
    _

// kernel: resnet_forward.22
$region0: #{resnet_forward.22}
  #allocation0 [shape = 'u32[]', space=smem, size = 0x4, offset = 0x4, fixed_abs, tag = 'smem constant byte address 0x4 - core index']
  #allocation1 [shape = 'u32[144,128]{1,0:T(1,128)}', space=vmem, size = 0x12000, scoped, tag = 'internal scratch']
  %s0 = inlined_call_operand.vmem [shape: bf16[8,288], index: 0, kind: input, shape index: {}]
  %s1 = inlined_call_operand.vmem [shape: bf16[288,128], index: 1, kind: input, shape index: {}]
  %s2 = inlined_call_operand.vmem [shape: f32[1,128], index: 2, kind: input, shape index: {}]
  %s3 = inlined_call_operand.vmem [shape: bf16[8,128], index: 3, kind: input, shape index: {}]
  %s4 = inlined_call_operand.vmem [shape: bf16[8,128], index: 4, kind: output, shape index: {}]
  %s5 = sld [smem:[#allocation0]]
  $region26: #{resnet_forward.22} parent=0
    _
  %s7 = ssub.s32 1, %s5
  %s8 = scalar_select 0, %s7, %s5
  // Predicated region
  $region2: #{resnet_forward.22} parent=0 // pred_check
    _
  $region3: #{resnet_forward.22} parent=0 // pred_check_branch
    %10 = sbr.rel (0) target = $region5
  $region4: #{resnet_forward.22} parent=0 // pred_region
    _
  $region5: #{resnet_forward.22} parent=0 // pred_fallthru
    _
  // Predicated region
  $region6: #{resnet_forward.22} parent=0 // pred_check
    _
  $region7: #{resnet_forward.22} parent=0 // pred_check_branch
    %12 = sbr.rel (0) target = $region9
  $region8: #{resnet_forward.22} parent=0 // pred_region
    _
  $region9: #{resnet_forward.22} parent=0 // pred_fallthru
    _
  // Predicated region
  $region10: #{resnet_forward.22} parent=0 // pred_check
    _
  $region11: #{resnet_forward.22} parent=0 // pred_check_branch
    %14 = sbr.rel (0) target = $region13
  $region12: #{resnet_forward.22} parent=0 // pred_region
    _
  $region13: #{resnet_forward.22} parent=0 // pred_fallthru
    _
  // Predicated region
  $region14: #{resnet_forward.22} parent=0 // pred_check
    _
  $region15: #{resnet_forward.22} parent=0 // pred_check_branch
    %16 = sbr.rel (0) target = $region17
  $region16: #{resnet_forward.22} parent=0 // pred_region
    _
  $region17: #{resnet_forward.22} parent=0 // pred_fallthru
    _
  %v18 = vld [vmem:[%s0] sm:$0xff]
  %v19 = vld [vmem:[%s0 + $0x8] sm:$0xf]
  %v20 = vld [vmem:[%s1] sm:$0xf]
  %v21 = vld [vmem:[%s1 + $0x4] sm:$0xf]
  %v22 = vld [vmem:[%s1 + $0x8] sm:$0xf]
  %v23 = vld [vmem:[%s1 + $0xc] sm:$0xf]
  %v24 = vld [vmem:[%s1 + $0x10] sm:$0xf]
  %v25 = vld [vmem:[%s1 + $0x14] sm:$0xf]
  %v26 = vld [vmem:[%s1 + $0x18] sm:$0xf]
  %v27 = vld [vmem:[%s1 + $0x1c] sm:$0xf]
  %v28 = vld [vmem:[%s1 + $0x20] sm:$0xf]
  %v29 = vld [vmem:[%s1 + $0x24] sm:$0xf]
  %v30 = vld [vmem:[%s1 + $0x28] sm:$0xf]
  %v31 = vld [vmem:[%s1 + $0x2c] sm:$0xf]
  %v32 = vld [vmem:[%s1 + $0x30] sm:$0xf]
  %v33 = vld [vmem:[%s1 + $0x34] sm:$0xf]
  %v34 = vld [vmem:[%s1 + $0x38] sm:$0xf]
  %v35 = vld [vmem:[%s1 + $0x3c] sm:$0xf]
  %v36 = vld [vmem:[%s1 + $0x40] sm:$0xf]
  %v37 = vld [vmem:[%s1 + $0x44] sm:$0xf]
  %v38 = vld [vmem:[%s1 + $0x48] sm:$0xf]
  %v39 = vld [vmem:[%s1 + $0x4c] sm:$0xf]
  %v40 = vld [vmem:[%s1 + $0x50] sm:$0xf]
  %v41 = vld [vmem:[%s1 + $0x54] sm:$0xf]
  %v42 = vld [vmem:[%s1 + $0x58] sm:$0xf]
  %v43 = vld [vmem:[%s1 + $0x5c] sm:$0xf]
  %v44 = vld [vmem:[%s1 + $0x60] sm:$0xf]
  %v45 = vld [vmem:[%s1 + $0x64] sm:$0xf]
  %v46 = vld [vmem:[%s1 + $0x68] sm:$0xf]
  %v47 = vld [vmem:[%s1 + $0x6c] sm:$0xf]
  %v48 = vld [vmem:[%s1 + $0x70] sm:$0xf]
  %v49 = vld [vmem:[%s1 + $0x74] sm:$0xf]
  %v50 = vld [vmem:[%s1 + $0x78] sm:$0xf]
  %v51 = vld [vmem:[%s1 + $0x7c] sm:$0xf]
  %v52 = vld [vmem:[%s1 + $0x80] sm:$0xf]
  %v53 = vld [vmem:[%s1 + $0x84] sm:$0xf]
  %v54 = vld [vmem:[%s1 + $0x88] sm:$0xf]
  %v55 = vld [vmem:[%s1 + $0x8c] sm:$0xf]
  %v56 = vld [vmem:[%s2] sm:$0x1]
  %v58 = vlaneseq
  %v59 = vshrl.u32 %v58, 7
  %v60 = vsub.s32 0, %v59
  %v61 = vrot.slane %v56, %v60
  %v65 = vunpack.c.l.b16 %v18
  %v66 = vunpack.c.h.b16 %v18
  %v67 = vunpack.c.l.b16 %v19
  %v68 = vpack.c.b16 %v65, %v65
  %v69 = vpack.c.b16 %v66, %v66
  %v70 = vpack.c.b16 %v67, %v67
  %v109 = vunpack.c.l.b16 %v20
  %v110 = vunpack.c.l.b16 %v21
  %v111 = vunpack.c.l.b16 %v22
  %v112 = vunpack.c.l.b16 %v23
  %v113 = vunpack.c.l.b16 %v24
  %v114 = vunpack.c.l.b16 %v25
  %v115 = vunpack.c.l.b16 %v26
  %v116 = vunpack.c.l.b16 %v27
  %v117 = vunpack.c.l.b16 %v28
  %v118 = vunpack.c.l.b16 %v29
  %v119 = vunpack.c.l.b16 %v30
  %v120 = vunpack.c.l.b16 %v31
  %v121 = vunpack.c.l.b16 %v32
  %v122 = vunpack.c.l.b16 %v33
  %v123 = vunpack.c.l.b16 %v34
  %v124 = vunpack.c.l.b16 %v35
  %v125 = vunpack.c.l.b16 %v36
  %v126 = vunpack.c.l.b16 %v37
  %v127 = vunpack.c.l.b16 %v38
  %v128 = vunpack.c.l.b16 %v39
  %v129 = vunpack.c.l.b16 %v40
  %v130 = vunpack.c.l.b16 %v41
  %v131 = vunpack.c.l.b16 %v42
  %v132 = vunpack.c.l.b16 %v43
  %v133 = vunpack.c.l.b16 %v44
  %v134 = vunpack.c.l.b16 %v45
  %v135 = vunpack.c.l.b16 %v46
  %v136 = vunpack.c.l.b16 %v47
  %v137 = vunpack.c.l.b16 %v48
  %v138 = vunpack.c.l.b16 %v49
  %v139 = vunpack.c.l.b16 %v50
  %v140 = vunpack.c.l.b16 %v51
  %v141 = vunpack.c.l.b16 %v52
  %v142 = vunpack.c.l.b16 %v53
  %v143 = vunpack.c.l.b16 %v54
  %v144 = vunpack.c.l.b16 %v55
  %v145 = vpack.c.b16 %v110, %v109
  %v146 = vpack.c.b16 %v112, %v111
  %v147 = vpack.c.b16 %v114, %v113
  %v148 = vpack.c.b16 %v116, %v115
  %v149 = vpack.c.b16 %v118, %v117
  %v150 = vpack.c.b16 %v120, %v119
  %v151 = vpack.c.b16 %v122, %v121
  %v152 = vpack.c.b16 %v124, %v123
  %v153 = vpack.c.b16 %v126, %v125
  %v154 = vpack.c.b16 %v128, %v127
  %v155 = vpack.c.b16 %v130, %v129
  %v156 = vpack.c.b16 %v132, %v131
  %v157 = vpack.c.b16 %v134, %v133
  %v158 = vpack.c.b16 %v136, %v135
  %v159 = vpack.c.b16 %v138, %v137
  %v160 = vpack.c.b16 %v140, %v139
  %v161 = vpack.c.b16 %v142, %v141
  %v162 = vpack.c.b16 %v144, %v143
  %vm181 = vcmask 261120
  %v183 = vsel %vm181, %v70, 0
  %185 = vmatprep.subr.bf16.mxu0 0
  %186 = vmatpush1.bf16.msra.mxu0 %v152
  %187 = vmatprep.subr.bf16.mxu0 0
  %188 = vmatpush1.bf16.msra.mxu0 %v151
  %189 = vmatprep.subr.bf16.mxu0 0
  %190 = vmatpush1.bf16.msra.mxu0 %v150
  %191 = vmatprep.subr.bf16.mxu0 0
  %192 = vmatpush1.bf16.msra.mxu0 %v149
  %193 = vmatprep.subr.bf16.mxu0 0
  %194 = vmatpush1.bf16.msra.mxu0 %v148
  %195 = vmatprep.subr.bf16.mxu0 0
  %196 = vmatpush1.bf16.msra.mxu0 %v147
  %197 = vmatprep.subr.bf16.mxu0 0
  %198 = vmatpush1.bf16.msra.mxu0 %v146
  %199 = vmatprep.subr.bf16.mxu0 0
  %200 = vmatpush1.bf16.msra.mxu0 %v145
  %201 = vmatprep.subr.bf16.mxu0 0
  %202 = vmatpush2.bf16.msra.mxu0 %v160
  %203 = vmatprep.subr.bf16.mxu0 0
  %204 = vmatpush2.bf16.msra.mxu0 %v159
  %205 = vmatprep.subr.bf16.mxu0 0
  %206 = vmatpush2.bf16.msra.mxu0 %v158
  %207 = vmatprep.subr.bf16.mxu0 0
  %208 = vmatpush2.bf16.msra.mxu0 %v157
  %209 = vmatprep.subr.bf16.mxu0 0
  %210 = vmatpush2.bf16.msra.mxu0 %v156
  %211 = vmatprep.subr.bf16.mxu0 0
  %212 = vmatpush2.bf16.msra.mxu0 %v155
  %213 = vmatprep.subr.bf16.mxu0 0
  %214 = vmatpush2.bf16.msra.mxu0 %v154
  %215 = vmatprep.subr.bf16.mxu0 0
  %216 = vmatpush2.bf16.msra.mxu0 %v153
  %217 = vmatprep.mubr.bf16.mxu0 %v69
  %218 = vmatmul.mubr.bf16.gmra.mxu0 %v68
  %v219 = vpop.f32.mrf.mxu0
  %v220 = vadd.f32 %v61, %v219
  %v221 = vpop.f32.mrf.mxu0
  %v222 = vpop.f32.mrf.mxu0
  %v223 = vpop.f32.mrf.mxu0
  %224 = vdwg.mxu0
  %225 = vmatprep.subr.bf16.mxu0 0
  %226 = vmatpush1.bf16.msra.mxu0 0
  %227 = vmatprep.subr.bf16.mxu0 0
  %228 = vmatpush1.bf16.msra.mxu0 0
  %229 = vmatprep.subr.bf16.mxu0 0
  %230 = vmatpush1.bf16.msra.mxu0 0
  %231 = vmatprep.subr.bf16.mxu0 0
  %232 = vmatpush1.bf16.msra.mxu0 0
  %233 = vmatprep.subr.bf16.mxu0 0
  %234 = vmatpush1.bf16.msra.mxu0 0
  %235 = vmatprep.subr.bf16.mxu0 0
  %236 = vmatpush1.bf16.msra.mxu0 0
  %237 = vmatprep.subr.bf16.mxu0 0
  %238 = vmatpush1.bf16.msra.mxu0 %v162
  %239 = vmatprep.subr.bf16.mxu0 0
  %240 = vmatpush1.bf16.msra.mxu0 %v161
  %241 = vmatprep.subr.bf16.mxu0 0
  %242 = vmatpush2.bf16.msra.mxu0 0
  %243 = vmatprep.subr.bf16.mxu0 0
  %244 = vmatpush2.bf16.msra.mxu0 0
  %245 = vmatprep.subr.bf16.mxu0 0
  %246 = vmatpush2.bf16.msra.mxu0 0
  %247 = vmatprep.subr.bf16.mxu0 0
  %248 = vmatpush2.bf16.msra.mxu0 0
  %249 = vmatprep.subr.bf16.mxu0 0
  %250 = vmatpush2.bf16.msra.mxu0 0
  %251 = vmatprep.subr.bf16.mxu0 0
  %252 = vmatpush2.bf16.msra.mxu0 0
  %253 = vmatprep.subr.bf16.mxu0 0
  %254 = vmatpush2.bf16.msra.mxu0 0
  %255 = vmatprep.subr.bf16.mxu0 0
  %256 = vmatpush2.bf16.msra.mxu0 0
  %257 = vmatprep.mubr.bf16.mxu0 0
  %258 = vmatmul.mubr.bf16.gmra.mxu0 %v183
  %v259 = vpop.f32.mrf.mxu0
  %v260 = vadd.f32 %v220, %v259
  %v261 = vpop.f32.mrf.mxu0
  %v262 = vpop.f32.mrf.mxu0
  %v263 = vpop.f32.mrf.mxu0
  %264 = vdwg.mxu0
  %v265 = vld [vmem:[%s3] sm:$0xf]
  %v266 = vunpack.c.l.bf16 %v265
  %v267 = vadd.f32 %v260, %v266
  %v268 = vmax.f32 %v267, 0.0
  %v269 = vpack.c.bf16 %v268, %v268
  %270 = vst [vmem:[%s4] sm:$0xf] %v269
  // Predicated region
  $region18: #{resnet_forward.22} parent=0 // pred_check
    _
  $region19: #{resnet_forward.22} parent=0 // pred_check_branch
    %272 = sbr.rel (0) target = $region21
  $region20: #{resnet_forward.22} parent=0 // pred_region
    _
  $region21: #{resnet_forward.22} parent=0 // pred_fallthru
    _
  // Predicated region
  $region22: #{resnet_forward.22} parent=0 // pred_check
    _
  $region23: #{resnet_forward.22} parent=0 // pred_check_branch
    %274 = sbr.rel (0) target = $region25
  $region24: #{resnet_forward.22} parent=0 // pred_region
    _
  $region25: #{resnet_forward.22} parent=0 // pred_fallthru
    _

// kernel: resnet_forward.23
$region0: #{resnet_forward.23}
  #allocation0 [shape = 'u32[]', space=smem, size = 0x4, offset = 0x4, fixed_abs, tag = 'smem constant byte address 0x4 - core index']
  #allocation1 [shape = 'u32[144,128]{1,0:T(1,128)}', space=vmem, size = 0x12000, scoped, tag = 'internal scratch']
  %s0 = inlined_call_operand.vmem [shape: bf16[8,288], index: 0, kind: input, shape index: {}]
  %s1 = inlined_call_operand.vmem [shape: bf16[288,128], index: 1, kind: input, shape index: {}]
  %s2 = inlined_call_operand.vmem [shape: f32[1,128], index: 2, kind: input, shape index: {}]
  %s3 = inlined_call_operand.vmem [shape: bf16[8,128], index: 3, kind: output, shape index: {}]
  %s4 = sld [smem:[#allocation0]]
  $region22: #{resnet_forward.23} parent=0
    _
  %s6 = ssub.s32 1, %s4
  %s7 = scalar_select 0, %s6, %s4
  // Predicated region
  $region2: #{resnet_forward.23} parent=0 // pred_check
    _
  $region3: #{resnet_forward.23} parent=0 // pred_check_branch
    %9 = sbr.rel (0) target = $region5
  $region4: #{resnet_forward.23} parent=0 // pred_region
    _
  $region5: #{resnet_forward.23} parent=0 // pred_fallthru
    _
  // Predicated region
  $region6: #{resnet_forward.23} parent=0 // pred_check
    _
  $region7: #{resnet_forward.23} parent=0 // pred_check_branch
    %11 = sbr.rel (0) target = $region9
  $region8: #{resnet_forward.23} parent=0 // pred_region
    _
  $region9: #{resnet_forward.23} parent=0 // pred_fallthru
    _
  // Predicated region
  $region10: #{resnet_forward.23} parent=0 // pred_check
    _
  $region11: #{resnet_forward.23} parent=0 // pred_check_branch
    %13 = sbr.rel (0) target = $region13
  $region12: #{resnet_forward.23} parent=0 // pred_region
    _
  $region13: #{resnet_forward.23} parent=0 // pred_fallthru
    _
  %v15 = vld [vmem:[%s0] sm:$0xff]
  %v16 = vld [vmem:[%s0 + $0x8] sm:$0xf]
  %v17 = vld [vmem:[%s1] sm:$0xf]
  %v18 = vld [vmem:[%s1 + $0x4] sm:$0xf]
  %v19 = vld [vmem:[%s1 + $0x8] sm:$0xf]
  %v20 = vld [vmem:[%s1 + $0xc] sm:$0xf]
  %v21 = vld [vmem:[%s1 + $0x10] sm:$0xf]
  %v22 = vld [vmem:[%s1 + $0x14] sm:$0xf]
  %v23 = vld [vmem:[%s1 + $0x18] sm:$0xf]
  %v24 = vld [vmem:[%s1 + $0x1c] sm:$0xf]
  %v25 = vld [vmem:[%s1 + $0x20] sm:$0xf]
  %v26 = vld [vmem:[%s1 + $0x24] sm:$0xf]
  %v27 = vld [vmem:[%s1 + $0x28] sm:$0xf]
  %v28 = vld [vmem:[%s1 + $0x2c] sm:$0xf]
  %v29 = vld [vmem:[%s1 + $0x30] sm:$0xf]
  %v30 = vld [vmem:[%s1 + $0x34] sm:$0xf]
  %v31 = vld [vmem:[%s1 + $0x38] sm:$0xf]
  %v32 = vld [vmem:[%s1 + $0x3c] sm:$0xf]
  %v33 = vld [vmem:[%s1 + $0x40] sm:$0xf]
  %v34 = vld [vmem:[%s1 + $0x44] sm:$0xf]
  %v35 = vld [vmem:[%s1 + $0x48] sm:$0xf]
  %v36 = vld [vmem:[%s1 + $0x4c] sm:$0xf]
  %v37 = vld [vmem:[%s1 + $0x50] sm:$0xf]
  %v38 = vld [vmem:[%s1 + $0x54] sm:$0xf]
  %v39 = vld [vmem:[%s1 + $0x58] sm:$0xf]
  %v40 = vld [vmem:[%s1 + $0x5c] sm:$0xf]
  %v41 = vld [vmem:[%s1 + $0x60] sm:$0xf]
  %v42 = vld [vmem:[%s1 + $0x64] sm:$0xf]
  %v43 = vld [vmem:[%s1 + $0x68] sm:$0xf]
  %v44 = vld [vmem:[%s1 + $0x6c] sm:$0xf]
  %v45 = vld [vmem:[%s1 + $0x70] sm:$0xf]
  %v46 = vld [vmem:[%s1 + $0x74] sm:$0xf]
  %v47 = vld [vmem:[%s1 + $0x78] sm:$0xf]
  %v48 = vld [vmem:[%s1 + $0x7c] sm:$0xf]
  %v49 = vld [vmem:[%s1 + $0x80] sm:$0xf]
  %v50 = vld [vmem:[%s1 + $0x84] sm:$0xf]
  %v51 = vld [vmem:[%s1 + $0x88] sm:$0xf]
  %v52 = vld [vmem:[%s1 + $0x8c] sm:$0xf]
  %v53 = vld [vmem:[%s2] sm:$0x1]
  %v55 = vlaneseq
  %v56 = vshrl.u32 %v55, 7
  %v57 = vsub.s32 0, %v56
  %v58 = vrot.slane %v53, %v57
  %v62 = vunpack.c.l.b16 %v15
  %v63 = vunpack.c.h.b16 %v15
  %v64 = vunpack.c.l.b16 %v16
  %v65 = vpack.c.b16 %v62, %v62
  %v66 = vpack.c.b16 %v63, %v63
  %v67 = vpack.c.b16 %v64, %v64
  %v106 = vunpack.c.l.b16 %v17
  %v107 = vunpack.c.l.b16 %v18
  %v108 = vunpack.c.l.b16 %v19
  %v109 = vunpack.c.l.b16 %v20
  %v110 = vunpack.c.l.b16 %v21
  %v111 = vunpack.c.l.b16 %v22
  %v112 = vunpack.c.l.b16 %v23
  %v113 = vunpack.c.l.b16 %v24
  %v114 = vunpack.c.l.b16 %v25
  %v115 = vunpack.c.l.b16 %v26
  %v116 = vunpack.c.l.b16 %v27
  %v117 = vunpack.c.l.b16 %v28
  %v118 = vunpack.c.l.b16 %v29
  %v119 = vunpack.c.l.b16 %v30
  %v120 = vunpack.c.l.b16 %v31
  %v121 = vunpack.c.l.b16 %v32
  %v122 = vunpack.c.l.b16 %v33
  %v123 = vunpack.c.l.b16 %v34
  %v124 = vunpack.c.l.b16 %v35
  %v125 = vunpack.c.l.b16 %v36
  %v126 = vunpack.c.l.b16 %v37
  %v127 = vunpack.c.l.b16 %v38
  %v128 = vunpack.c.l.b16 %v39
  %v129 = vunpack.c.l.b16 %v40
  %v130 = vunpack.c.l.b16 %v41
  %v131 = vunpack.c.l.b16 %v42
  %v132 = vunpack.c.l.b16 %v43
  %v133 = vunpack.c.l.b16 %v44
  %v134 = vunpack.c.l.b16 %v45
  %v135 = vunpack.c.l.b16 %v46
  %v136 = vunpack.c.l.b16 %v47
  %v137 = vunpack.c.l.b16 %v48
  %v138 = vunpack.c.l.b16 %v49
  %v139 = vunpack.c.l.b16 %v50
  %v140 = vunpack.c.l.b16 %v51
  %v141 = vunpack.c.l.b16 %v52
  %v142 = vpack.c.b16 %v107, %v106
  %v143 = vpack.c.b16 %v109, %v108
  %v144 = vpack.c.b16 %v111, %v110
  %v145 = vpack.c.b16 %v113, %v112
  %v146 = vpack.c.b16 %v115, %v114
  %v147 = vpack.c.b16 %v117, %v116
  %v148 = vpack.c.b16 %v119, %v118
  %v149 = vpack.c.b16 %v121, %v120
  %v150 = vpack.c.b16 %v123, %v122
  %v151 = vpack.c.b16 %v125, %v124
  %v152 = vpack.c.b16 %v127, %v126
  %v153 = vpack.c.b16 %v129, %v128
  %v154 = vpack.c.b16 %v131, %v130
  %v155 = vpack.c.b16 %v133, %v132
  %v156 = vpack.c.b16 %v135, %v134
  %v157 = vpack.c.b16 %v137, %v136
  %v158 = vpack.c.b16 %v139, %v138
  %v159 = vpack.c.b16 %v141, %v140
  %vm178 = vcmask 261120
  %v180 = vsel %vm178, %v67, 0
  %182 = vmatprep.subr.bf16.mxu0 0
  %183 = vmatpush1.bf16.msra.mxu0 %v149
  %184 = vmatprep.subr.bf16.mxu0 0
  %185 = vmatpush1.bf16.msra.mxu0 %v148
  %186 = vmatprep.subr.bf16.mxu0 0
  %187 = vmatpush1.bf16.msra.mxu0 %v147
  %188 = vmatprep.subr.bf16.mxu0 0
  %189 = vmatpush1.bf16.msra.mxu0 %v146
  %190 = vmatprep.subr.bf16.mxu0 0
  %191 = vmatpush1.bf16.msra.mxu0 %v145
  %192 = vmatprep.subr.bf16.mxu0 0
  %193 = vmatpush1.bf16.msra.mxu0 %v144
  %194 = vmatprep.subr.bf16.mxu0 0
  %195 = vmatpush1.bf16.msra.mxu0 %v143
  %196 = vmatprep.subr.bf16.mxu0 0
  %197 = vmatpush1.bf16.msra.mxu0 %v142
  %198 = vmatprep.subr.bf16.mxu0 0
  %199 = vmatpush2.bf16.msra.mxu0 %v157
  %200 = vmatprep.subr.bf16.mxu0 0
  %201 = vmatpush2.bf16.msra.mxu0 %v156
  %202 = vmatprep.subr.bf16.mxu0 0
  %203 = vmatpush2.bf16.msra.mxu0 %v155
  %204 = vmatprep.subr.bf16.mxu0 0
  %205 = vmatpush2.bf16.msra.mxu0 %v154
  %206 = vmatprep.subr.bf16.mxu0 0
  %207 = vmatpush2.bf16.msra.mxu0 %v153
  %208 = vmatprep.subr.bf16.mxu0 0
  %209 = vmatpush2.bf16.msra.mxu0 %v152
  %210 = vmatprep.subr.bf16.mxu0 0
  %211 = vmatpush2.bf16.msra.mxu0 %v151
  %212 = vmatprep.subr.bf16.mxu0 0
  %213 = vmatpush2.bf16.msra.mxu0 %v150
  %214 = vmatprep.mubr.bf16.mxu0 %v66
  %215 = vmatmul.mubr.bf16.gmra.mxu0 %v65
  %v216 = vpop.f32.mrf.mxu0
  %v217 = vadd.f32 %v58, %v216
  %v218 = vpop.f32.mrf.mxu0
  %v219 = vpop.f32.mrf.mxu0
  %v220 = vpop.f32.mrf.mxu0
  %221 = vdwg.mxu0
  %222 = vmatprep.subr.bf16.mxu0 0
  %223 = vmatpush1.bf16.msra.mxu0 0
  %224 = vmatprep.subr.bf16.mxu0 0
  %225 = vmatpush1.bf16.msra.mxu0 0
  %226 = vmatprep.subr.bf16.mxu0 0
  %227 = vmatpush1.bf16.msra.mxu0 0
  %228 = vmatprep.subr.bf16.mxu0 0
  %229 = vmatpush1.bf16.msra.mxu0 0
  %230 = vmatprep.subr.bf16.mxu0 0
  %231 = vmatpush1.bf16.msra.mxu0 0
  %232 = vmatprep.subr.bf16.mxu0 0
  %233 = vmatpush1.bf16.msra.mxu0 0
  %234 = vmatprep.subr.bf16.mxu0 0
  %235 = vmatpush1.bf16.msra.mxu0 %v159
  %236 = vmatprep.subr.bf16.mxu0 0
  %237 = vmatpush1.bf16.msra.mxu0 %v158
  %238 = vmatprep.subr.bf16.mxu0 0
  %239 = vmatpush2.bf16.msra.mxu0 0
  %240 = vmatprep.subr.bf16.mxu0 0
  %241 = vmatpush2.bf16.msra.mxu0 0
  %242 = vmatprep.subr.bf16.mxu0 0
  %243 = vmatpush2.bf16.msra.mxu0 0
  %244 = vmatprep.subr.bf16.mxu0 0
  %245 = vmatpush2.bf16.msra.mxu0 0
  %246 = vmatprep.subr.bf16.mxu0 0
  %247 = vmatpush2.bf16.msra.mxu0 0
  %248 = vmatprep.subr.bf16.mxu0 0
  %249 = vmatpush2.bf16.msra.mxu0 0
  %250 = vmatprep.subr.bf16.mxu0 0
  %251 = vmatpush2.bf16.msra.mxu0 0
  %252 = vmatprep.subr.bf16.mxu0 0
  %253 = vmatpush2.bf16.msra.mxu0 0
  %254 = vmatprep.mubr.bf16.mxu0 0
  %255 = vmatmul.mubr.bf16.gmra.mxu0 %v180
  %v256 = vpop.f32.mrf.mxu0
  %v257 = vadd.f32 %v217, %v256
  %v258 = vpop.f32.mrf.mxu0
  %v259 = vpop.f32.mrf.mxu0
  %v260 = vpop.f32.mrf.mxu0
  %261 = vdwg.mxu0
  %v262 = vmax.f32 %v257, 0.0
  %v263 = vpack.c.bf16 %v262, %v262
  %264 = vst [vmem:[%s3] sm:$0xf] %v263
  // Predicated region
  $region14: #{resnet_forward.23} parent=0 // pred_check
    _
  $region15: #{resnet_forward.23} parent=0 // pred_check_branch
    %266 = sbr.rel (0) target = $region17
  $region16: #{resnet_forward.23} parent=0 // pred_region
    _
  $region17: #{resnet_forward.23} parent=0 // pred_fallthru
    _
  // Predicated region
  $region18: #{resnet_forward.23} parent=0 // pred_check
    _
  $region19: #{resnet_forward.23} parent=0 // pred_check_branch
    %268 = sbr.rel (0) target = $region21
  $region20: #{resnet_forward.23} parent=0 // pred_region
    _
  $region21: #{resnet_forward.23} parent=0 // pred_fallthru
    _

// kernel: resnet_forward.24
$region0: #{resnet_forward.24}
  #allocation0 [shape = 'u32[]', space=smem, size = 0x4, offset = 0x4, fixed_abs, tag = 'smem constant byte address 0x4 - core index']
  #allocation1 [shape = 'u32[144,128]{1,0:T(1,128)}', space=vmem, size = 0x12000, scoped, tag = 'internal scratch']
  %s0 = inlined_call_operand.vmem [shape: bf16[8,32], index: 0, kind: input, shape index: {}]
  %s1 = inlined_call_operand.vmem [shape: bf16[32,128], index: 1, kind: input, shape index: {}]
  %s2 = inlined_call_operand.vmem [shape: f32[1,128], index: 2, kind: input, shape index: {}]
  %s3 = inlined_call_operand.vmem [shape: bf16[8,128], index: 3, kind: output, shape index: {}]
  %s4 = sld [smem:[#allocation0]]
  $region22: #{resnet_forward.24} parent=0
    _
  %s6 = ssub.s32 1, %s4
  %s7 = scalar_select 0, %s6, %s4
  // Predicated region
  $region2: #{resnet_forward.24} parent=0 // pred_check
    _
  $region3: #{resnet_forward.24} parent=0 // pred_check_branch
    %9 = sbr.rel (0) target = $region5
  $region4: #{resnet_forward.24} parent=0 // pred_region
    _
  $region5: #{resnet_forward.24} parent=0 // pred_fallthru
    _
  // Predicated region
  $region6: #{resnet_forward.24} parent=0 // pred_check
    _
  $region7: #{resnet_forward.24} parent=0 // pred_check_branch
    %11 = sbr.rel (0) target = $region9
  $region8: #{resnet_forward.24} parent=0 // pred_region
    _
  $region9: #{resnet_forward.24} parent=0 // pred_fallthru
    _
  // Predicated region
  $region10: #{resnet_forward.24} parent=0 // pred_check
    _
  $region11: #{resnet_forward.24} parent=0 // pred_check_branch
    %13 = sbr.rel (0) target = $region13
  $region12: #{resnet_forward.24} parent=0 // pred_region
    _
  $region13: #{resnet_forward.24} parent=0 // pred_fallthru
    _
  %v15 = vld [vmem:[%s0] sm:$0xf]
  %v16 = vld [vmem:[%s1] sm:$0xf]
  %v17 = vld [vmem:[%s1 + $0x4] sm:$0xf]
  %v18 = vld [vmem:[%s1 + $0x8] sm:$0xf]
  %v19 = vld [vmem:[%s1 + $0xc] sm:$0xf]
  %v20 = vld [vmem:[%s2] sm:$0x1]
  %v22 = vlaneseq
  %v23 = vshrl.u32 %v22, 7
  %v24 = vsub.s32 0, %v23
  %v25 = vrot.slane %v20, %v24
  %v31 = vunpack.c.l.b16 %v16
  %v32 = vunpack.c.l.b16 %v17
  %v33 = vunpack.c.l.b16 %v18
  %v34 = vunpack.c.l.b16 %v19
  %v35 = vpack.c.b16 %v32, %v31
  %v36 = vpack.c.b16 %v34, %v33
  %vm39 = vcmask 261120
  %v41 = vsel %vm39, %v15, 0
  %43 = vmatprep.subr.bf16.mxu0 0
  %44 = vmatpush1.bf16.msra.mxu0 0
  %45 = vmatprep.subr.bf16.mxu0 0
  %46 = vmatpush1.bf16.msra.mxu0 0
  %47 = vmatprep.subr.bf16.mxu0 0
  %48 = vmatpush1.bf16.msra.mxu0 0
  %49 = vmatprep.subr.bf16.mxu0 0
  %50 = vmatpush1.bf16.msra.mxu0 0
  %51 = vmatprep.subr.bf16.mxu0 0
  %52 = vmatpush1.bf16.msra.mxu0 0
  %53 = vmatprep.subr.bf16.mxu0 0
  %54 = vmatpush1.bf16.msra.mxu0 0
  %55 = vmatprep.subr.bf16.mxu0 0
  %56 = vmatpush1.bf16.msra.mxu0 %v36
  %57 = vmatprep.subr.bf16.mxu0 0
  %58 = vmatpush1.bf16.msra.mxu0 %v35
  %59 = vmatprep.subr.bf16.mxu0 0
  %60 = vmatpush2.bf16.msra.mxu0 0
  %61 = vmatprep.subr.bf16.mxu0 0
  %62 = vmatpush2.bf16.msra.mxu0 0
  %63 = vmatprep.subr.bf16.mxu0 0
  %64 = vmatpush2.bf16.msra.mxu0 0
  %65 = vmatprep.subr.bf16.mxu0 0
  %66 = vmatpush2.bf16.msra.mxu0 0
  %67 = vmatprep.subr.bf16.mxu0 0
  %68 = vmatpush2.bf16.msra.mxu0 0
  %69 = vmatprep.subr.bf16.mxu0 0
  %70 = vmatpush2.bf16.msra.mxu0 0
  %71 = vmatprep.subr.bf16.mxu0 0
  %72 = vmatpush2.bf16.msra.mxu0 0
  %73 = vmatprep.subr.bf16.mxu0 0
  %74 = vmatpush2.bf16.msra.mxu0 0
  %75 = vmatprep.mubr.bf16.mxu0 0
  %76 = vmatmul.mubr.bf16.gmra.mxu0 %v41
  %v77 = vpop.f32.mrf.mxu0
  %v78 = vadd.f32 %v25, %v77
  %v79 = vpop.f32.mrf.mxu0
  %v80 = vpop.f32.mrf.mxu0
  %v81 = vpop.f32.mrf.mxu0
  %82 = vdwg.mxu0
  %v83 = vpack.c.bf16 %v78, %v78
  %84 = vst [vmem:[%s3] sm:$0xf] %v83
  // Predicated region
  $region14: #{resnet_forward.24} parent=0 // pred_check
    _
  $region15: #{resnet_forward.24} parent=0 // pred_check_branch
    %86 = sbr.rel (0) target = $region17
  $region16: #{resnet_forward.24} parent=0 // pred_region
    _
  $region17: #{resnet_forward.24} parent=0 // pred_fallthru
    _
  // Predicated region
  $region18: #{resnet_forward.24} parent=0 // pred_check
    _
  $region19: #{resnet_forward.24} parent=0 // pred_check_branch
    %88 = sbr.rel (0) target = $region21
  $region20: #{resnet_forward.24} parent=0 // pred_region
    _
  $region21: #{resnet_forward.24} parent=0 // pred_fallthru
    _

// kernel: resnet_forward.25
$region0: #{resnet_forward.25}
  #allocation0 [shape = 'u32[]', space=smem, size = 0x4, offset = 0x4, fixed_abs, tag = 'smem constant byte address 0x4 - core index']
  #allocation1 [shape = 'u32[144,128]{1,0:T(1,128)}', space=vmem, size = 0x12000, scoped, tag = 'internal scratch']
  %s0 = inlined_call_operand.vmem [shape: bf16[8,576], index: 0, kind: input, shape index: {}]
  %s1 = inlined_call_operand.vmem [shape: bf16[576,128], index: 1, kind: input, shape index: {}]
  %s2 = inlined_call_operand.vmem [shape: f32[1,128], index: 2, kind: input, shape index: {}]
  %s3 = inlined_call_operand.vmem [shape: bf16[8,128], index: 3, kind: input, shape index: {}]
  %s4 = inlined_call_operand.vmem [shape: bf16[8,128], index: 4, kind: output, shape index: {}]
  %s5 = sld [smem:[#allocation0]]
  $region26: #{resnet_forward.25} parent=0
    _
  %s7 = ssub.s32 1, %s5
  %s8 = scalar_select 0, %s7, %s5
  // Predicated region
  $region2: #{resnet_forward.25} parent=0 // pred_check
    _
  $region3: #{resnet_forward.25} parent=0 // pred_check_branch
    %10 = sbr.rel (0) target = $region5
  $region4: #{resnet_forward.25} parent=0 // pred_region
    _
  $region5: #{resnet_forward.25} parent=0 // pred_fallthru
    _
  // Predicated region
  $region6: #{resnet_forward.25} parent=0 // pred_check
    _
  $region7: #{resnet_forward.25} parent=0 // pred_check_branch
    %12 = sbr.rel (0) target = $region9
  $region8: #{resnet_forward.25} parent=0 // pred_region
    _
  $region9: #{resnet_forward.25} parent=0 // pred_fallthru
    _
  // Predicated region
  $region10: #{resnet_forward.25} parent=0 // pred_check
    _
  $region11: #{resnet_forward.25} parent=0 // pred_check_branch
    %14 = sbr.rel (0) target = $region13
  $region12: #{resnet_forward.25} parent=0 // pred_region
    _
  $region13: #{resnet_forward.25} parent=0 // pred_fallthru
    _
  // Predicated region
  $region14: #{resnet_forward.25} parent=0 // pred_check
    _
  $region15: #{resnet_forward.25} parent=0 // pred_check_branch
    %16 = sbr.rel (0) target = $region17
  $region16: #{resnet_forward.25} parent=0 // pred_region
    _
  $region17: #{resnet_forward.25} parent=0 // pred_fallthru
    _
  %v18 = vld [vmem:[%s0] sm:$0xff]
  %v19 = vld [vmem:[%s0 + $0x8] sm:$0xff]
  %v20 = vld [vmem:[%s0 + $0x10] sm:$0xf]
  %v21 = vld [vmem:[%s1] sm:$0xf]
  %v22 = vld [vmem:[%s1 + $0x4] sm:$0xf]
  %v23 = vld [vmem:[%s1 + $0x8] sm:$0xf]
  %v24 = vld [vmem:[%s1 + $0xc] sm:$0xf]
  %v25 = vld [vmem:[%s1 + $0x10] sm:$0xf]
  %v26 = vld [vmem:[%s1 + $0x14] sm:$0xf]
  %v27 = vld [vmem:[%s1 + $0x18] sm:$0xf]
  %v28 = vld [vmem:[%s1 + $0x1c] sm:$0xf]
  %v29 = vld [vmem:[%s1 + $0x20] sm:$0xf]
  %v30 = vld [vmem:[%s1 + $0x24] sm:$0xf]
  %v31 = vld [vmem:[%s1 + $0x28] sm:$0xf]
  %v32 = vld [vmem:[%s1 + $0x2c] sm:$0xf]
  %v33 = vld [vmem:[%s1 + $0x30] sm:$0xf]
  %v34 = vld [vmem:[%s1 + $0x34] sm:$0xf]
  %v35 = vld [vmem:[%s1 + $0x38] sm:$0xf]
  %v36 = vld [vmem:[%s1 + $0x3c] sm:$0xf]
  %v37 = vld [vmem:[%s1 + $0x40] sm:$0xf]
  %v38 = vld [vmem:[%s1 + $0x44] sm:$0xf]
  %v39 = vld [vmem:[%s1 + $0x48] sm:$0xf]
  %v40 = vld [vmem:[%s1 + $0x4c] sm:$0xf]
  %v41 = vld [vmem:[%s1 + $0x50] sm:$0xf]
  %v42 = vld [vmem:[%s1 + $0x54] sm:$0xf]
  %v43 = vld [vmem:[%s1 + $0x58] sm:$0xf]
  %v44 = vld [vmem:[%s1 + $0x5c] sm:$0xf]
  %v45 = vld [vmem:[%s1 + $0x60] sm:$0xf]
  %v46 = vld [vmem:[%s1 + $0x64] sm:$0xf]
  %v47 = vld [vmem:[%s1 + $0x68] sm:$0xf]
  %v48 = vld [vmem:[%s1 + $0x6c] sm:$0xf]
  %v49 = vld [vmem:[%s1 + $0x70] sm:$0xf]
  %v50 = vld [vmem:[%s1 + $0x74] sm:$0xf]
  %v51 = vld [vmem:[%s1 + $0x78] sm:$0xf]
  %v52 = vld [vmem:[%s1 + $0x7c] sm:$0xf]
  %v53 = vld [vmem:[%s1 + $0x80] sm:$0xf]
  %v54 = vld [vmem:[%s1 + $0x84] sm:$0xf]
  %v55 = vld [vmem:[%s1 + $0x88] sm:$0xf]
  %v56 = vld [vmem:[%s1 + $0x8c] sm:$0xf]
  %v57 = vld [vmem:[%s1 + $0x90] sm:$0xf]
  %v58 = vld [vmem:[%s1 + $0x94] sm:$0xf]
  %v59 = vld [vmem:[%s1 + $0x98] sm:$0xf]
  %v60 = vld [vmem:[%s1 + $0x9c] sm:$0xf]
  %v61 = vld [vmem:[%s1 + $0xa0] sm:$0xf]
  %v62 = vld [vmem:[%s1 + $0xa4] sm:$0xf]
  %v63 = vld [vmem:[%s1 + $0xa8] sm:$0xf]
  %v64 = vld [vmem:[%s1 + $0xac] sm:$0xf]
  %v65 = vld [vmem:[%s1 + $0xb0] sm:$0xf]
  %v66 = vld [vmem:[%s1 + $0xb4] sm:$0xf]
  %v67 = vld [vmem:[%s1 + $0xb8] sm:$0xf]
  %v68 = vld [vmem:[%s1 + $0xbc] sm:$0xf]
  %v69 = vld [vmem:[%s1 + $0xc0] sm:$0xf]
  %v70 = vld [vmem:[%s1 + $0xc4] sm:$0xf]
  %v71 = vld [vmem:[%s1 + $0xc8] sm:$0xf]
  %v72 = vld [vmem:[%s1 + $0xcc] sm:$0xf]
  %v73 = vld [vmem:[%s1 + $0xd0] sm:$0xf]
  %v74 = vld [vmem:[%s1 + $0xd4] sm:$0xf]
  %v75 = vld [vmem:[%s1 + $0xd8] sm:$0xf]
  %v76 = vld [vmem:[%s1 + $0xdc] sm:$0xf]
  %v77 = vld [vmem:[%s1 + $0xe0] sm:$0xf]
  %v78 = vld [vmem:[%s1 + $0xe4] sm:$0xf]
  %v79 = vld [vmem:[%s1 + $0xe8] sm:$0xf]
  %v80 = vld [vmem:[%s1 + $0xec] sm:$0xf]
  %v81 = vld [vmem:[%s1 + $0xf0] sm:$0xf]
  %v82 = vld [vmem:[%s1 + $0xf4] sm:$0xf]
  %v83 = vld [vmem:[%s1 + $0xf8] sm:$0xf]
  %v84 = vld [vmem:[%s1 + $0xfc] sm:$0xf]
  %v85 = vld [vmem:[%s1 + $0x100] sm:$0xf]
  %v86 = vld [vmem:[%s1 + $0x104] sm:$0xf]
  %v87 = vld [vmem:[%s1 + $0x108] sm:$0xf]
  %v88 = vld [vmem:[%s1 + $0x10c] sm:$0xf]
  %v89 = vld [vmem:[%s1 + $0x110] sm:$0xf]
  %v90 = vld [vmem:[%s1 + $0x114] sm:$0xf]
  %v91 = vld [vmem:[%s1 + $0x118] sm:$0xf]
  %v92 = vld [vmem:[%s1 + $0x11c] sm:$0xf]
  %v93 = vld [vmem:[%s2] sm:$0x1]
  %v95 = vlaneseq
  %v96 = vshrl.u32 %v95, 7
  %v97 = vsub.s32 0, %v96
  %v98 = vrot.slane %v93, %v97
  %v103 = vunpack.c.l.b16 %v18
  %v104 = vunpack.c.h.b16 %v18
  %v105 = vunpack.c.l.b16 %v19
  %v106 = vunpack.c.h.b16 %v19
  %v107 = vunpack.c.l.b16 %v20
  %v108 = vpack.c.b16 %v103, %v103
  %v109 = vpack.c.b16 %v104, %v104
  %v110 = vpack.c.b16 %v105, %v105
  %v111 = vpack.c.b16 %v106, %v106
  %v112 = vpack.c.b16 %v107, %v107
  %v189 = vunpack.c.l.b16 %v21
  %v190 = vunpack.c.l.b16 %v22
  %v191 = vunpack.c.l.b16 %v23
  %v192 = vunpack.c.l.b16 %v24
  %v193 = vunpack.c.l.b16 %v25
  %v194 = vunpack.c.l.b16 %v26
  %v195 = vunpack.c.l.b16 %v27
  %v196 = vunpack.c.l.b16 %v28
  %v197 = vunpack.c.l.b16 %v29
  %v198 = vunpack.c.l.b16 %v30
  %v199 = vunpack.c.l.b16 %v31
  %v200 = vunpack.c.l.b16 %v32
  %v201 = vunpack.c.l.b16 %v33
  %v202 = vunpack.c.l.b16 %v34
  %v203 = vunpack.c.l.b16 %v35
  %v204 = vunpack.c.l.b16 %v36
  %v205 = vunpack.c.l.b16 %v37
  %v206 = vunpack.c.l.b16 %v38
  %v207 = vunpack.c.l.b16 %v39
  %v208 = vunpack.c.l.b16 %v40
  %v209 = vunpack.c.l.b16 %v41
  %v210 = vunpack.c.l.b16 %v42
  %v211 = vunpack.c.l.b16 %v43
  %v212 = vunpack.c.l.b16 %v44
  %v213 = vunpack.c.l.b16 %v45
  %v214 = vunpack.c.l.b16 %v46
  %v215 = vunpack.c.l.b16 %v47
  %v216 = vunpack.c.l.b16 %v48
  %v217 = vunpack.c.l.b16 %v49
  %v218 = vunpack.c.l.b16 %v50
  %v219 = vunpack.c.l.b16 %v51
  %v220 = vunpack.c.l.b16 %v52
  %v221 = vunpack.c.l.b16 %v53
  %v222 = vunpack.c.l.b16 %v54
  %v223 = vunpack.c.l.b16 %v55
  %v224 = vunpack.c.l.b16 %v56
  %v225 = vunpack.c.l.b16 %v57
  %v226 = vunpack.c.l.b16 %v58
  %v227 = vunpack.c.l.b16 %v59
  %v228 = vunpack.c.l.b16 %v60
  %v229 = vunpack.c.l.b16 %v61
  %v230 = vunpack.c.l.b16 %v62
  %v231 = vunpack.c.l.b16 %v63
  %v232 = vunpack.c.l.b16 %v64
  %v233 = vunpack.c.l.b16 %v65
  %v234 = vunpack.c.l.b16 %v66
  %v235 = vunpack.c.l.b16 %v67
  %v236 = vunpack.c.l.b16 %v68
  %v237 = vunpack.c.l.b16 %v69
  %v238 = vunpack.c.l.b16 %v70
  %v239 = vunpack.c.l.b16 %v71
  %v240 = vunpack.c.l.b16 %v72
  %v241 = vunpack.c.l.b16 %v73
  %v242 = vunpack.c.l.b16 %v74
  %v243 = vunpack.c.l.b16 %v75
  %v244 = vunpack.c.l.b16 %v76
  %v245 = vunpack.c.l.b16 %v77
  %v246 = vunpack.c.l.b16 %v78
  %v247 = vunpack.c.l.b16 %v79
  %v248 = vunpack.c.l.b16 %v80
  %v249 = vunpack.c.l.b16 %v81
  %v250 = vunpack.c.l.b16 %v82
  %v251 = vunpack.c.l.b16 %v83
  %v252 = vunpack.c.l.b16 %v84
  %v253 = vunpack.c.l.b16 %v85
  %v254 = vunpack.c.l.b16 %v86
  %v255 = vunpack.c.l.b16 %v87
  %v256 = vunpack.c.l.b16 %v88
  %v257 = vunpack.c.l.b16 %v89
  %v258 = vunpack.c.l.b16 %v90
  %v259 = vunpack.c.l.b16 %v91
  %v260 = vunpack.c.l.b16 %v92
  %v261 = vpack.c.b16 %v190, %v189
  %v262 = vpack.c.b16 %v192, %v191
  %v263 = vpack.c.b16 %v194, %v193
  %v264 = vpack.c.b16 %v196, %v195
  %v265 = vpack.c.b16 %v198, %v197
  %v266 = vpack.c.b16 %v200, %v199
  %v267 = vpack.c.b16 %v202, %v201
  %v268 = vpack.c.b16 %v204, %v203
  %v269 = vpack.c.b16 %v206, %v205
  %v270 = vpack.c.b16 %v208, %v207
  %v271 = vpack.c.b16 %v210, %v209
  %v272 = vpack.c.b16 %v212, %v211
  %v273 = vpack.c.b16 %v214, %v213
  %v274 = vpack.c.b16 %v216, %v215
  %v275 = vpack.c.b16 %v218, %v217
  %v276 = vpack.c.b16 %v220, %v219
  %v277 = vpack.c.b16 %v222, %v221
  %v278 = vpack.c.b16 %v224, %v223
  %v279 = vpack.c.b16 %v226, %v225
  %v280 = vpack.c.b16 %v228, %v227
  %v281 = vpack.c.b16 %v230, %v229
  %v282 = vpack.c.b16 %v232, %v231
  %v283 = vpack.c.b16 %v234, %v233
  %v284 = vpack.c.b16 %v236, %v235
  %v285 = vpack.c.b16 %v238, %v237
  %v286 = vpack.c.b16 %v240, %v239
  %v287 = vpack.c.b16 %v242, %v241
  %v288 = vpack.c.b16 %v244, %v243
  %v289 = vpack.c.b16 %v246, %v245
  %v290 = vpack.c.b16 %v248, %v247
  %v291 = vpack.c.b16 %v250, %v249
  %v292 = vpack.c.b16 %v252, %v251
  %v293 = vpack.c.b16 %v254, %v253
  %v294 = vpack.c.b16 %v256, %v255
  %v295 = vpack.c.b16 %v258, %v257
  %v296 = vpack.c.b16 %v260, %v259
  %vm333 = vcmask 523264
  %v335 = vsel %vm333, %v112, 0
  %337 = vmatprep.subr.bf16.mxu0 0
  %338 = vmatpush1.bf16.msra.mxu0 %v268
  %339 = vmatprep.subr.bf16.mxu0 0
  %340 = vmatpush1.bf16.msra.mxu0 %v267
  %341 = vmatprep.subr.bf16.mxu0 0
  %342 = vmatpush1.bf16.msra.mxu0 %v266
  %343 = vmatprep.subr.bf16.mxu0 0
  %344 = vmatpush1.bf16.msra.mxu0 %v265
  %345 = vmatprep.subr.bf16.mxu0 0
  %346 = vmatpush1.bf16.msra.mxu0 %v264
  %347 = vmatprep.subr.bf16.mxu0 0
  %348 = vmatpush1.bf16.msra.mxu0 %v263
  %349 = vmatprep.subr.bf16.mxu0 0
  %350 = vmatpush1.bf16.msra.mxu0 %v262
  %351 = vmatprep.subr.bf16.mxu0 0
  %352 = vmatpush1.bf16.msra.mxu0 %v261
  %353 = vmatprep.subr.bf16.mxu0 0
  %354 = vmatpush2.bf16.msra.mxu0 %v276
  %355 = vmatprep.subr.bf16.mxu0 0
  %356 = vmatpush2.bf16.msra.mxu0 %v275
  %357 = vmatprep.subr.bf16.mxu0 0
  %358 = vmatpush2.bf16.msra.mxu0 %v274
  %359 = vmatprep.subr.bf16.mxu0 0
  %360 = vmatpush2.bf16.msra.mxu0 %v273
  %361 = vmatprep.subr.bf16.mxu0 0
  %362 = vmatpush2.bf16.msra.mxu0 %v272
  %363 = vmatprep.subr.bf16.mxu0 0
  %364 = vmatpush2.bf16.msra.mxu0 %v271
  %365 = vmatprep.subr.bf16.mxu0 0
  %366 = vmatpush2.bf16.msra.mxu0 %v270
  %367 = vmatprep.subr.bf16.mxu0 0
  %368 = vmatpush2.bf16.msra.mxu0 %v269
  %369 = vmatprep.mubr.bf16.mxu0 %v109
  %370 = vmatmul.mubr.bf16.gmra.mxu0 %v108
  %v371 = vpop.f32.mrf.mxu0
  %v372 = vadd.f32 %v98, %v371
  %v373 = vpop.f32.mrf.mxu0
  %v374 = vpop.f32.mrf.mxu0
  %v375 = vpop.f32.mrf.mxu0
  %376 = vdwg.mxu0
  %377 = vmatprep.subr.bf16.mxu0 0
  %378 = vmatpush1.bf16.msra.mxu0 %v284
  %379 = vmatprep.subr.bf16.mxu0 0
  %380 = vmatpush1.bf16.msra.mxu0 %v283
  %381 = vmatprep.subr.bf16.mxu0 0
  %382 = vmatpush1.bf16.msra.mxu0 %v282
  %383 = vmatprep.subr.bf16.mxu0 0
  %384 = vmatpush1.bf16.msra.mxu0 %v281
  %385 = vmatprep.subr.bf16.mxu0 0
  %386 = vmatpush1.bf16.msra.mxu0 %v280
  %387 = vmatprep.subr.bf16.mxu0 0
  %388 = vmatpush1.bf16.msra.mxu0 %v279
  %389 = vmatprep.subr.bf16.mxu0 0
  %390 = vmatpush1.bf16.msra.mxu0 %v278
  %391 = vmatprep.subr.bf16.mxu0 0
  %392 = vmatpush1.bf16.msra.mxu0 %v277
  %393 = vmatprep.subr.bf16.mxu0 0
  %394 = vmatpush2.bf16.msra.mxu0 %v292
  %395 = vmatprep.subr.bf16.mxu0 0
  %396 = vmatpush2.bf16.msra.mxu0 %v291
  %397 = vmatprep.subr.bf16.mxu0 0
  %398 = vmatpush2.bf16.msra.mxu0 %v290
  %399 = vmatprep.subr.bf16.mxu0 0
  %400 = vmatpush2.bf16.msra.mxu0 %v289
  %401 = vmatprep.subr.bf16.mxu0 0
  %402 = vmatpush2.bf16.msra.mxu0 %v288
  %403 = vmatprep.subr.bf16.mxu0 0
  %404 = vmatpush2.bf16.msra.mxu0 %v287
  %405 = vmatprep.subr.bf16.mxu0 0
  %406 = vmatpush2.bf16.msra.mxu0 %v286
  %407 = vmatprep.subr.bf16.mxu0 0
  %408 = vmatpush2.bf16.msra.mxu0 %v285
  %409 = vmatprep.mubr.bf16.mxu0 %v111
  %410 = vmatmul.mubr.bf16.gmra.mxu0 %v110
  %v411 = vpop.f32.mrf.mxu0
  %v412 = vadd.f32 %v372, %v411
  %v413 = vpop.f32.mrf.mxu0
  %v414 = vpop.f32.mrf.mxu0
  %v415 = vpop.f32.mrf.mxu0
  %416 = vdwg.mxu0
  %417 = vmatprep.subr.bf16.mxu0 0
  %418 = vmatpush1.bf16.msra.mxu0 0
  %419 = vmatprep.subr.bf16.mxu0 0
  %420 = vmatpush1.bf16.msra.mxu0 0
  %421 = vmatprep.subr.bf16.mxu0 0
  %422 = vmatpush1.bf16.msra.mxu0 0
  %423 = vmatprep.subr.bf16.mxu0 0
  %424 = vmatpush1.bf16.msra.mxu0 0
  %425 = vmatprep.subr.bf16.mxu0 0
  %426 = vmatpush1.bf16.msra.mxu0 %v296
  %427 = vmatprep.subr.bf16.mxu0 0
  %428 = vmatpush1.bf16.msra.mxu0 %v295
  %429 = vmatprep.subr.bf16.mxu0 0
  %430 = vmatpush1.bf16.msra.mxu0 %v294
  %431 = vmatprep.subr.bf16.mxu0 0
  %432 = vmatpush1.bf16.msra.mxu0 %v293
  %433 = vmatprep.subr.bf16.mxu0 0
  %434 = vmatpush2.bf16.msra.mxu0 0
  %435 = vmatprep.subr.bf16.mxu0 0
  %436 = vmatpush2.bf16.msra.mxu0 0
  %437 = vmatprep.subr.bf16.mxu0 0
  %438 = vmatpush2.bf16.msra.mxu0 0
  %439 = vmatprep.subr.bf16.mxu0 0
  %440 = vmatpush2.bf16.msra.mxu0 0
  %441 = vmatprep.subr.bf16.mxu0 0
  %442 = vmatpush2.bf16.msra.mxu0 0
  %443 = vmatprep.subr.bf16.mxu0 0
  %444 = vmatpush2.bf16.msra.mxu0 0
  %445 = vmatprep.subr.bf16.mxu0 0
  %446 = vmatpush2.bf16.msra.mxu0 0
  %447 = vmatprep.subr.bf16.mxu0 0
  %448 = vmatpush2.bf16.msra.mxu0 0
  %449 = vmatprep.mubr.bf16.mxu0 0
  %450 = vmatmul.mubr.bf16.gmra.mxu0 %v335
  %v451 = vpop.f32.mrf.mxu0
  %v452 = vadd.f32 %v412, %v451
  %v453 = vpop.f32.mrf.mxu0
  %v454 = vpop.f32.mrf.mxu0
  %v455 = vpop.f32.mrf.mxu0
  %456 = vdwg.mxu0
  %v457 = vld [vmem:[%s3] sm:$0xf]
  %v458 = vunpack.c.l.bf16 %v457
  %v459 = vadd.f32 %v452, %v458
  %v460 = vmax.f32 %v459, 0.0
  %v461 = vpack.c.bf16 %v460, %v460
  %462 = vst [vmem:[%s4] sm:$0xf] %v461
  // Predicated region
  $region18: #{resnet_forward.25} parent=0 // pred_check
    _
  $region19: #{resnet_forward.25} parent=0 // pred_check_branch
    %464 = sbr.rel (0) target = $region21
  $region20: #{resnet_forward.25} parent=0 // pred_region
    _
  $region21: #{resnet_forward.25} parent=0 // pred_fallthru
    _
  // Predicated region
  $region22: #{resnet_forward.25} parent=0 // pred_check
    _
  $region23: #{resnet_forward.25} parent=0 // pred_check_branch
    %466 = sbr.rel (0) target = $region25
  $region24: #{resnet_forward.25} parent=0 // pred_region
    _
  $region25: #{resnet_forward.25} parent=0 // pred_fallthru
    _

// kernel: resnet_forward.27
$region0: #{resnet_forward.27}
  #allocation0 [shape = 'u32[]', space=smem, size = 0x4, offset = 0x4, fixed_abs, tag = 'smem constant byte address 0x4 - core index']
  #allocation1 [shape = 'u32[144,128]{1,0:T(1,128)}', space=vmem, size = 0x12000, scoped, tag = 'internal scratch']
  %s0 = inlined_call_operand.vmem [shape: bf16[8,64], index: 0, kind: input, shape index: {}]
  %s1 = inlined_call_operand.vmem [shape: bf16[64,128], index: 1, kind: input, shape index: {}]
  %s2 = inlined_call_operand.vmem [shape: f32[1,128], index: 2, kind: input, shape index: {}]
  %s3 = inlined_call_operand.vmem [shape: bf16[8,128], index: 3, kind: output, shape index: {}]
  %s4 = sld [smem:[#allocation0]]
  $region22: #{resnet_forward.27} parent=0
    _
  %s6 = ssub.s32 1, %s4
  %s7 = scalar_select 0, %s6, %s4
  // Predicated region
  $region2: #{resnet_forward.27} parent=0 // pred_check
    _
  $region3: #{resnet_forward.27} parent=0 // pred_check_branch
    %9 = sbr.rel (0) target = $region5
  $region4: #{resnet_forward.27} parent=0 // pred_region
    _
  $region5: #{resnet_forward.27} parent=0 // pred_fallthru
    _
  // Predicated region
  $region6: #{resnet_forward.27} parent=0 // pred_check
    _
  $region7: #{resnet_forward.27} parent=0 // pred_check_branch
    %11 = sbr.rel (0) target = $region9
  $region8: #{resnet_forward.27} parent=0 // pred_region
    _
  $region9: #{resnet_forward.27} parent=0 // pred_fallthru
    _
  // Predicated region
  $region10: #{resnet_forward.27} parent=0 // pred_check
    _
  $region11: #{resnet_forward.27} parent=0 // pred_check_branch
    %13 = sbr.rel (0) target = $region13
  $region12: #{resnet_forward.27} parent=0 // pred_region
    _
  $region13: #{resnet_forward.27} parent=0 // pred_fallthru
    _
  %v15 = vld [vmem:[%s0] sm:$0xf]
  %v16 = vld [vmem:[%s1] sm:$0xf]
  %v17 = vld [vmem:[%s1 + $0x4] sm:$0xf]
  %v18 = vld [vmem:[%s1 + $0x8] sm:$0xf]
  %v19 = vld [vmem:[%s1 + $0xc] sm:$0xf]
  %v20 = vld [vmem:[%s1 + $0x10] sm:$0xf]
  %v21 = vld [vmem:[%s1 + $0x14] sm:$0xf]
  %v22 = vld [vmem:[%s1 + $0x18] sm:$0xf]
  %v23 = vld [vmem:[%s1 + $0x1c] sm:$0xf]
  %v24 = vld [vmem:[%s2] sm:$0x1]
  %v26 = vlaneseq
  %v27 = vshrl.u32 %v26, 7
  %v28 = vsub.s32 0, %v27
  %v29 = vrot.slane %v24, %v28
  %v39 = vunpack.c.l.b16 %v16
  %v40 = vunpack.c.l.b16 %v17
  %v41 = vunpack.c.l.b16 %v18
  %v42 = vunpack.c.l.b16 %v19
  %v43 = vunpack.c.l.b16 %v20
  %v44 = vunpack.c.l.b16 %v21
  %v45 = vunpack.c.l.b16 %v22
  %v46 = vunpack.c.l.b16 %v23
  %v47 = vpack.c.b16 %v40, %v39
  %v48 = vpack.c.b16 %v42, %v41
  %v49 = vpack.c.b16 %v44, %v43
  %v50 = vpack.c.b16 %v46, %v45
  %vm55 = vcmask 523264
  %v57 = vsel %vm55, %v15, 0
  %59 = vmatprep.subr.bf16.mxu0 0
  %60 = vmatpush1.bf16.msra.mxu0 0
  %61 = vmatprep.subr.bf16.mxu0 0
  %62 = vmatpush1.bf16.msra.mxu0 0
  %63 = vmatprep.subr.bf16.mxu0 0
  %64 = vmatpush1.bf16.msra.mxu0 0
  %65 = vmatprep.subr.bf16.mxu0 0
  %66 = vmatpush1.bf16.msra.mxu0 0
  %67 = vmatprep.subr.bf16.mxu0 0
  %68 = vmatpush1.bf16.msra.mxu0 %v50
  %69 = vmatprep.subr.bf16.mxu0 0
  %70 = vmatpush1.bf16.msra.mxu0 %v49
  %71 = vmatprep.subr.bf16.mxu0 0
  %72 = vmatpush1.bf16.msra.mxu0 %v48
  %73 = vmatprep.subr.bf16.mxu0 0
  %74 = vmatpush1.bf16.msra.mxu0 %v47
  %75 = vmatprep.subr.bf16.mxu0 0
  %76 = vmatpush2.bf16.msra.mxu0 0
  %77 = vmatprep.subr.bf16.mxu0 0
  %78 = vmatpush2.bf16.msra.mxu0 0
  %79 = vmatprep.subr.bf16.mxu0 0
  %80 = vmatpush2.bf16.msra.mxu0 0
  %81 = vmatprep.subr.bf16.mxu0 0
  %82 = vmatpush2.bf16.msra.mxu0 0
  %83 = vmatprep.subr.bf16.mxu0 0
  %84 = vmatpush2.bf16.msra.mxu0 0
  %85 = vmatprep.subr.bf16.mxu0 0
  %86 = vmatpush2.bf16.msra.mxu0 0
  %87 = vmatprep.subr.bf16.mxu0 0
  %88 = vmatpush2.bf16.msra.mxu0 0
  %89 = vmatprep.subr.bf16.mxu0 0
  %90 = vmatpush2.bf16.msra.mxu0 0
  %91 = vmatprep.mubr.bf16.mxu0 0
  %92 = vmatmul.mubr.bf16.gmra.mxu0 %v57
  %v93 = vpop.f32.mrf.mxu0
  %v94 = vadd.f32 %v29, %v93
  %v95 = vpop.f32.mrf.mxu0
  %v96 = vpop.f32.mrf.mxu0
  %v97 = vpop.f32.mrf.mxu0
  %98 = vdwg.mxu0
  %v99 = vpack.c.bf16 %v94, %v94
  %100 = vst [vmem:[%s3] sm:$0xf] %v99
  // Predicated region
  $region14: #{resnet_forward.27} parent=0 // pred_check
    _
  $region15: #{resnet_forward.27} parent=0 // pred_check_branch
    %102 = sbr.rel (0) target = $region17
  $region16: #{resnet_forward.27} parent=0 // pred_region
    _
  $region17: #{resnet_forward.27} parent=0 // pred_fallthru
    _
  // Predicated region
  $region18: #{resnet_forward.27} parent=0 // pred_check
    _
  $region19: #{resnet_forward.27} parent=0 // pred_check_branch
    %104 = sbr.rel (0) target = $region21
  $region20: #{resnet_forward.27} parent=0 // pred_region
    _
  $region21: #{resnet_forward.27} parent=0 // pred_fallthru
    _

// kernel: resnet_forward.26
$region0: #{resnet_forward.26}
  #allocation0 [shape = 'u32[]', space=smem, size = 0x4, offset = 0x4, fixed_abs, tag = 'smem constant byte address 0x4 - core index']
  #allocation1 [shape = 'u32[144,128]{1,0:T(1,128)}', space=vmem, size = 0x12000, scoped, tag = 'internal scratch']
  %s0 = inlined_call_operand.vmem [shape: bf16[8,576], index: 0, kind: input, shape index: {}]
  %s1 = inlined_call_operand.vmem [shape: bf16[576,128], index: 1, kind: input, shape index: {}]
  %s2 = inlined_call_operand.vmem [shape: f32[1,128], index: 2, kind: input, shape index: {}]
  %s3 = inlined_call_operand.vmem [shape: bf16[8,128], index: 3, kind: output, shape index: {}]
  %s4 = sld [smem:[#allocation0]]
  $region22: #{resnet_forward.26} parent=0
    _
  %s6 = ssub.s32 1, %s4
  %s7 = scalar_select 0, %s6, %s4
  // Predicated region
  $region2: #{resnet_forward.26} parent=0 // pred_check
    _
  $region3: #{resnet_forward.26} parent=0 // pred_check_branch
    %9 = sbr.rel (0) target = $region5
  $region4: #{resnet_forward.26} parent=0 // pred_region
    _
  $region5: #{resnet_forward.26} parent=0 // pred_fallthru
    _
  // Predicated region
  $region6: #{resnet_forward.26} parent=0 // pred_check
    _
  $region7: #{resnet_forward.26} parent=0 // pred_check_branch
    %11 = sbr.rel (0) target = $region9
  $region8: #{resnet_forward.26} parent=0 // pred_region
    _
  $region9: #{resnet_forward.26} parent=0 // pred_fallthru
    _
  // Predicated region
  $region10: #{resnet_forward.26} parent=0 // pred_check
    _
  $region11: #{resnet_forward.26} parent=0 // pred_check_branch
    %13 = sbr.rel (0) target = $region13
  $region12: #{resnet_forward.26} parent=0 // pred_region
    _
  $region13: #{resnet_forward.26} parent=0 // pred_fallthru
    _
  %v15 = vld [vmem:[%s0] sm:$0xff]
  %v16 = vld [vmem:[%s0 + $0x8] sm:$0xff]
  %v17 = vld [vmem:[%s0 + $0x10] sm:$0xf]
  %v18 = vld [vmem:[%s1] sm:$0xf]
  %v19 = vld [vmem:[%s1 + $0x4] sm:$0xf]
  %v20 = vld [vmem:[%s1 + $0x8] sm:$0xf]
  %v21 = vld [vmem:[%s1 + $0xc] sm:$0xf]
  %v22 = vld [vmem:[%s1 + $0x10] sm:$0xf]
  %v23 = vld [vmem:[%s1 + $0x14] sm:$0xf]
  %v24 = vld [vmem:[%s1 + $0x18] sm:$0xf]
  %v25 = vld [vmem:[%s1 + $0x1c] sm:$0xf]
  %v26 = vld [vmem:[%s1 + $0x20] sm:$0xf]
  %v27 = vld [vmem:[%s1 + $0x24] sm:$0xf]
  %v28 = vld [vmem:[%s1 + $0x28] sm:$0xf]
  %v29 = vld [vmem:[%s1 + $0x2c] sm:$0xf]
  %v30 = vld [vmem:[%s1 + $0x30] sm:$0xf]
  %v31 = vld [vmem:[%s1 + $0x34] sm:$0xf]
  %v32 = vld [vmem:[%s1 + $0x38] sm:$0xf]
  %v33 = vld [vmem:[%s1 + $0x3c] sm:$0xf]
  %v34 = vld [vmem:[%s1 + $0x40] sm:$0xf]
  %v35 = vld [vmem:[%s1 + $0x44] sm:$0xf]
  %v36 = vld [vmem:[%s1 + $0x48] sm:$0xf]
  %v37 = vld [vmem:[%s1 + $0x4c] sm:$0xf]
  %v38 = vld [vmem:[%s1 + $0x50] sm:$0xf]
  %v39 = vld [vmem:[%s1 + $0x54] sm:$0xf]
  %v40 = vld [vmem:[%s1 + $0x58] sm:$0xf]
  %v41 = vld [vmem:[%s1 + $0x5c] sm:$0xf]
  %v42 = vld [vmem:[%s1 + $0x60] sm:$0xf]
  %v43 = vld [vmem:[%s1 + $0x64] sm:$0xf]
  %v44 = vld [vmem:[%s1 + $0x68] sm:$0xf]
  %v45 = vld [vmem:[%s1 + $0x6c] sm:$0xf]
  %v46 = vld [vmem:[%s1 + $0x70] sm:$0xf]
  %v47 = vld [vmem:[%s1 + $0x74] sm:$0xf]
  %v48 = vld [vmem:[%s1 + $0x78] sm:$0xf]
  %v49 = vld [vmem:[%s1 + $0x7c] sm:$0xf]
  %v50 = vld [vmem:[%s1 + $0x80] sm:$0xf]
  %v51 = vld [vmem:[%s1 + $0x84] sm:$0xf]
  %v52 = vld [vmem:[%s1 + $0x88] sm:$0xf]
  %v53 = vld [vmem:[%s1 + $0x8c] sm:$0xf]
  %v54 = vld [vmem:[%s1 + $0x90] sm:$0xf]
  %v55 = vld [vmem:[%s1 + $0x94] sm:$0xf]
  %v56 = vld [vmem:[%s1 + $0x98] sm:$0xf]
  %v57 = vld [vmem:[%s1 + $0x9c] sm:$0xf]
  %v58 = vld [vmem:[%s1 + $0xa0] sm:$0xf]
  %v59 = vld [vmem:[%s1 + $0xa4] sm:$0xf]
  %v60 = vld [vmem:[%s1 + $0xa8] sm:$0xf]
  %v61 = vld [vmem:[%s1 + $0xac] sm:$0xf]
  %v62 = vld [vmem:[%s1 + $0xb0] sm:$0xf]
  %v63 = vld [vmem:[%s1 + $0xb4] sm:$0xf]
  %v64 = vld [vmem:[%s1 + $0xb8] sm:$0xf]
  %v65 = vld [vmem:[%s1 + $0xbc] sm:$0xf]
  %v66 = vld [vmem:[%s1 + $0xc0] sm:$0xf]
  %v67 = vld [vmem:[%s1 + $0xc4] sm:$0xf]
  %v68 = vld [vmem:[%s1 + $0xc8] sm:$0xf]
  %v69 = vld [vmem:[%s1 + $0xcc] sm:$0xf]
  %v70 = vld [vmem:[%s1 + $0xd0] sm:$0xf]
  %v71 = vld [vmem:[%s1 + $0xd4] sm:$0xf]
  %v72 = vld [vmem:[%s1 + $0xd8] sm:$0xf]
  %v73 = vld [vmem:[%s1 + $0xdc] sm:$0xf]
  %v74 = vld [vmem:[%s1 + $0xe0] sm:$0xf]
  %v75 = vld [vmem:[%s1 + $0xe4] sm:$0xf]
  %v76 = vld [vmem:[%s1 + $0xe8] sm:$0xf]
  %v77 = vld [vmem:[%s1 + $0xec] sm:$0xf]
  %v78 = vld [vmem:[%s1 + $0xf0] sm:$0xf]
  %v79 = vld [vmem:[%s1 + $0xf4] sm:$0xf]
  %v80 = vld [vmem:[%s1 + $0xf8] sm:$0xf]
  %v81 = vld [vmem:[%s1 + $0xfc] sm:$0xf]
  %v82 = vld [vmem:[%s1 + $0x100] sm:$0xf]
  %v83 = vld [vmem:[%s1 + $0x104] sm:$0xf]
  %v84 = vld [vmem:[%s1 + $0x108] sm:$0xf]
  %v85 = vld [vmem:[%s1 + $0x10c] sm:$0xf]
  %v86 = vld [vmem:[%s1 + $0x110] sm:$0xf]
  %v87 = vld [vmem:[%s1 + $0x114] sm:$0xf]
  %v88 = vld [vmem:[%s1 + $0x118] sm:$0xf]
  %v89 = vld [vmem:[%s1 + $0x11c] sm:$0xf]
  %v90 = vld [vmem:[%s2] sm:$0x1]
  %v92 = vlaneseq
  %v93 = vshrl.u32 %v92, 7
  %v94 = vsub.s32 0, %v93
  %v95 = vrot.slane %v90, %v94
  %v100 = vunpack.c.l.b16 %v15
  %v101 = vunpack.c.h.b16 %v15
  %v102 = vunpack.c.l.b16 %v16
  %v103 = vunpack.c.h.b16 %v16
  %v104 = vunpack.c.l.b16 %v17
  %v105 = vpack.c.b16 %v100, %v100
  %v106 = vpack.c.b16 %v101, %v101
  %v107 = vpack.c.b16 %v102, %v102
  %v108 = vpack.c.b16 %v103, %v103
  %v109 = vpack.c.b16 %v104, %v104
  %v186 = vunpack.c.l.b16 %v18
  %v187 = vunpack.c.l.b16 %v19
  %v188 = vunpack.c.l.b16 %v20
  %v189 = vunpack.c.l.b16 %v21
  %v190 = vunpack.c.l.b16 %v22
  %v191 = vunpack.c.l.b16 %v23
  %v192 = vunpack.c.l.b16 %v24
  %v193 = vunpack.c.l.b16 %v25
  %v194 = vunpack.c.l.b16 %v26
  %v195 = vunpack.c.l.b16 %v27
  %v196 = vunpack.c.l.b16 %v28
  %v197 = vunpack.c.l.b16 %v29
  %v198 = vunpack.c.l.b16 %v30
  %v199 = vunpack.c.l.b16 %v31
  %v200 = vunpack.c.l.b16 %v32
  %v201 = vunpack.c.l.b16 %v33
  %v202 = vunpack.c.l.b16 %v34
  %v203 = vunpack.c.l.b16 %v35
  %v204 = vunpack.c.l.b16 %v36
  %v205 = vunpack.c.l.b16 %v37
  %v206 = vunpack.c.l.b16 %v38
  %v207 = vunpack.c.l.b16 %v39
  %v208 = vunpack.c.l.b16 %v40
  %v209 = vunpack.c.l.b16 %v41
  %v210 = vunpack.c.l.b16 %v42
  %v211 = vunpack.c.l.b16 %v43
  %v212 = vunpack.c.l.b16 %v44
  %v213 = vunpack.c.l.b16 %v45
  %v214 = vunpack.c.l.b16 %v46
  %v215 = vunpack.c.l.b16 %v47
  %v216 = vunpack.c.l.b16 %v48
  %v217 = vunpack.c.l.b16 %v49
  %v218 = vunpack.c.l.b16 %v50
  %v219 = vunpack.c.l.b16 %v51
  %v220 = vunpack.c.l.b16 %v52
  %v221 = vunpack.c.l.b16 %v53
  %v222 = vunpack.c.l.b16 %v54
  %v223 = vunpack.c.l.b16 %v55
  %v224 = vunpack.c.l.b16 %v56
  %v225 = vunpack.c.l.b16 %v57
  %v226 = vunpack.c.l.b16 %v58
  %v227 = vunpack.c.l.b16 %v59
  %v228 = vunpack.c.l.b16 %v60
  %v229 = vunpack.c.l.b16 %v61
  %v230 = vunpack.c.l.b16 %v62
  %v231 = vunpack.c.l.b16 %v63
  %v232 = vunpack.c.l.b16 %v64
  %v233 = vunpack.c.l.b16 %v65
  %v234 = vunpack.c.l.b16 %v66
  %v235 = vunpack.c.l.b16 %v67
  %v236 = vunpack.c.l.b16 %v68
  %v237 = vunpack.c.l.b16 %v69
  %v238 = vunpack.c.l.b16 %v70
  %v239 = vunpack.c.l.b16 %v71
  %v240 = vunpack.c.l.b16 %v72
  %v241 = vunpack.c.l.b16 %v73
  %v242 = vunpack.c.l.b16 %v74
  %v243 = vunpack.c.l.b16 %v75
  %v244 = vunpack.c.l.b16 %v76
  %v245 = vunpack.c.l.b16 %v77
  %v246 = vunpack.c.l.b16 %v78
  %v247 = vunpack.c.l.b16 %v79
  %v248 = vunpack.c.l.b16 %v80
  %v249 = vunpack.c.l.b16 %v81
  %v250 = vunpack.c.l.b16 %v82
  %v251 = vunpack.c.l.b16 %v83
  %v252 = vunpack.c.l.b16 %v84
  %v253 = vunpack.c.l.b16 %v85
  %v254 = vunpack.c.l.b16 %v86
  %v255 = vunpack.c.l.b16 %v87
  %v256 = vunpack.c.l.b16 %v88
  %v257 = vunpack.c.l.b16 %v89
  %v258 = vpack.c.b16 %v187, %v186
  %v259 = vpack.c.b16 %v189, %v188
  %v260 = vpack.c.b16 %v191, %v190
  %v261 = vpack.c.b16 %v193, %v192
  %v262 = vpack.c.b16 %v195, %v194
  %v263 = vpack.c.b16 %v197, %v196
  %v264 = vpack.c.b16 %v199, %v198
  %v265 = vpack.c.b16 %v201, %v200
  %v266 = vpack.c.b16 %v203, %v202
  %v267 = vpack.c.b16 %v205, %v204
  %v268 = vpack.c.b16 %v207, %v206
  %v269 = vpack.c.b16 %v209, %v208
  %v270 = vpack.c.b16 %v211, %v210
  %v271 = vpack.c.b16 %v213, %v212
  %v272 = vpack.c.b16 %v215, %v214
  %v273 = vpack.c.b16 %v217, %v216
  %v274 = vpack.c.b16 %v219, %v218
  %v275 = vpack.c.b16 %v221, %v220
  %v276 = vpack.c.b16 %v223, %v222
  %v277 = vpack.c.b16 %v225, %v224
  %v278 = vpack.c.b16 %v227, %v226
  %v279 = vpack.c.b16 %v229, %v228
  %v280 = vpack.c.b16 %v231, %v230
  %v281 = vpack.c.b16 %v233, %v232
  %v282 = vpack.c.b16 %v235, %v234
  %v283 = vpack.c.b16 %v237, %v236
  %v284 = vpack.c.b16 %v239, %v238
  %v285 = vpack.c.b16 %v241, %v240
  %v286 = vpack.c.b16 %v243, %v242
  %v287 = vpack.c.b16 %v245, %v244
  %v288 = vpack.c.b16 %v247, %v246
  %v289 = vpack.c.b16 %v249, %v248
  %v290 = vpack.c.b16 %v251, %v250
  %v291 = vpack.c.b16 %v253, %v252
  %v292 = vpack.c.b16 %v255, %v254
  %v293 = vpack.c.b16 %v257, %v256
  %vm330 = vcmask 523264
  %v332 = vsel %vm330, %v109, 0
  %334 = vmatprep.subr.bf16.mxu0 0
  %335 = vmatpush1.bf16.msra.mxu0 %v265
  %336 = vmatprep.subr.bf16.mxu0 0
  %337 = vmatpush1.bf16.msra.mxu0 %v264
  %338 = vmatprep.subr.bf16.mxu0 0
  %339 = vmatpush1.bf16.msra.mxu0 %v263
  %340 = vmatprep.subr.bf16.mxu0 0
  %341 = vmatpush1.bf16.msra.mxu0 %v262
  %342 = vmatprep.subr.bf16.mxu0 0
  %343 = vmatpush1.bf16.msra.mxu0 %v261
  %344 = vmatprep.subr.bf16.mxu0 0
  %345 = vmatpush1.bf16.msra.mxu0 %v260
  %346 = vmatprep.subr.bf16.mxu0 0
  %347 = vmatpush1.bf16.msra.mxu0 %v259
  %348 = vmatprep.subr.bf16.mxu0 0
  %349 = vmatpush1.bf16.msra.mxu0 %v258
  %350 = vmatprep.subr.bf16.mxu0 0
  %351 = vmatpush2.bf16.msra.mxu0 %v273
  %352 = vmatprep.subr.bf16.mxu0 0
  %353 = vmatpush2.bf16.msra.mxu0 %v272
  %354 = vmatprep.subr.bf16.mxu0 0
  %355 = vmatpush2.bf16.msra.mxu0 %v271
  %356 = vmatprep.subr.bf16.mxu0 0
  %357 = vmatpush2.bf16.msra.mxu0 %v270
  %358 = vmatprep.subr.bf16.mxu0 0
  %359 = vmatpush2.bf16.msra.mxu0 %v269
  %360 = vmatprep.subr.bf16.mxu0 0
  %361 = vmatpush2.bf16.msra.mxu0 %v268
  %362 = vmatprep.subr.bf16.mxu0 0
  %363 = vmatpush2.bf16.msra.mxu0 %v267
  %364 = vmatprep.subr.bf16.mxu0 0
  %365 = vmatpush2.bf16.msra.mxu0 %v266
  %366 = vmatprep.mubr.bf16.mxu0 %v106
  %367 = vmatmul.mubr.bf16.gmra.mxu0 %v105
  %v368 = vpop.f32.mrf.mxu0
  %v369 = vadd.f32 %v95, %v368
  %v370 = vpop.f32.mrf.mxu0
  %v371 = vpop.f32.mrf.mxu0
  %v372 = vpop.f32.mrf.mxu0
  %373 = vdwg.mxu0
  %374 = vmatprep.subr.bf16.mxu0 0
  %375 = vmatpush1.bf16.msra.mxu0 %v281
  %376 = vmatprep.subr.bf16.mxu0 0
  %377 = vmatpush1.bf16.msra.mxu0 %v280
  %378 = vmatprep.subr.bf16.mxu0 0
  %379 = vmatpush1.bf16.msra.mxu0 %v279
  %380 = vmatprep.subr.bf16.mxu0 0
  %381 = vmatpush1.bf16.msra.mxu0 %v278
  %382 = vmatprep.subr.bf16.mxu0 0
  %383 = vmatpush1.bf16.msra.mxu0 %v277
  %384 = vmatprep.subr.bf16.mxu0 0
  %385 = vmatpush1.bf16.msra.mxu0 %v276
  %386 = vmatprep.subr.bf16.mxu0 0
  %387 = vmatpush1.bf16.msra.mxu0 %v275
  %388 = vmatprep.subr.bf16.mxu0 0
  %389 = vmatpush1.bf16.msra.mxu0 %v274
  %390 = vmatprep.subr.bf16.mxu0 0
  %391 = vmatpush2.bf16.msra.mxu0 %v289
  %392 = vmatprep.subr.bf16.mxu0 0
  %393 = vmatpush2.bf16.msra.mxu0 %v288
  %394 = vmatprep.subr.bf16.mxu0 0
  %395 = vmatpush2.bf16.msra.mxu0 %v287
  %396 = vmatprep.subr.bf16.mxu0 0
  %397 = vmatpush2.bf16.msra.mxu0 %v286
  %398 = vmatprep.subr.bf16.mxu0 0
  %399 = vmatpush2.bf16.msra.mxu0 %v285
  %400 = vmatprep.subr.bf16.mxu0 0
  %401 = vmatpush2.bf16.msra.mxu0 %v284
  %402 = vmatprep.subr.bf16.mxu0 0
  %403 = vmatpush2.bf16.msra.mxu0 %v283
  %404 = vmatprep.subr.bf16.mxu0 0
  %405 = vmatpush2.bf16.msra.mxu0 %v282
  %406 = vmatprep.mubr.bf16.mxu0 %v108
  %407 = vmatmul.mubr.bf16.gmra.mxu0 %v107
  %v408 = vpop.f32.mrf.mxu0
  %v409 = vadd.f32 %v369, %v408
  %v410 = vpop.f32.mrf.mxu0
  %v411 = vpop.f32.mrf.mxu0
  %v412 = vpop.f32.mrf.mxu0
  %413 = vdwg.mxu0
  %414 = vmatprep.subr.bf16.mxu0 0
  %415 = vmatpush1.bf16.msra.mxu0 0
  %416 = vmatprep.subr.bf16.mxu0 0
  %417 = vmatpush1.bf16.msra.mxu0 0
  %418 = vmatprep.subr.bf16.mxu0 0
  %419 = vmatpush1.bf16.msra.mxu0 0
  %420 = vmatprep.subr.bf16.mxu0 0
  %421 = vmatpush1.bf16.msra.mxu0 0
  %422 = vmatprep.subr.bf16.mxu0 0
  %423 = vmatpush1.bf16.msra.mxu0 %v293
  %424 = vmatprep.subr.bf16.mxu0 0
  %425 = vmatpush1.bf16.msra.mxu0 %v292
  %426 = vmatprep.subr.bf16.mxu0 0
  %427 = vmatpush1.bf16.msra.mxu0 %v291
  %428 = vmatprep.subr.bf16.mxu0 0
  %429 = vmatpush1.bf16.msra.mxu0 %v290
  %430 = vmatprep.subr.bf16.mxu0 0
  %431 = vmatpush2.bf16.msra.mxu0 0
  %432 = vmatprep.subr.bf16.mxu0 0
  %433 = vmatpush2.bf16.msra.mxu0 0
  %434 = vmatprep.subr.bf16.mxu0 0
  %435 = vmatpush2.bf16.msra.mxu0 0
  %436 = vmatprep.subr.bf16.mxu0 0
  %437 = vmatpush2.bf16.msra.mxu0 0
  %438 = vmatprep.subr.bf16.mxu0 0
  %439 = vmatpush2.bf16.msra.mxu0 0
  %440 = vmatprep.subr.bf16.mxu0 0
  %441 = vmatpush2.bf16.msra.mxu0 0
  %442 = vmatprep.subr.bf16.mxu0 0
  %443 = vmatpush2.bf16.msra.mxu0 0
  %444 = vmatprep.subr.bf16.mxu0 0
  %445 = vmatpush2.bf16.msra.mxu0 0
  %446 = vmatprep.mubr.bf16.mxu0 0
  %447 = vmatmul.mubr.bf16.gmra.mxu0 %v332
  %v448 = vpop.f32.mrf.mxu0
  %v449 = vadd.f32 %v409, %v448
  %v450 = vpop.f32.mrf.mxu0
  %v451 = vpop.f32.mrf.mxu0
  %v452 = vpop.f32.mrf.mxu0
  %453 = vdwg.mxu0
  %v454 = vmax.f32 %v449, 0.0
  %v455 = vpack.c.bf16 %v454, %v454
  %456 = vst [vmem:[%s3] sm:$0xf] %v455
  // Predicated region
  $region14: #{resnet_forward.26} parent=0 // pred_check
    _
  $region15: #{resnet_forward.26} parent=0 // pred_check_branch
    %458 = sbr.rel (0) target = $region17
  $region16: #{resnet_forward.26} parent=0 // pred_region
    _
  $region17: #{resnet_forward.26} parent=0 // pred_fallthru
    _
  // Predicated region
  $region18: #{resnet_forward.26} parent=0 // pred_check
    _
  $region19: #{resnet_forward.26} parent=0 // pred_check_branch
    %460 = sbr.rel (0) target = $region21
  $region20: #{resnet_forward.26} parent=0 // pred_region
    _
  $region21: #{resnet_forward.26} parent=0 // pred_fallthru
    _

// kernel: resnet_forward.29
$region0: #{resnet_forward.29}
  #allocation0 [shape = 'u32[]', space=smem, size = 0x4, offset = 0x4, fixed_abs, tag = 'smem constant byte address 0x4 - core index']
  #allocation1 [shape = 'u32[144,128]{1,0:T(1,128)}', space=vmem, size = 0x12000, scoped, tag = 'internal scratch']
  %s0 = inlined_call_operand.vmem [shape: bf16[1,8,128], index: 0, kind: input, shape index: {}]
  %s1 = inlined_call_operand.vmem [shape: f32[128,128], index: 1, kind: input, shape index: {}]
  %s2 = inlined_call_operand.vmem [shape: f32[1,128], index: 2, kind: input, shape index: {}]
  %s3 = inlined_call_operand.vmem [shape: f32[8,128], index: 3, kind: output, shape index: {0}]
  %s4 = inlined_call_operand.vmem [shape: f32[8,128], index: 4, kind: output, shape index: {1}]
  %5 = xla_tuple %s3, %s4
  %s6 = sld [smem:[#allocation0]]
  $region30: #{resnet_forward.29} parent=0
    _
  %s8 = ssub.s32 1, %s6
  %s9 = scalar_select 0, %s8, %s6
  // Predicated region
  $region2: #{resnet_forward.29} parent=0 // pred_check
    _
  $region3: #{resnet_forward.29} parent=0 // pred_check_branch
    %11 = sbr.rel (0) target = $region5
  $region4: #{resnet_forward.29} parent=0 // pred_region
    _
  $region5: #{resnet_forward.29} parent=0 // pred_fallthru
    _
  // Predicated region
  $region6: #{resnet_forward.29} parent=0 // pred_check
    _
  $region7: #{resnet_forward.29} parent=0 // pred_check_branch
    %13 = sbr.rel (0) target = $region9
  $region8: #{resnet_forward.29} parent=0 // pred_region
    _
  $region9: #{resnet_forward.29} parent=0 // pred_fallthru
    _
  // Predicated region
  $region10: #{resnet_forward.29} parent=0 // pred_check
    _
  $region11: #{resnet_forward.29} parent=0 // pred_check_branch
    %15 = sbr.rel (0) target = $region13
  $region12: #{resnet_forward.29} parent=0 // pred_region
    _
  $region13: #{resnet_forward.29} parent=0 // pred_fallthru
    _
  %v16 = vld [vmem:[%s0] sm:$0xf]
  %v17 = vunpack.c.l.bf16 %v16
  %v18 = vadd.f32 %v17, 0.0
  %19 = vst [vmem:[%s3] sm:$0xff] %v18
  %v20 = vld [vmem:[%s1] sm:$0xff]
  %v21 = vld [vmem:[%s1 + $0x8] sm:$0xff]
  %v22 = vld [vmem:[%s1 + $0x10] sm:$0xff]
  %v23 = vld [vmem:[%s1 + $0x18] sm:$0xff]
  %v24 = vld [vmem:[%s1 + $0x20] sm:$0xff]
  %v25 = vld [vmem:[%s1 + $0x28] sm:$0xff]
  %v26 = vld [vmem:[%s1 + $0x30] sm:$0xff]
  %v27 = vld [vmem:[%s1 + $0x38] sm:$0xff]
  %v28 = vld [vmem:[%s1 + $0x40] sm:$0xff]
  %v29 = vld [vmem:[%s1 + $0x48] sm:$0xff]
  %v30 = vld [vmem:[%s1 + $0x50] sm:$0xff]
  %v31 = vld [vmem:[%s1 + $0x58] sm:$0xff]
  %v32 = vld [vmem:[%s1 + $0x60] sm:$0xff]
  %v33 = vld [vmem:[%s1 + $0x68] sm:$0xff]
  %v34 = vld [vmem:[%s1 + $0x70] sm:$0xff]
  %v35 = vld [vmem:[%s1 + $0x78] sm:$0xff]
  %v36 = vld [vmem:[%s2] sm:$0x1]
  %v38 = vlaneseq
  %v39 = vshrl.u32 %v38, 7
  %v40 = vsub.s32 0, %v39
  %v41 = vrot.slane %v36, %v40
  %43 = vmatprep.subr.mxu0 0.0
  %44 = vmatpush1.msra.mxu0 %v35
  %45 = vmatprep.subr.mxu0 0.0
  %46 = vmatpush1.msra.mxu0 %v34
  %47 = vmatprep.subr.mxu0 0.0
  %48 = vmatpush1.msra.mxu0 %v33
  %49 = vmatprep.subr.mxu0 0.0
  %50 = vmatpush1.msra.mxu0 %v32
  %51 = vmatprep.subr.mxu0 0.0
  %52 = vmatpush1.msra.mxu0 %v31
  %53 = vmatprep.subr.mxu0 0.0
  %54 = vmatpush1.msra.mxu0 %v30
  %55 = vmatprep.subr.mxu0 0.0
  %56 = vmatpush1.msra.mxu0 %v29
  %57 = vmatprep.subr.mxu0 0.0
  %58 = vmatpush1.msra.mxu0 %v28
  %59 = vmatprep.subr.mxu0 0.0
  %60 = vmatpush1.msra.mxu0 %v27
  %61 = vmatprep.subr.mxu0 0.0
  %62 = vmatpush1.msra.mxu0 %v26
  %63 = vmatprep.subr.mxu0 0.0
  %64 = vmatpush1.msra.mxu0 %v25
  %65 = vmatprep.subr.mxu0 0.0
  %66 = vmatpush1.msra.mxu0 %v24
  %67 = vmatprep.subr.mxu0 0.0
  %68 = vmatpush1.msra.mxu0 %v23
  %69 = vmatprep.subr.mxu0 0.0
  %70 = vmatpush1.msra.mxu0 %v22
  %71 = vmatprep.subr.mxu0 0.0
  %72 = vmatpush1.msra.mxu0 %v21
  %73 = vmatprep.subr.mxu0 0.0
  %74 = vmatpush1.msra.mxu0 %v20
  %75 = vmatprep.subr.mxu0 0.0
  %76 = vmatpush2.msra.mxu0 0.0
  %77 = vmatprep.subr.mxu0 0.0
  %78 = vmatpush2.msra.mxu0 0.0
  %79 = vmatprep.subr.mxu0 0.0
  %80 = vmatpush2.msra.mxu0 0.0
  %81 = vmatprep.subr.mxu0 0.0
  %82 = vmatpush2.msra.mxu0 0.0
  %83 = vmatprep.subr.mxu0 0.0
  %84 = vmatpush2.msra.mxu0 0.0
  %85 = vmatprep.subr.mxu0 0.0
  %86 = vmatpush2.msra.mxu0 0.0
  %87 = vmatprep.subr.mxu0 0.0
  %88 = vmatpush2.msra.mxu0 0.0
  %89 = vmatprep.subr.mxu0 0.0
  %90 = vmatpush2.msra.mxu0 0.0
  %91 = vmatprep.subr.mxu0 0.0
  %92 = vmatpush2.msra.mxu0 0.0
  %93 = vmatprep.subr.mxu0 0.0
  %94 = vmatpush2.msra.mxu0 0.0
  %95 = vmatprep.subr.mxu0 0.0
  %96 = vmatpush2.msra.mxu0 0.0
  %97 = vmatprep.subr.mxu0 0.0
  %98 = vmatpush2.msra.mxu0 0.0
  %99 = vmatprep.subr.mxu0 0.0
  %100 = vmatpush2.msra.mxu0 0.0
  %101 = vmatprep.subr.mxu0 0.0
  %102 = vmatpush2.msra.mxu0 0.0
  %103 = vmatprep.subr.mxu0 0.0
  %104 = vmatpush2.msra.mxu0 0.0
  %105 = vmatprep.subr.mxu0 0.0
  %106 = vmatpush2.msra.mxu0 0.0
  %107 = vmatprep.mubr.f32.mxu0 0.0
  %108 = vmatmul.mubr.f32.gmra.mxu0 %v18
  %v109 = vpop.f32.mrf.mxu0
  %v110 = vadd.f32 %v41, %v109
  %v111 = vpop.f32.mrf.mxu0
  %112 = vdwg.mxu0
  %v113 = vsub.f32 0.0, %v110
  %v114 = vmul.f32 %v113, 1.442695
  %v115 = vpow.pop %v114
  %v116 = vadd.f32 %v115, 1.0
  %v117 = vrcp.pop %v116
  %v118 = vmul.f32 1.0, %v117
  %119 = vst [vmem:[%s4] sm:$0xff] %v118
  // Predicated region
  $region14: #{resnet_forward.29} parent=0 // pred_check
    _
  $region15: #{resnet_forward.29} parent=0 // pred_check_branch
    %121 = sbr.rel (0) target = $region17
  $region16: #{resnet_forward.29} parent=0 // pred_region
    _
  $region17: #{resnet_forward.29} parent=0 // pred_fallthru
    _
  // Predicated region
  $region18: #{resnet_forward.29} parent=0 // pred_check
    _
  $region19: #{resnet_forward.29} parent=0 // pred_check_branch
    %123 = sbr.rel (0) target = $region21
  $region20: #{resnet_forward.29} parent=0 // pred_region
    _
  $region21: #{resnet_forward.29} parent=0 // pred_fallthru
    _
  // Predicated region
  $region22: #{resnet_forward.29} parent=0 // pred_check
    _
  $region23: #{resnet_forward.29} parent=0 // pred_check_branch
    %125 = sbr.rel (0) target = $region25
  $region24: #{resnet_forward.29} parent=0 // pred_region
    _
  $region25: #{resnet_forward.29} parent=0 // pred_fallthru
    _
  // Predicated region
  $region26: #{resnet_forward.29} parent=0 // pred_check
    _
  $region27: #{resnet_forward.29} parent=0 // pred_check_branch
    %127 = sbr.rel (0) target = $region29
  $region28: #{resnet_forward.29} parent=0 // pred_region
    _
  $region29: #{resnet_forward.29} parent=0 // pred_fallthru
    _

// kernel: resnet_forward.28
$region0: #{resnet_forward.28}
  #allocation0 [shape = 'u32[]', space=smem, size = 0x4, offset = 0x4, fixed_abs, tag = 'smem constant byte address 0x4 - core index']
  #allocation1 [shape = 'u32[144,128]{1,0:T(1,128)}', space=vmem, size = 0x12000, scoped, tag = 'internal scratch']
  %s0 = inlined_call_operand.vmem [shape: bf16[8,1152], index: 0, kind: input, shape index: {}]
  %s1 = inlined_call_operand.vmem [shape: bf16[1152,128], index: 1, kind: input, shape index: {}]
  %s2 = inlined_call_operand.vmem [shape: f32[1,128], index: 2, kind: input, shape index: {}]
  %s3 = inlined_call_operand.vmem [shape: bf16[8,128], index: 3, kind: input, shape index: {}]
  %s4 = inlined_call_operand.vmem [shape: bf16[8,128], index: 4, kind: output, shape index: {}]
  %s5 = sld [smem:[#allocation0]]
  $region26: #{resnet_forward.28} parent=0
    _
  %s7 = ssub.s32 1, %s5
  %s8 = scalar_select 0, %s7, %s5
  // Predicated region
  $region2: #{resnet_forward.28} parent=0 // pred_check
    _
  $region3: #{resnet_forward.28} parent=0 // pred_check_branch
    %10 = sbr.rel (0) target = $region5
  $region4: #{resnet_forward.28} parent=0 // pred_region
    _
  $region5: #{resnet_forward.28} parent=0 // pred_fallthru
    _
  // Predicated region
  $region6: #{resnet_forward.28} parent=0 // pred_check
    _
  $region7: #{resnet_forward.28} parent=0 // pred_check_branch
    %12 = sbr.rel (0) target = $region9
  $region8: #{resnet_forward.28} parent=0 // pred_region
    _
  $region9: #{resnet_forward.28} parent=0 // pred_fallthru
    _
  // Predicated region
  $region10: #{resnet_forward.28} parent=0 // pred_check
    _
  $region11: #{resnet_forward.28} parent=0 // pred_check_branch
    %14 = sbr.rel (0) target = $region13
  $region12: #{resnet_forward.28} parent=0 // pred_region
    _
  $region13: #{resnet_forward.28} parent=0 // pred_fallthru
    _
  // Predicated region
  $region14: #{resnet_forward.28} parent=0 // pred_check
    _
  $region15: #{resnet_forward.28} parent=0 // pred_check_branch
    %16 = sbr.rel (0) target = $region17
  $region16: #{resnet_forward.28} parent=0 // pred_region
    _
  $region17: #{resnet_forward.28} parent=0 // pred_fallthru
    _
  %v18 = vld [vmem:[%s0] sm:$0xff]
  %v19 = vld [vmem:[%s0 + $0x8] sm:$0xff]
  %v20 = vld [vmem:[%s0 + $0x10] sm:$0xff]
  %v21 = vld [vmem:[%s0 + $0x18] sm:$0xff]
  %v22 = vld [vmem:[%s0 + $0x20] sm:$0xf]
  %v23 = vld [vmem:[%s1] sm:$0xf]
  %v24 = vld [vmem:[%s1 + $0x4] sm:$0xf]
  %v25 = vld [vmem:[%s1 + $0x8] sm:$0xf]
  %v26 = vld [vmem:[%s1 + $0xc] sm:$0xf]
  %v27 = vld [vmem:[%s1 + $0x10] sm:$0xf]
  %v28 = vld [vmem:[%s1 + $0x14] sm:$0xf]
  %v29 = vld [vmem:[%s1 + $0x18] sm:$0xf]
  %v30 = vld [vmem:[%s1 + $0x1c] sm:$0xf]
  %v31 = vld [vmem:[%s1 + $0x20] sm:$0xf]
  %v32 = vld [vmem:[%s1 + $0x24] sm:$0xf]
  %v33 = vld [vmem:[%s1 + $0x28] sm:$0xf]
  %v34 = vld [vmem:[%s1 + $0x2c] sm:$0xf]
  %v35 = vld [vmem:[%s1 + $0x30] sm:$0xf]
  %v36 = vld [vmem:[%s1 + $0x34] sm:$0xf]
  %v37 = vld [vmem:[%s1 + $0x38] sm:$0xf]
  %v38 = vld [vmem:[%s1 + $0x3c] sm:$0xf]
  %v39 = vld [vmem:[%s1 + $0x40] sm:$0xf]
  %v40 = vld [vmem:[%s1 + $0x44] sm:$0xf]
  %v41 = vld [vmem:[%s1 + $0x48] sm:$0xf]
  %v42 = vld [vmem:[%s1 + $0x4c] sm:$0xf]
  %v43 = vld [vmem:[%s1 + $0x50] sm:$0xf]
  %v44 = vld [vmem:[%s1 + $0x54] sm:$0xf]
  %v45 = vld [vmem:[%s1 + $0x58] sm:$0xf]
  %v46 = vld [vmem:[%s1 + $0x5c] sm:$0xf]
  %v47 = vld [vmem:[%s1 + $0x60] sm:$0xf]
  %v48 = vld [vmem:[%s1 + $0x64] sm:$0xf]
  %v49 = vld [vmem:[%s1 + $0x68] sm:$0xf]
  %v50 = vld [vmem:[%s1 + $0x6c] sm:$0xf]
  %v51 = vld [vmem:[%s1 + $0x70] sm:$0xf]
  %v52 = vld [vmem:[%s1 + $0x74] sm:$0xf]
  %v53 = vld [vmem:[%s1 + $0x78] sm:$0xf]
  %v54 = vld [vmem:[%s1 + $0x7c] sm:$0xf]
  %v55 = vld [vmem:[%s1 + $0x80] sm:$0xf]
  %v56 = vld [vmem:[%s1 + $0x84] sm:$0xf]
  %v57 = vld [vmem:[%s1 + $0x88] sm:$0xf]
  %v58 = vld [vmem:[%s1 + $0x8c] sm:$0xf]
  %v59 = vld [vmem:[%s1 + $0x90] sm:$0xf]
  %v60 = vld [vmem:[%s1 + $0x94] sm:$0xf]
  %v61 = vld [vmem:[%s1 + $0x98] sm:$0xf]
  %v62 = vld [vmem:[%s1 + $0x9c] sm:$0xf]
  %v63 = vld [vmem:[%s1 + $0xa0] sm:$0xf]
  %v64 = vld [vmem:[%s1 + $0xa4] sm:$0xf]
  %v65 = vld [vmem:[%s1 + $0xa8] sm:$0xf]
  %v66 = vld [vmem:[%s1 + $0xac] sm:$0xf]
  %v67 = vld [vmem:[%s1 + $0xb0] sm:$0xf]
  %v68 = vld [vmem:[%s1 + $0xb4] sm:$0xf]
  %v69 = vld [vmem:[%s1 + $0xb8] sm:$0xf]
  %v70 = vld [vmem:[%s1 + $0xbc] sm:$0xf]
  %v71 = vld [vmem:[%s1 + $0xc0] sm:$0xf]
  %v72 = vld [vmem:[%s1 + $0xc4] sm:$0xf]
  %v73 = vld [vmem:[%s1 + $0xc8] sm:$0xf]
  %v74 = vld [vmem:[%s1 + $0xcc] sm:$0xf]
  %v75 = vld [vmem:[%s1 + $0xd0] sm:$0xf]
  %v76 = vld [vmem:[%s1 + $0xd4] sm:$0xf]
  %v77 = vld [vmem:[%s1 + $0xd8] sm:$0xf]
  %v78 = vld [vmem:[%s1 + $0xdc] sm:$0xf]
  %v79 = vld [vmem:[%s1 + $0xe0] sm:$0xf]
  %v80 = vld [vmem:[%s1 + $0xe4] sm:$0xf]
  %v81 = vld [vmem:[%s1 + $0xe8] sm:$0xf]
  %v82 = vld [vmem:[%s1 + $0xec] sm:$0xf]
  %v83 = vld [vmem:[%s1 + $0xf0] sm:$0xf]
  %v84 = vld [vmem:[%s1 + $0xf4] sm:$0xf]
  %v85 = vld [vmem:[%s1 + $0xf8] sm:$0xf]
  %v86 = vld [vmem:[%s1 + $0xfc] sm:$0xf]
  %v87 = vld [vmem:[%s1 + $0x100] sm:$0xf]
  %v88 = vld [vmem:[%s1 + $0x104] sm:$0xf]
  %v89 = vld [vmem:[%s1 + $0x108] sm:$0xf]
  %v90 = vld [vmem:[%s1 + $0x10c] sm:$0xf]
  %v91 = vld [vmem:[%s1 + $0x110] sm:$0xf]
  %v92 = vld [vmem:[%s1 + $0x114] sm:$0xf]
  %v93 = vld [vmem:[%s1 + $0x118] sm:$0xf]
  %v94 = vld [vmem:[%s1 + $0x11c] sm:$0xf]
  %v95 = vld [vmem:[%s1 + $0x120] sm:$0xf]
  %v96 = vld [vmem:[%s1 + $0x124] sm:$0xf]
  %v97 = vld [vmem:[%s1 + $0x128] sm:$0xf]
  %v98 = vld [vmem:[%s1 + $0x12c] sm:$0xf]
  %v99 = vld [vmem:[%s1 + $0x130] sm:$0xf]
  %v100 = vld [vmem:[%s1 + $0x134] sm:$0xf]
  %v101 = vld [vmem:[%s1 + $0x138] sm:$0xf]
  %v102 = vld [vmem:[%s1 + $0x13c] sm:$0xf]
  %v103 = vld [vmem:[%s1 + $0x140] sm:$0xf]
  %v104 = vld [vmem:[%s1 + $0x144] sm:$0xf]
  %v105 = vld [vmem:[%s1 + $0x148] sm:$0xf]
  %v106 = vld [vmem:[%s1 + $0x14c] sm:$0xf]
  %v107 = vld [vmem:[%s1 + $0x150] sm:$0xf]
  %v108 = vld [vmem:[%s1 + $0x154] sm:$0xf]
  %v109 = vld [vmem:[%s1 + $0x158] sm:$0xf]
  %v110 = vld [vmem:[%s1 + $0x15c] sm:$0xf]
  %v111 = vld [vmem:[%s1 + $0x160] sm:$0xf]
  %v112 = vld [vmem:[%s1 + $0x164] sm:$0xf]
  %v113 = vld [vmem:[%s1 + $0x168] sm:$0xf]
  %v114 = vld [vmem:[%s1 + $0x16c] sm:$0xf]
  %v115 = vld [vmem:[%s1 + $0x170] sm:$0xf]
  %v116 = vld [vmem:[%s1 + $0x174] sm:$0xf]
  %v117 = vld [vmem:[%s1 + $0x178] sm:$0xf]
  %v118 = vld [vmem:[%s1 + $0x17c] sm:$0xf]
  %v119 = vld [vmem:[%s1 + $0x180] sm:$0xf]
  %v120 = vld [vmem:[%s1 + $0x184] sm:$0xf]
  %v121 = vld [vmem:[%s1 + $0x188] sm:$0xf]
  %v122 = vld [vmem:[%s1 + $0x18c] sm:$0xf]
  %v123 = vld [vmem:[%s1 + $0x190] sm:$0xf]
  %v124 = vld [vmem:[%s1 + $0x194] sm:$0xf]
  %v125 = vld [vmem:[%s1 + $0x198] sm:$0xf]
  %v126 = vld [vmem:[%s1 + $0x19c] sm:$0xf]
  %v127 = vld [vmem:[%s1 + $0x1a0] sm:$0xf]
  %v128 = vld [vmem:[%s1 + $0x1a4] sm:$0xf]
  %v129 = vld [vmem:[%s1 + $0x1a8] sm:$0xf]
  %v130 = vld [vmem:[%s1 + $0x1ac] sm:$0xf]
  %v131 = vld [vmem:[%s1 + $0x1b0] sm:$0xf]
  %v132 = vld [vmem:[%s1 + $0x1b4] sm:$0xf]
  %v133 = vld [vmem:[%s1 + $0x1b8] sm:$0xf]
  %v134 = vld [vmem:[%s1 + $0x1bc] sm:$0xf]
  %v135 = vld [vmem:[%s1 + $0x1c0] sm:$0xf]
  %v136 = vld [vmem:[%s1 + $0x1c4] sm:$0xf]
  %v137 = vld [vmem:[%s1 + $0x1c8] sm:$0xf]
  %v138 = vld [vmem:[%s1 + $0x1cc] sm:$0xf]
  %v139 = vld [vmem:[%s1 + $0x1d0] sm:$0xf]
  %v140 = vld [vmem:[%s1 + $0x1d4] sm:$0xf]
  %v141 = vld [vmem:[%s1 + $0x1d8] sm:$0xf]
  %v142 = vld [vmem:[%s1 + $0x1dc] sm:$0xf]
  %v143 = vld [vmem:[%s1 + $0x1e0] sm:$0xf]
  %v144 = vld [vmem:[%s1 + $0x1e4] sm:$0xf]
  %v145 = vld [vmem:[%s1 + $0x1e8] sm:$0xf]
  %v146 = vld [vmem:[%s1 + $0x1ec] sm:$0xf]
  %v147 = vld [vmem:[%s1 + $0x1f0] sm:$0xf]
  %v148 = vld [vmem:[%s1 + $0x1f4] sm:$0xf]
  %v149 = vld [vmem:[%s1 + $0x1f8] sm:$0xf]
  %v150 = vld [vmem:[%s1 + $0x1fc] sm:$0xf]
  %v151 = vld [vmem:[%s1 + $0x200] sm:$0xf]
  %v152 = vld [vmem:[%s1 + $0x204] sm:$0xf]
  %v153 = vld [vmem:[%s1 + $0x208] sm:$0xf]
  %v154 = vld [vmem:[%s1 + $0x20c] sm:$0xf]
  %v155 = vld [vmem:[%s1 + $0x210] sm:$0xf]
  %v156 = vld [vmem:[%s1 + $0x214] sm:$0xf]
  %v157 = vld [vmem:[%s1 + $0x218] sm:$0xf]
  %v158 = vld [vmem:[%s1 + $0x21c] sm:$0xf]
  %v159 = vld [vmem:[%s1 + $0x220] sm:$0xf]
  %v160 = vld [vmem:[%s1 + $0x224] sm:$0xf]
  %v161 = vld [vmem:[%s1 + $0x228] sm:$0xf]
  %v162 = vld [vmem:[%s1 + $0x22c] sm:$0xf]
  %v163 = vld [vmem:[%s1 + $0x230] sm:$0xf]
  %v164 = vld [vmem:[%s1 + $0x234] sm:$0xf]
  %v165 = vld [vmem:[%s1 + $0x238] sm:$0xf]
  %v166 = vld [vmem:[%s1 + $0x23c] sm:$0xf]
  %v167 = vld [vmem:[%s2] sm:$0x1]
  %v169 = vlaneseq
  %v170 = vshrl.u32 %v169, 7
  %v171 = vsub.s32 0, %v170
  %v172 = vrot.slane %v167, %v171
  %v179 = vunpack.c.l.b16 %v18
  %v180 = vunpack.c.h.b16 %v18
  %v181 = vunpack.c.l.b16 %v19
  %v182 = vunpack.c.h.b16 %v19
  %v183 = vunpack.c.l.b16 %v20
  %v184 = vunpack.c.h.b16 %v20
  %v185 = vunpack.c.l.b16 %v21
  %v186 = vunpack.c.h.b16 %v21
  %v187 = vunpack.c.l.b16 %v22
  %v188 = vpack.c.b16 %v179, %v179
  %v189 = vpack.c.b16 %v180, %v180
  %v190 = vpack.c.b16 %v181, %v181
  %v191 = vpack.c.b16 %v182, %v182
  %v192 = vpack.c.b16 %v183, %v183
  %v193 = vpack.c.b16 %v184, %v184
  %v194 = vpack.c.b16 %v185, %v185
  %v195 = vpack.c.b16 %v186, %v186
  %v196 = vpack.c.b16 %v187, %v187
  %v350 = vunpack.c.l.b16 %v23
  %v351 = vunpack.c.l.b16 %v24
  %v352 = vunpack.c.l.b16 %v25
  %v353 = vunpack.c.l.b16 %v26
  %v354 = vunpack.c.l.b16 %v27
  %v355 = vunpack.c.l.b16 %v28
  %v356 = vunpack.c.l.b16 %v29
  %v357 = vunpack.c.l.b16 %v30
  %v358 = vunpack.c.l.b16 %v31
  %v359 = vunpack.c.l.b16 %v32
  %v360 = vunpack.c.l.b16 %v33
  %v361 = vunpack.c.l.b16 %v34
  %v362 = vunpack.c.l.b16 %v35
  %v363 = vunpack.c.l.b16 %v36
  %v364 = vunpack.c.l.b16 %v37
  %v365 = vunpack.c.l.b16 %v38
  %v366 = vunpack.c.l.b16 %v39
  %v367 = vunpack.c.l.b16 %v40
  %v368 = vunpack.c.l.b16 %v41
  %v369 = vunpack.c.l.b16 %v42
  %v370 = vunpack.c.l.b16 %v43
  %v371 = vunpack.c.l.b16 %v44
  %v372 = vunpack.c.l.b16 %v45
  %v373 = vunpack.c.l.b16 %v46
  %v374 = vunpack.c.l.b16 %v47
  %v375 = vunpack.c.l.b16 %v48
  %v376 = vunpack.c.l.b16 %v49
  %v377 = vunpack.c.l.b16 %v50
  %v378 = vunpack.c.l.b16 %v51
  %v379 = vunpack.c.l.b16 %v52
  %v380 = vunpack.c.l.b16 %v53
  %v381 = vunpack.c.l.b16 %v54
  %v382 = vunpack.c.l.b16 %v55
  %v383 = vunpack.c.l.b16 %v56
  %v384 = vunpack.c.l.b16 %v57
  %v385 = vunpack.c.l.b16 %v58
  %v386 = vunpack.c.l.b16 %v59
  %v387 = vunpack.c.l.b16 %v60
  %v388 = vunpack.c.l.b16 %v61
  %v389 = vunpack.c.l.b16 %v62
  %v390 = vunpack.c.l.b16 %v63
  %v391 = vunpack.c.l.b16 %v64
  %v392 = vunpack.c.l.b16 %v65
  %v393 = vunpack.c.l.b16 %v66
  %v394 = vunpack.c.l.b16 %v67
  %v395 = vunpack.c.l.b16 %v68
  %v396 = vunpack.c.l.b16 %v69
  %v397 = vunpack.c.l.b16 %v70
  %v398 = vunpack.c.l.b16 %v71
  %v399 = vunpack.c.l.b16 %v72
  %v400 = vunpack.c.l.b16 %v73
  %v401 = vunpack.c.l.b16 %v74
  %v402 = vunpack.c.l.b16 %v75
  %v403 = vunpack.c.l.b16 %v76
  %v404 = vunpack.c.l.b16 %v77
  %v405 = vunpack.c.l.b16 %v78
  %v406 = vunpack.c.l.b16 %v79
  %v407 = vunpack.c.l.b16 %v80
  %v408 = vunpack.c.l.b16 %v81
  %v409 = vunpack.c.l.b16 %v82
  %v410 = vunpack.c.l.b16 %v83
  %v411 = vunpack.c.l.b16 %v84
  %v412 = vunpack.c.l.b16 %v85
  %v413 = vunpack.c.l.b16 %v86
  %v414 = vunpack.c.l.b16 %v87
  %v415 = vunpack.c.l.b16 %v88
  %v416 = vunpack.c.l.b16 %v89
  %v417 = vunpack.c.l.b16 %v90
  %v418 = vunpack.c.l.b16 %v91
  %v419 = vunpack.c.l.b16 %v92
  %v420 = vunpack.c.l.b16 %v93
  %v421 = vunpack.c.l.b16 %v94
  %v422 = vunpack.c.l.b16 %v95
  %v423 = vunpack.c.l.b16 %v96
  %v424 = vunpack.c.l.b16 %v97
  %v425 = vunpack.c.l.b16 %v98
  %v426 = vunpack.c.l.b16 %v99
  %v427 = vunpack.c.l.b16 %v100
  %v428 = vunpack.c.l.b16 %v101
  %v429 = vunpack.c.l.b16 %v102
  %v430 = vunpack.c.l.b16 %v103
  %v431 = vunpack.c.l.b16 %v104
  %v432 = vunpack.c.l.b16 %v105
  %v433 = vunpack.c.l.b16 %v106
  %v434 = vunpack.c.l.b16 %v107
  %v435 = vunpack.c.l.b16 %v108
  %v436 = vunpack.c.l.b16 %v109
  %v437 = vunpack.c.l.b16 %v110
  %v438 = vunpack.c.l.b16 %v111
  %v439 = vunpack.c.l.b16 %v112
  %v440 = vunpack.c.l.b16 %v113
  %v441 = vunpack.c.l.b16 %v114
  %v442 = vunpack.c.l.b16 %v115
  %v443 = vunpack.c.l.b16 %v116
  %v444 = vunpack.c.l.b16 %v117
  %v445 = vunpack.c.l.b16 %v118
  %v446 = vunpack.c.l.b16 %v119
  %v447 = vunpack.c.l.b16 %v120
  %v448 = vunpack.c.l.b16 %v121
  %v449 = vunpack.c.l.b16 %v122
  %v450 = vunpack.c.l.b16 %v123
  %v451 = vunpack.c.l.b16 %v124
  %v452 = vunpack.c.l.b16 %v125
  %v453 = vunpack.c.l.b16 %v126
  %v454 = vunpack.c.l.b16 %v127
  %v455 = vunpack.c.l.b16 %v128
  %v456 = vunpack.c.l.b16 %v129
  %v457 = vunpack.c.l.b16 %v130
  %v458 = vunpack.c.l.b16 %v131
  %v459 = vunpack.c.l.b16 %v132
  %v460 = vunpack.c.l.b16 %v133
  %v461 = vunpack.c.l.b16 %v134
  %v462 = vunpack.c.l.b16 %v135
  %v463 = vunpack.c.l.b16 %v136
  %v464 = vunpack.c.l.b16 %v137
  %v465 = vunpack.c.l.b16 %v138
  %v466 = vunpack.c.l.b16 %v139
  %v467 = vunpack.c.l.b16 %v140
  %v468 = vunpack.c.l.b16 %v141
  %v469 = vunpack.c.l.b16 %v142
  %v470 = vunpack.c.l.b16 %v143
  %v471 = vunpack.c.l.b16 %v144
  %v472 = vunpack.c.l.b16 %v145
  %v473 = vunpack.c.l.b16 %v146
  %v474 = vunpack.c.l.b16 %v147
  %v475 = vunpack.c.l.b16 %v148
  %v476 = vunpack.c.l.b16 %v149
  %v477 = vunpack.c.l.b16 %v150
  %v478 = vunpack.c.l.b16 %v151
  %v479 = vunpack.c.l.b16 %v152
  %v480 = vunpack.c.l.b16 %v153
  %v481 = vunpack.c.l.b16 %v154
  %v482 = vunpack.c.l.b16 %v155
  %v483 = vunpack.c.l.b16 %v156
  %v484 = vunpack.c.l.b16 %v157
  %v485 = vunpack.c.l.b16 %v158
  %v486 = vunpack.c.l.b16 %v159
  %v487 = vunpack.c.l.b16 %v160
  %v488 = vunpack.c.l.b16 %v161
  %v489 = vunpack.c.l.b16 %v162
  %v490 = vunpack.c.l.b16 %v163
  %v491 = vunpack.c.l.b16 %v164
  %v492 = vunpack.c.l.b16 %v165
  %v493 = vunpack.c.l.b16 %v166
  %v494 = vpack.c.b16 %v351, %v350
  %v495 = vpack.c.b16 %v353, %v352
  %v496 = vpack.c.b16 %v355, %v354
  %v497 = vpack.c.b16 %v357, %v356
  %v498 = vpack.c.b16 %v359, %v358
  %v499 = vpack.c.b16 %v361, %v360
  %v500 = vpack.c.b16 %v363, %v362
  %v501 = vpack.c.b16 %v365, %v364
  %v502 = vpack.c.b16 %v367, %v366
  %v503 = vpack.c.b16 %v369, %v368
  %v504 = vpack.c.b16 %v371, %v370
  %v505 = vpack.c.b16 %v373, %v372
  %v506 = vpack.c.b16 %v375, %v374
  %v507 = vpack.c.b16 %v377, %v376
  %v508 = vpack.c.b16 %v379, %v378
  %v509 = vpack.c.b16 %v381, %v380
  %v510 = vpack.c.b16 %v383, %v382
  %v511 = vpack.c.b16 %v385, %v384
  %v512 = vpack.c.b16 %v387, %v386
  %v513 = vpack.c.b16 %v389, %v388
  %v514 = vpack.c.b16 %v391, %v390
  %v515 = vpack.c.b16 %v393, %v392
  %v516 = vpack.c.b16 %v395, %v394
  %v517 = vpack.c.b16 %v397, %v396
  %v518 = vpack.c.b16 %v399, %v398
  %v519 = vpack.c.b16 %v401, %v400
  %v520 = vpack.c.b16 %v403, %v402
  %v521 = vpack.c.b16 %v405, %v404
  %v522 = vpack.c.b16 %v407, %v406
  %v523 = vpack.c.b16 %v409, %v408
  %v524 = vpack.c.b16 %v411, %v410
  %v525 = vpack.c.b16 %v413, %v412
  %v526 = vpack.c.b16 %v415, %v414
  %v527 = vpack.c.b16 %v417, %v416
  %v528 = vpack.c.b16 %v419, %v418
  %v529 = vpack.c.b16 %v421, %v420
  %v530 = vpack.c.b16 %v423, %v422
  %v531 = vpack.c.b16 %v425, %v424
  %v532 = vpack.c.b16 %v427, %v426
  %v533 = vpack.c.b16 %v429, %v428
  %v534 = vpack.c.b16 %v431, %v430
  %v535 = vpack.c.b16 %v433, %v432
  %v536 = vpack.c.b16 %v435, %v434
  %v537 = vpack.c.b16 %v437, %v436
  %v538 = vpack.c.b16 %v439, %v438
  %v539 = vpack.c.b16 %v441, %v440
  %v540 = vpack.c.b16 %v443, %v442
  %v541 = vpack.c.b16 %v445, %v444
  %v542 = vpack.c.b16 %v447, %v446
  %v543 = vpack.c.b16 %v449, %v448
  %v544 = vpack.c.b16 %v451, %v450
  %v545 = vpack.c.b16 %v453, %v452
  %v546 = vpack.c.b16 %v455, %v454
  %v547 = vpack.c.b16 %v457, %v456
  %v548 = vpack.c.b16 %v459, %v458
  %v549 = vpack.c.b16 %v461, %v460
  %v550 = vpack.c.b16 %v463, %v462
  %v551 = vpack.c.b16 %v465, %v464
  %v552 = vpack.c.b16 %v467, %v466
  %v553 = vpack.c.b16 %v469, %v468
  %v554 = vpack.c.b16 %v471, %v470
  %v555 = vpack.c.b16 %v473, %v472
  %v556 = vpack.c.b16 %v475, %v474
  %v557 = vpack.c.b16 %v477, %v476
  %v558 = vpack.c.b16 %v479, %v478
  %v559 = vpack.c.b16 %v481, %v480
  %v560 = vpack.c.b16 %v483, %v482
  %v561 = vpack.c.b16 %v485, %v484
  %v562 = vpack.c.b16 %v487, %v486
  %v563 = vpack.c.b16 %v489, %v488
  %v564 = vpack.c.b16 %v491, %v490
  %v565 = vpack.c.b16 %v493, %v492
  %638 = vmatprep.subr.bf16.mxu0 0
  %639 = vmatpush1.bf16.msra.mxu0 %v501
  %640 = vmatprep.subr.bf16.mxu0 0
  %641 = vmatpush1.bf16.msra.mxu0 %v500
  %642 = vmatprep.subr.bf16.mxu0 0
  %643 = vmatpush1.bf16.msra.mxu0 %v499
  %644 = vmatprep.subr.bf16.mxu0 0
  %645 = vmatpush1.bf16.msra.mxu0 %v498
  %646 = vmatprep.subr.bf16.mxu0 0
  %647 = vmatpush1.bf16.msra.mxu0 %v497
  %648 = vmatprep.subr.bf16.mxu0 0
  %649 = vmatpush1.bf16.msra.mxu0 %v496
  %650 = vmatprep.subr.bf16.mxu0 0
  %651 = vmatpush1.bf16.msra.mxu0 %v495
  %652 = vmatprep.subr.bf16.mxu0 0
  %653 = vmatpush1.bf16.msra.mxu0 %v494
  %654 = vmatprep.subr.bf16.mxu0 0
  %655 = vmatpush2.bf16.msra.mxu0 %v509
  %656 = vmatprep.subr.bf16.mxu0 0
  %657 = vmatpush2.bf16.msra.mxu0 %v508
  %658 = vmatprep.subr.bf16.mxu0 0
  %659 = vmatpush2.bf16.msra.mxu0 %v507
  %660 = vmatprep.subr.bf16.mxu0 0
  %661 = vmatpush2.bf16.msra.mxu0 %v506
  %662 = vmatprep.subr.bf16.mxu0 0
  %663 = vmatpush2.bf16.msra.mxu0 %v505
  %664 = vmatprep.subr.bf16.mxu0 0
  %665 = vmatpush2.bf16.msra.mxu0 %v504
  %666 = vmatprep.subr.bf16.mxu0 0
  %667 = vmatpush2.bf16.msra.mxu0 %v503
  %668 = vmatprep.subr.bf16.mxu0 0
  %669 = vmatpush2.bf16.msra.mxu0 %v502
  %670 = vmatprep.mubr.bf16.mxu0 %v189
  %671 = vmatmul.mubr.bf16.gmra.mxu0 %v188
  %v672 = vpop.f32.mrf.mxu0
  %v673 = vadd.f32 %v172, %v672
  %v674 = vpop.f32.mrf.mxu0
  %v675 = vpop.f32.mrf.mxu0
  %v676 = vpop.f32.mrf.mxu0
  %677 = vdwg.mxu0
  %678 = vmatprep.subr.bf16.mxu0 0
  %679 = vmatpush1.bf16.msra.mxu0 %v517
  %680 = vmatprep.subr.bf16.mxu0 0
  %681 = vmatpush1.bf16.msra.mxu0 %v516
  %682 = vmatprep.subr.bf16.mxu0 0
  %683 = vmatpush1.bf16.msra.mxu0 %v515
  %684 = vmatprep.subr.bf16.mxu0 0
  %685 = vmatpush1.bf16.msra.mxu0 %v514
  %686 = vmatprep.subr.bf16.mxu0 0
  %687 = vmatpush1.bf16.msra.mxu0 %v513
  %688 = vmatprep.subr.bf16.mxu0 0
  %689 = vmatpush1.bf16.msra.mxu0 %v512
  %690 = vmatprep.subr.bf16.mxu0 0
  %691 = vmatpush1.bf16.msra.mxu0 %v511
  %692 = vmatprep.subr.bf16.mxu0 0
  %693 = vmatpush1.bf16.msra.mxu0 %v510
  %694 = vmatprep.subr.bf16.mxu0 0
  %695 = vmatpush2.bf16.msra.mxu0 %v525
  %696 = vmatprep.subr.bf16.mxu0 0
  %697 = vmatpush2.bf16.msra.mxu0 %v524
  %698 = vmatprep.subr.bf16.mxu0 0
  %699 = vmatpush2.bf16.msra.mxu0 %v523
  %700 = vmatprep.subr.bf16.mxu0 0
  %701 = vmatpush2.bf16.msra.mxu0 %v522
  %702 = vmatprep.subr.bf16.mxu0 0
  %703 = vmatpush2.bf16.msra.mxu0 %v521
  %704 = vmatprep.subr.bf16.mxu0 0
  %705 = vmatpush2.bf16.msra.mxu0 %v520
  %706 = vmatprep.subr.bf16.mxu0 0
  %707 = vmatpush2.bf16.msra.mxu0 %v519
  %708 = vmatprep.subr.bf16.mxu0 0
  %709 = vmatpush2.bf16.msra.mxu0 %v518
  %710 = vmatprep.mubr.bf16.mxu0 %v191
  %711 = vmatmul.mubr.bf16.gmra.mxu0 %v190
  %v712 = vpop.f32.mrf.mxu0
  %v713 = vadd.f32 %v673, %v712
  %v714 = vpop.f32.mrf.mxu0
  %v715 = vpop.f32.mrf.mxu0
  %v716 = vpop.f32.mrf.mxu0
  %717 = vdwg.mxu0
  %718 = vmatprep.subr.bf16.mxu0 0
  %719 = vmatpush1.bf16.msra.mxu0 %v533
  %720 = vmatprep.subr.bf16.mxu0 0
  %721 = vmatpush1.bf16.msra.mxu0 %v532
  %722 = vmatprep.subr.bf16.mxu0 0
  %723 = vmatpush1.bf16.msra.mxu0 %v531
  %724 = vmatprep.subr.bf16.mxu0 0
  %725 = vmatpush1.bf16.msra.mxu0 %v530
  %726 = vmatprep.subr.bf16.mxu0 0
  %727 = vmatpush1.bf16.msra.mxu0 %v529
  %728 = vmatprep.subr.bf16.mxu0 0
  %729 = vmatpush1.bf16.msra.mxu0 %v528
  %730 = vmatprep.subr.bf16.mxu0 0
  %731 = vmatpush1.bf16.msra.mxu0 %v527
  %732 = vmatprep.subr.bf16.mxu0 0
  %733 = vmatpush1.bf16.msra.mxu0 %v526
  %734 = vmatprep.subr.bf16.mxu0 0
  %735 = vmatpush2.bf16.msra.mxu0 %v541
  %736 = vmatprep.subr.bf16.mxu0 0
  %737 = vmatpush2.bf16.msra.mxu0 %v540
  %738 = vmatprep.subr.bf16.mxu0 0
  %739 = vmatpush2.bf16.msra.mxu0 %v539
  %740 = vmatprep.subr.bf16.mxu0 0
  %741 = vmatpush2.bf16.msra.mxu0 %v538
  %742 = vmatprep.subr.bf16.mxu0 0
  %743 = vmatpush2.bf16.msra.mxu0 %v537
  %744 = vmatprep.subr.bf16.mxu0 0
  %745 = vmatpush2.bf16.msra.mxu0 %v536
  %746 = vmatprep.subr.bf16.mxu0 0
  %747 = vmatpush2.bf16.msra.mxu0 %v535
  %748 = vmatprep.subr.bf16.mxu0 0
  %749 = vmatpush2.bf16.msra.mxu0 %v534
  %750 = vmatprep.mubr.bf16.mxu0 %v193
  %751 = vmatmul.mubr.bf16.gmra.mxu0 %v192
  %v752 = vpop.f32.mrf.mxu0
  %v753 = vadd.f32 %v713, %v752
  %v754 = vpop.f32.mrf.mxu0
  %v755 = vpop.f32.mrf.mxu0
  %v756 = vpop.f32.mrf.mxu0
  %757 = vdwg.mxu0
  %758 = vmatprep.subr.bf16.mxu0 0
  %759 = vmatpush1.bf16.msra.mxu0 %v549
  %760 = vmatprep.subr.bf16.mxu0 0
  %761 = vmatpush1.bf16.msra.mxu0 %v548
  %762 = vmatprep.subr.bf16.mxu0 0
  %763 = vmatpush1.bf16.msra.mxu0 %v547
  %764 = vmatprep.subr.bf16.mxu0 0
  %765 = vmatpush1.bf16.msra.mxu0 %v546
  %766 = vmatprep.subr.bf16.mxu0 0
  %767 = vmatpush1.bf16.msra.mxu0 %v545
  %768 = vmatprep.subr.bf16.mxu0 0
  %769 = vmatpush1.bf16.msra.mxu0 %v544
  %770 = vmatprep.subr.bf16.mxu0 0
  %771 = vmatpush1.bf16.msra.mxu0 %v543
  %772 = vmatprep.subr.bf16.mxu0 0
  %773 = vmatpush1.bf16.msra.mxu0 %v542
  %774 = vmatprep.subr.bf16.mxu0 0
  %775 = vmatpush2.bf16.msra.mxu0 %v557
  %776 = vmatprep.subr.bf16.mxu0 0
  %777 = vmatpush2.bf16.msra.mxu0 %v556
  %778 = vmatprep.subr.bf16.mxu0 0
  %779 = vmatpush2.bf16.msra.mxu0 %v555
  %780 = vmatprep.subr.bf16.mxu0 0
  %781 = vmatpush2.bf16.msra.mxu0 %v554
  %782 = vmatprep.subr.bf16.mxu0 0
  %783 = vmatpush2.bf16.msra.mxu0 %v553
  %784 = vmatprep.subr.bf16.mxu0 0
  %785 = vmatpush2.bf16.msra.mxu0 %v552
  %786 = vmatprep.subr.bf16.mxu0 0
  %787 = vmatpush2.bf16.msra.mxu0 %v551
  %788 = vmatprep.subr.bf16.mxu0 0
  %789 = vmatpush2.bf16.msra.mxu0 %v550
  %790 = vmatprep.mubr.bf16.mxu0 %v195
  %791 = vmatmul.mubr.bf16.gmra.mxu0 %v194
  %v792 = vpop.f32.mrf.mxu0
  %v793 = vadd.f32 %v753, %v792
  %v794 = vpop.f32.mrf.mxu0
  %v795 = vpop.f32.mrf.mxu0
  %v796 = vpop.f32.mrf.mxu0
  %797 = vdwg.mxu0
  %798 = vmatprep.subr.bf16.mxu0 0
  %799 = vmatpush1.bf16.msra.mxu0 %v565
  %800 = vmatprep.subr.bf16.mxu0 0
  %801 = vmatpush1.bf16.msra.mxu0 %v564
  %802 = vmatprep.subr.bf16.mxu0 0
  %803 = vmatpush1.bf16.msra.mxu0 %v563
  %804 = vmatprep.subr.bf16.mxu0 0
  %805 = vmatpush1.bf16.msra.mxu0 %v562
  %806 = vmatprep.subr.bf16.mxu0 0
  %807 = vmatpush1.bf16.msra.mxu0 %v561
  %808 = vmatprep.subr.bf16.mxu0 0
  %809 = vmatpush1.bf16.msra.mxu0 %v560
  %810 = vmatprep.subr.bf16.mxu0 0
  %811 = vmatpush1.bf16.msra.mxu0 %v559
  %812 = vmatprep.subr.bf16.mxu0 0
  %813 = vmatpush1.bf16.msra.mxu0 %v558
  %814 = vmatprep.subr.bf16.mxu0 0
  %815 = vmatpush2.bf16.msra.mxu0 0
  %816 = vmatprep.subr.bf16.mxu0 0
  %817 = vmatpush2.bf16.msra.mxu0 0
  %818 = vmatprep.subr.bf16.mxu0 0
  %819 = vmatpush2.bf16.msra.mxu0 0
  %820 = vmatprep.subr.bf16.mxu0 0
  %821 = vmatpush2.bf16.msra.mxu0 0
  %822 = vmatprep.subr.bf16.mxu0 0
  %823 = vmatpush2.bf16.msra.mxu0 0
  %824 = vmatprep.subr.bf16.mxu0 0
  %825 = vmatpush2.bf16.msra.mxu0 0
  %826 = vmatprep.subr.bf16.mxu0 0
  %827 = vmatpush2.bf16.msra.mxu0 0
  %828 = vmatprep.subr.bf16.mxu0 0
  %829 = vmatpush2.bf16.msra.mxu0 0
  %830 = vmatprep.mubr.bf16.mxu0 0
  %831 = vmatmul.mubr.bf16.gmra.mxu0 %v196
  %v832 = vpop.f32.mrf.mxu0
  %v833 = vadd.f32 %v793, %v832
  %v834 = vpop.f32.mrf.mxu0
  %v835 = vpop.f32.mrf.mxu0
  %v836 = vpop.f32.mrf.mxu0
  %837 = vdwg.mxu0
  %v838 = vld [vmem:[%s3] sm:$0xf]
  %v839 = vunpack.c.l.bf16 %v838
  %v840 = vadd.f32 %v833, %v839
  %v841 = vmax.f32 %v840, 0.0
  %v842 = vpack.c.bf16 %v841, %v841
  %843 = vst [vmem:[%s4] sm:$0xf] %v842
  // Predicated region
  $region18: #{resnet_forward.28} parent=0 // pred_check
    _
  $region19: #{resnet_forward.28} parent=0 // pred_check_branch
    %845 = sbr.rel (0) target = $region21
  $region20: #{resnet_forward.28} parent=0 // pred_region
    _
  $region21: #{resnet_forward.28} parent=0 // pred_fallthru
    _
  // Predicated region
  $region22: #{resnet_forward.28} parent=0 // pred_check
    _
  $region23: #{resnet_forward.28} parent=0 // pred_check_branch
    %847 = sbr.rel (0) target = $region25
  $region24: #{resnet_forward.28} parent=0 // pred_region
    _
  $region25: #{resnet_forward.28} parent=0 // pred_fallthru
    _

</llo_original>
